<compile_context>
chip_gen: v5e
topology: v5e:2x2
jax: 0.10.0
libtpu: 0.0.40
codegen_flags: <defaults>
</compile_context>

<pallas_src>
import jax
import jax.numpy as jnp
from jax.experimental import pallas as pl
from jax.experimental.pallas import tpu as pltpu


def _round_up(v, m):
    return (v + m - 1) // m * m


# ----------------------------------------------------------------------------- kernel
def _sa_kernel(x_ref, xn_ref,
               w1_ref, b1_ref, w2_ref, b2_ref,
               wa_ref, wb_ref,
               w3_ref, b3_ref,
               ww2_ref, bw2_ref,
               wo_ref, bo_ref,
               o_ref,
               x3_scr, w_scr):
    """Fused SA_module forward for one tile of TM points.

    x_ref  : (TM, C_in) f32       raw input rows (residual; relu'd in-kernel for x1)
    xn_ref : (k, TM, C_in) bf16   gathered kNN neighbor rows, already relu'd
    repacked weights (see _repack_params):
      w1,b1   conv1                           (C_in, rel) bf16, (1, rel) f32
      w2,b2   conv2                           (C_in, rel) bf16, (1, rel) f32
      wa      conv_w[1] rows for the x1 part  (rel, g) bf16
      wb      conv_w[1] rows for the x2 part  (k, rel, g) bf16
      w3,b3   conv3 (channel-permuted, lane-padded to MIDP)   (C_in, MIDP), (1, MIDP)
      ww2,bw2 conv_w[3] expanded over share_planes and lane-concatenated over k
                                              (g, k*MIDP), (1, k*MIDP)
      wo,bo   conv_out (row-permuted, row-padded to MIDP)     (MIDP, C_out), (1, C_out)
    o_ref  : (TM, C_out) f32
    x3_scr : (k, TM, MIDP) f32 VMEM scratch (cached conv3 output)
    w_scr  : (TM, k*MIDP)  f32 VMEM scratch (per-neighbor conv_w weights)
    """
    k, tm, c_in = xn_ref.shape
    midp = w3_ref.shape[1]
    bf16 = jnp.bfloat16

    # ---- point path: x1 = conv1(relu(x)) and its conv_w[1] contribution --------
    xr = jnp.maximum(x_ref[...], 0.0).astype(bf16)
    x1 = jnp.dot(xr, w1_ref[...], preferred_element_type=jnp.float32) + b1_ref[...]
    h = jnp.dot(jnp.maximum(x1, 0.0).astype(bf16), wa_ref[...],
                preferred_element_type=jnp.float32)                      # (TM, g)

    # ---- one batched pass over all k neighbors (xn already relu'd, bf16) -------
    xn2d = xn_ref[...].reshape(k * tm, c_in)      # leading-dim merge: layout-free
    x2 = jnp.dot(xn2d, w2_ref[...], preferred_element_type=jnp.float32) + b2_ref[...]
    x2 = jnp.maximum(x2, 0.0).astype(bf16).reshape(k, tm, -1)            # (k, TM, rel)
    x3_scr[...] = (jnp.dot(xn2d, w3_ref[...], preferred_element_type=jnp.float32)
                   + b3_ref[...]).reshape(k, tm, midp)                   # cache conv3

    # conv_w[1] contribution from x2: k tiny (TM,rel)@(rel,g) dots.  These are
    # negligible MXU time now that the big conv2 matmul is batched above; fusing
    # them further needs a k<->TM relayout that costs more than it saves.
    for j in range(k):
        h = h + jnp.dot(x2[j], wb_ref[j], preferred_element_type=jnp.float32)
    h = jnp.maximum(h, 0.0).astype(bf16)                                 # (TM, g)

    # conv_w[3] for all k neighbors in ONE matmul: (TM, g) @ (g, k*MIDP).
    w_scr[...] = (jnp.dot(h, ww2_ref[...], preferred_element_type=jnp.float32)
                  + bw2_ref[...])

    # Weighted sum over the k neighbors (per-neighbor slices are 128-lane aligned
    # since MIDP % 128 == 0); only `acc` stays live across the small loop.
    acc = jnp.zeros((tm, midp), jnp.float32)
    for j in range(k):
        acc = acc + w_scr[:, j * midp:(j + 1) * midp] * x3_scr[j]

    out_mid = jnp.maximum(acc, 0.0).astype(bf16)                         # activation_fn
    y = jnp.dot(out_mid, wo_ref[...], preferred_element_type=jnp.float32) + bo_ref[...]
    o_ref[...] = (y + x_ref[...]).astype(o_ref.dtype)   # residual: re-read, not held


# ----------------------------------------------------------------------------- repack
def _repack_params(params, share_planes, k):
    """Fold the module's cat/.view/.repeat channel shuffles into bf16 weights.

    Channel permutation: kernel mid-channel c' = gi*share + s corresponds to the
    original torch channel c = s*g + gi, so the torch `.repeat(1, share_planes, 1, 1)`
    (channel c uses group c % g) becomes a contiguous grouped layout (group c'//share).
    mid is lane-padded to MIDP (next multiple of 128) with zero weights/biases so the
    per-neighbor slices of the conv_w[3] output are 128-lane aligned.
    """
    w1, b1, w2, b2, w3, b3, ww1, ww2, bw2, wout, bout = params
    rel = w1.shape[0]
    mid = w3.shape[0]
    g = mid // share_planes
    c_out = wout.shape[0]
    midp = _round_up(mid, 128)
    bf16 = jnp.bfloat16

    W1, B1 = w1.T.astype(bf16), b1.reshape(1, rel).astype(jnp.float32)
    W2, B2 = w2.T.astype(bf16), b2.reshape(1, rel).astype(jnp.float32)

    # conv_w[1]: input channel rel + r*k + j comes from x2[:, r, j, :].
    Wa = ww1[:, :rel].T.astype(bf16)                                        # (rel, g)
    Wb = jnp.transpose(ww1[:, rel:].reshape(g, rel, k), (2, 1, 0)).astype(bf16)  # (k, rel, g)

    perm = (jnp.arange(share_planes)[None, :] * g
            + jnp.arange(g)[:, None]).reshape(-1)                           # (mid,)

    W3p = jnp.pad(w3.T[:, perm], ((0, 0), (0, midp - mid))).astype(bf16)    # (C_in, MIDP)
    B3p = jnp.pad(b3[perm], (0, midp - mid)).reshape(1, midp).astype(jnp.float32)

    # conv_w[3]: output channel co = gi*k + j; repack as per-neighbor (g, mid)
    # weights, expand over share_planes, lane-pad to MIDP and concatenate over k so
    # the kernel computes all per-neighbor weights in one (TM,g)@(g,k*MIDP) matmul.
    Ww2 = jnp.transpose(ww2.T.reshape(g, g, k), (2, 0, 1))                  # (k, g_in, g)
    Ww2e = jnp.repeat(Ww2, share_planes, axis=2)                            # (k, g_in, mid)
    Ww2e = jnp.pad(Ww2e, ((0, 0), (0, 0), (0, midp - mid)))                 # (k, g_in, MIDP)
    Ww2cat = jnp.transpose(Ww2e, (1, 0, 2)).reshape(g, k * midp).astype(bf16)
    Bw2 = jnp.transpose(bw2.reshape(g, k), (1, 0))                          # (k, g)
    Bw2e = jnp.pad(jnp.repeat(Bw2, share_planes, axis=1), ((0, 0), (0, midp - mid)))
    Bw2cat = Bw2e.reshape(1, k * midp).astype(jnp.float32)

    Wo = jnp.pad(wout.T[perm, :], ((0, midp - mid), (0, 0))).astype(bf16)   # (MIDP, C_out)
    Bo = bout.reshape(1, c_out).astype(jnp.float32)
    return (W1, B1, W2, B2, Wa, Wb, W3p, B3p, Ww2cat, Bw2cat, Wo, Bo)


# ----------------------------------------------------------------------------- wrapper
def sa_module_forward(x, idx, params, *, share_planes=8, k=16, tile_m=512):
    """x: (B, C_in, 1, N) f32; idx: (B, N, k) int32. Returns ((B, C_out, 1, N), idx).

    tile_m guidance: 512-1024 on v5e/v6e for production point counts; keep the grid
    at >=6 steps (>=3 per TensorCore) on v7x and per-tile VMEM under ~48 MiB.
    """
    B, C_in, one, N = x.shape
    assert one == 1 and idx.shape == (B, N, k)
    (W1, B1, W2, B2, Wa, Wb, W3p, B3p,
     Ww2cat, Bw2cat, Wo, Bo) = _repack_params(params, share_planes, k)
    rel = W1.shape[1]
    midp = W3p.shape[1]
    g = Wa.shape[1]
    C_out = Wo.shape[1]
    assert C_out == C_in, "residual connection needs out_planes == in_planes"

    M = B * N
    tile_m = max(8, (min(tile_m, M) // 8) * 8)
    grid = (pl.cdiv(M, tile_m),)

    # rows = points.  ReLU commutes with the kNN gather, so gather from relu(x) and
    # stream pre-activated bf16 neighbors (halves the dominant HBM stream and removes
    # 2*k in-kernel VPU passes).  The tiny idx tensor — not the big feature tensor —
    # is transposed so the gather emits the (k, M, C_in) layout directly.
    # TODO(synk): the kNN gather (get_edge_features) stays in XLA; an in-kernel
    # version would need per-row dynamic DMA gathers.
    x_bnc = jnp.transpose(x[:, :, 0, :], (0, 2, 1))                 # (B, N, C_in) f32
    ident = x_bnc.reshape(M, C_in)                                  # residual rows, f32
    xr_bnc = jnp.maximum(x_bnc, 0.0).astype(jnp.bfloat16)
    idx_kbn = jnp.transpose(idx, (2, 0, 1))                         # (k, B, N), tiny
    xn = xr_bnc[jnp.arange(B)[None, :, None], idx_kbn, :]           # (k, B, N, C_in)
    xn = xn.reshape(k, M, C_in)                                     # free reshape

    const2 = lambda i: (0, 0)
    const3 = lambda i: (0, 0, 0)
    # Weights never change across grid steps -> single-buffered residents.
    wspec2 = lambda s: pl.BlockSpec(s, const2, pipeline_mode=pl.Buffered(1))
    wspec3 = lambda s: pl.BlockSpec(s, const3, pipeline_mode=pl.Buffered(1))

    out2d = pl.pallas_call(
        _sa_kernel,
        out_shape=jax.ShapeDtypeStruct((M, C_out), jnp.float32),
        grid_spec=pltpu.PrefetchScalarGridSpec(
            num_scalar_prefetch=0,
            grid=grid,
            in_specs=[
                pl.BlockSpec((tile_m, C_in), lambda i: (i, 0)),        # x rows (f32)
                pl.BlockSpec((k, tile_m, C_in), lambda i: (0, i, 0)),  # kNN rows (bf16)
                wspec2((C_in, rel)),      # W1
                wspec2((1, rel)),         # b1
                wspec2((C_in, rel)),      # W2
                wspec2((1, rel)),         # b2
                wspec2((rel, g)),         # Wa
                wspec3((k, rel, g)),      # Wb
                wspec2((C_in, midp)),     # W3 (perm + pad)
                wspec2((1, midp)),        # b3 (perm + pad)
                wspec2((g, k * midp)),    # Ww2 (expanded + concat)
                wspec2((1, k * midp)),    # bw2 (expanded + concat)
                wspec2((midp, C_out)),    # W_out (perm rows + pad)
                wspec2((1, C_out)),       # b_out
            ],
            out_specs=pl.BlockSpec((tile_m, C_out), lambda i: (i, 0)),
            scratch_shapes=[
                pltpu.VMEM((k, tile_m, midp), jnp.float32),   # cached conv3 (x3)
                pltpu.VMEM((tile_m, k * midp), jnp.float32),  # per-neighbor weights
            ],
        ),
        compiler_params=pltpu.CompilerParams(
            dimension_semantics=("parallel",),
            vmem_limit_bytes=48 * 1024 * 1024,   # headroom below v7x's 64 MiB VMEM
        ),
    )(ident, xn, W1, B1, W2, B2, Wa, Wb, W3p, B3p, Ww2cat, Bw2cat, Wo, Bo)

    out = jnp.transpose(out2d.reshape(B, N, C_out), (0, 2, 1))[:, :, None, :]
    return out, idx


# ----------------------------------------------------------------------------- reference
def _conv1x1(z, w, b=None):
    out = jnp.einsum('oc,bchw->bohw', w, z, precision=jax.lax.Precision.HIGHEST)
    if b is not None:
        out = out + b[None, :, None, None]
    return out


def sa_module_reference(x, idx, params, *, share_planes=8, k=16):
    """Pure-JAX (f32) transcription of SA_module.forward (correctness check)."""
    w1, b1, w2, b2, w3, b3, ww1, ww2, bw2, wout, bout = params
    B, C, _, N = x.shape
    mid = w3.shape[0]
    g = mid // share_planes
    identity = x
    xr = jnp.maximum(x, 0.0)
    # get_edge_features: xn[b, :, j, n] = xr[b, :, 0, idx[b, n, j]]
    xr_bnc = jnp.transpose(xr[:, :, 0, :], (0, 2, 1))
    xn = jnp.transpose(xr_bnc[jnp.arange(B)[:, None, None], idx, :], (0, 3, 2, 1))
    x1 = _conv1x1(xr, w1, b1)                                  # (B, rel, 1, N)
    x2 = _conv1x1(xn, w2, b2)                                  # (B, rel, k, N)
    x3 = _conv1x1(xn, w3, b3)                                  # (B, mid, k, N)
    x2 = x2.reshape(B, -1, 1, N)
    h = jnp.maximum(jnp.concatenate([x1, x2], axis=1), 0.0)
    h = jnp.maximum(_conv1x1(h, ww1), 0.0)                     # (B, g, 1, N)
    wv = _conv1x1(h, ww2, bw2)                                 # (B, k*g, 1, N)
    w_ = jnp.tile(wv.reshape(B, g, k, N), (1, share_planes, 1, 1))   # torch .repeat
    out = jnp.sum(w_ * x3, axis=2, keepdims=True)
    out = jnp.maximum(out, 0.0)
    out = _conv1x1(out, wout, bout)
    return out + identity


# ----------------------------------------------------------------------------- init
def init_sa_params(key, in_planes, rel_planes, mid_planes, out_planes,
                   share_planes=8, k=16):
    """Params in PyTorch Conv2d(kernel=1) shapes: weight (C_out, C_in), bias (C_out,)."""
    g = mid_planes // share_planes
    keys = jax.random.split(key, 11)

    def u(kk, shape, fan_in):
        bound = fan_in ** -0.5
        return jax.random.uniform(kk, shape, jnp.float32, -bound, bound)

    w1 = u(keys[0], (rel_planes, in_planes), in_planes)
    b1 = u(keys[1], (rel_planes,), in_planes)
    w2 = u(keys[2], (rel_planes, in_planes), in_planes)
    b2 = u(keys[3], (rel_planes,), in_planes)
    w3 = u(keys[4], (mid_planes, in_planes), in_planes)
    b3 = u(keys[5], (mid_planes,), in_planes)
    ww1 = u(keys[6], (g, rel_planes * (k + 1)), rel_planes * (k + 1))  # bias=False
    ww2 = u(keys[7], (k * g, g), g)
    bw2 = u(keys[8], (k * g,), g)
    wout = u(keys[9], (out_planes, mid_planes), mid_planes)
    bout = u(keys[10], (out_planes,), mid_planes)
    return (w1, b1, w2, b2, w3, b3, ww1, ww2, bw2, wout, bout)


if __name__ == "__main__":
    key = jax.random.PRNGKey(0)
    kx, ki, kp = jax.random.split(key, 3)

    # Small but TPU-friendly shapes: 2 clouds x 256 points, 128 channels (lane-dense),
    # module defaults share_planes=8, k=16.
    B, N = 2, 256
    in_planes, rel_planes, mid_planes, out_planes = 128, 16, 64, 128
    share_planes, k = 8, 16

    x = jax.random.normal(kx, (B, in_planes, 1, N), jnp.float32)
    idx = jax.random.randint(ki, (B, N, k), 0, N, dtype=jnp.int32)
    params = init_sa_params(kp, in_planes, rel_planes, mid_planes, out_planes,
                            share_planes=share_planes, k=k)

    # tile_m=64 -> 8 grid steps over B*N=512 rows (>=3 per TensorCore on v7x so the
    # xn DMA pipelines behind compute); production point counts use the 512 default.
    out, _ = sa_module_forward(x, idx, params, share_planes=share_planes,
                               k=k, tile_m=64)
    out = jax.block_until_ready(out)

    ref = sa_module_reference(x, idx, params, share_planes=share_planes, k=k)
    assert out.shape == (B, out_planes, 1, N), out.shape
    max_err = float(jnp.max(jnp.abs(out - ref)))
    # bf16 MXU operands vs the f32 reference -> looser tolerance than a pure-f32 run;
    # structural/repacking errors would show up as O(0.3+) discrepancies.
    assert jnp.allclose(out, ref, atol=5e-2, rtol=5e-2), max_err

    print("KERNEL_OK")
</pallas_src>

<mosaic_0001>
module attributes {stable_mosaic.version = 11 : i64} {
  func.func @_sa_kernel(%arg0: i32, %arg1: memref<64x128xf32, #tpu.memory_space<vmem>>, %arg2: memref<16x64x128xbf16, #tpu.memory_space<vmem>>, %arg3: memref<128x16xbf16, #tpu.memory_space<vmem>>, %arg4: memref<1x16xf32, #tpu.memory_space<vmem>>, %arg5: memref<128x16xbf16, #tpu.memory_space<vmem>>, %arg6: memref<1x16xf32, #tpu.memory_space<vmem>>, %arg7: memref<16x8xbf16, #tpu.memory_space<vmem>>, %arg8: memref<16x16x8xbf16, #tpu.memory_space<vmem>>, %arg9: memref<128x128xbf16, #tpu.memory_space<vmem>>, %arg10: memref<1x128xf32, #tpu.memory_space<vmem>>, %arg11: memref<8x2048xbf16, #tpu.memory_space<vmem>>, %arg12: memref<1x2048xf32, #tpu.memory_space<vmem>>, %arg13: memref<128x128xbf16, #tpu.memory_space<vmem>>, %arg14: memref<1x128xf32, #tpu.memory_space<vmem>>, %arg15: memref<64x128xf32, #tpu.memory_space<vmem>>, %arg16: memref<16x64x128xf32, #tpu.memory_space<vmem>>, %arg17: memref<64x2048xf32, #tpu.memory_space<vmem>>) attributes {dimension_semantics = [#tpu.dimension_semantics<parallel>], iteration_bounds = array<i64: 8>, scalar_prefetch = 0 : i64, scratch_operands = 2 : i64, tpu.core_type = #tpu.core_type<tc>, window_params = [{transform_indices = @transform_0, window_bounds = array<i64: 64, 128>}, {transform_indices = @transform_1, window_bounds = array<i64: 16, 64, 128>}, {pipeline_mode = #tpu.pipeline_mode<synchronous>, transform_indices = @transform_2, window_bounds = array<i64: 128, 16>}, {pipeline_mode = #tpu.pipeline_mode<synchronous>, transform_indices = @transform_3, window_bounds = array<i64: 1, 16>}, {pipeline_mode = #tpu.pipeline_mode<synchronous>, transform_indices = @transform_4, window_bounds = array<i64: 128, 16>}, {pipeline_mode = #tpu.pipeline_mode<synchronous>, transform_indices = @transform_5, window_bounds = array<i64: 1, 16>}, {pipeline_mode = #tpu.pipeline_mode<synchronous>, transform_indices = @transform_6, window_bounds = array<i64: 16, 8>}, {pipeline_mode = #tpu.pipeline_mode<synchronous>, transform_indices = @transform_7, window_bounds = array<i64: 16, 16, 8>}, {pipeline_mode = #tpu.pipeline_mode<synchronous>, transform_indices = @transform_8, window_bounds = array<i64: 128, 128>}, {pipeline_mode = #tpu.pipeline_mode<synchronous>, transform_indices = @transform_9, window_bounds = array<i64: 1, 128>}, {pipeline_mode = #tpu.pipeline_mode<synchronous>, transform_indices = @transform_10, window_bounds = array<i64: 8, 2048>}, {pipeline_mode = #tpu.pipeline_mode<synchronous>, transform_indices = @transform_11, window_bounds = array<i64: 1, 2048>}, {pipeline_mode = #tpu.pipeline_mode<synchronous>, transform_indices = @transform_12, window_bounds = array<i64: 128, 128>}, {pipeline_mode = #tpu.pipeline_mode<synchronous>, transform_indices = @transform_13, window_bounds = array<i64: 1, 128>}, {transform_indices = @transform_14, window_bounds = array<i64: 64, 128>}]} {
    %c0 = arith.constant 0 : index
    %c0_0 = arith.constant 0 : index
    %0 = vector.load %arg1[%c0, %c0_0] : memref<64x128xf32, #tpu.memory_space<vmem>>, vector<64x128xf32>
    %cst = arith.constant 0.000000e+00 : f32
    %1 = vector.broadcast %cst : f32 to vector<64x128xf32>
    %2 = arith.maximumf %0, %1 : vector<64x128xf32>
    %3 = arith.truncf %2 : vector<64x128xf32> to vector<64x128xbf16>
    %c0_1 = arith.constant 0 : index
    %c0_2 = arith.constant 0 : index
    %4 = vector.load %arg3[%c0_1, %c0_2] : memref<128x16xbf16, #tpu.memory_space<vmem>>, vector<128x16xbf16>
    %cst_3 = arith.constant dense<0.000000e+00> : vector<64x16xf32>
    %5 = tpu.matmul %3, %4, %cst_3 {dimension_numbers = #tpu.dot_dimension_numbers<[1], [0], [0], [1], [0, 0, 1, 1], [], []>} : vector<64x128xbf16>, vector<128x16xbf16>, vector<64x16xf32> -> vector<64x16xf32>
    %c0_4 = arith.constant 0 : index
    %c0_5 = arith.constant 0 : index
    %6 = vector.load %arg4[%c0_4, %c0_5] : memref<1x16xf32, #tpu.memory_space<vmem>>, vector<1x16xf32>
    %7 = vector.broadcast %6 : vector<1x16xf32> to vector<64x16xf32>
    %8 = arith.addf %5, %7 : vector<64x16xf32>
    %cst_6 = arith.constant 0.000000e+00 : f32
    %9 = vector.broadcast %cst_6 : f32 to vector<64x16xf32>
    %10 = arith.maximumf %8, %9 : vector<64x16xf32>
    %11 = arith.truncf %10 : vector<64x16xf32> to vector<64x16xbf16>
    %c0_7 = arith.constant 0 : index
    %c0_8 = arith.constant 0 : index
    %12 = vector.load %arg7[%c0_7, %c0_8] : memref<16x8xbf16, #tpu.memory_space<vmem>>, vector<16x8xbf16>
    %cst_9 = arith.constant dense<0.000000e+00> : vector<64x8xf32>
    %13 = tpu.matmul %11, %12, %cst_9 {dimension_numbers = #tpu.dot_dimension_numbers<[1], [0], [0], [1], [0, 0, 1, 1], [], []>} : vector<64x16xbf16>, vector<16x8xbf16>, vector<64x8xf32> -> vector<64x8xf32>
    %c0_10 = arith.constant 0 : index
    %c0_11 = arith.constant 0 : index
    %c0_12 = arith.constant 0 : index
    %14 = vector.load %arg2[%c0_10, %c0_11, %c0_12] : memref<16x64x128xbf16, #tpu.memory_space<vmem>>, vector<16x64x128xbf16>
    %15 = vector.shape_cast %14 : vector<16x64x128xbf16> to vector<1024x128xbf16>
    %c0_13 = arith.constant 0 : index
    %c0_14 = arith.constant 0 : index
    %16 = vector.load %arg5[%c0_13, %c0_14] : memref<128x16xbf16, #tpu.memory_space<vmem>>, vector<128x16xbf16>
    %cst_15 = arith.constant dense<0.000000e+00> : vector<1024x16xf32>
    %17 = tpu.matmul %15, %16, %cst_15 {dimension_numbers = #tpu.dot_dimension_numbers<[1], [0], [0], [1], [0, 0, 1, 1], [], []>} : vector<1024x128xbf16>, vector<128x16xbf16>, vector<1024x16xf32> -> vector<1024x16xf32>
    %c0_16 = arith.constant 0 : index
    %c0_17 = arith.constant 0 : index
    %18 = vector.load %arg6[%c0_16, %c0_17] : memref<1x16xf32, #tpu.memory_space<vmem>>, vector<1x16xf32>
    %19 = vector.broadcast %18 : vector<1x16xf32> to vector<1024x16xf32>
    %20 = arith.addf %17, %19 : vector<1024x16xf32>
    %cst_18 = arith.constant 0.000000e+00 : f32
    %21 = vector.broadcast %cst_18 : f32 to vector<1024x16xf32>
    %22 = arith.maximumf %20, %21 : vector<1024x16xf32>
    %23 = arith.truncf %22 : vector<1024x16xf32> to vector<1024x16xbf16>
    %24 = vector.shape_cast %23 : vector<1024x16xbf16> to vector<16x64x16xbf16>
    %c0_19 = arith.constant 0 : index
    %c0_20 = arith.constant 0 : index
    %25 = vector.load %arg9[%c0_19, %c0_20] : memref<128x128xbf16, #tpu.memory_space<vmem>>, vector<128x128xbf16>
    %cst_21 = arith.constant dense<0.000000e+00> : vector<1024x128xf32>
    %26 = tpu.matmul %15, %25, %cst_21 {dimension_numbers = #tpu.dot_dimension_numbers<[1], [0], [0], [1], [0, 0, 1, 1], [], []>} : vector<1024x128xbf16>, vector<128x128xbf16>, vector<1024x128xf32> -> vector<1024x128xf32>
    %c0_22 = arith.constant 0 : index
    %c0_23 = arith.constant 0 : index
    %27 = vector.load %arg10[%c0_22, %c0_23] : memref<1x128xf32, #tpu.memory_space<vmem>>, vector<1x128xf32>
    %28 = vector.broadcast %27 : vector<1x128xf32> to vector<1024x128xf32>
    %29 = arith.addf %26, %28 : vector<1024x128xf32>
    %30 = vector.shape_cast %29 : vector<1024x128xf32> to vector<16x64x128xf32>
    %c0_24 = arith.constant 0 : index
    %c0_25 = arith.constant 0 : index
    %c0_26 = arith.constant 0 : index
    %31 = vector.load %arg16[%c0_24, %c0_25, %c0_26] : memref<16x64x128xf32, #tpu.memory_space<vmem>>, vector<16x64x128xf32>
    tpu.vector_store %arg16[%c0_24, %c0_25, %c0_26], %30 {strides = array<i32>} : memref<16x64x128xf32, #tpu.memory_space<vmem>>, vector<16x64x128xf32>,
    %32 = vector.extract_strided_slice %24 {offsets = [0, 0, 0], sizes = [1, 64, 16], strides = [1, 1, 1]} : vector<16x64x16xbf16> to vector<1x64x16xbf16>
    %33 = vector.shape_cast %32 : vector<1x64x16xbf16> to vector<64x16xbf16>
    %c0_27 = arith.constant 0 : index
    %c0_28 = arith.constant 0 : index
    %c0_29 = arith.constant 0 : index
    %34 = vector.load %arg8[%c0_27, %c0_28, %c0_29] : memref<16x16x8xbf16, #tpu.memory_space<vmem>>, vector<1x16x8xbf16>
    %35 = vector.shape_cast %34 : vector<1x16x8xbf16> to vector<16x8xbf16>
    %cst_30 = arith.constant dense<0.000000e+00> : vector<64x8xf32>
    %36 = tpu.matmul %33, %35, %cst_30 {dimension_numbers = #tpu.dot_dimension_numbers<[1], [0], [0], [1], [0, 0, 1, 1], [], []>} : vector<64x16xbf16>, vector<16x8xbf16>, vector<64x8xf32> -> vector<64x8xf32>
    %37 = arith.addf %13, %36 : vector<64x8xf32>
    %38 = vector.extract_strided_slice %24 {offsets = [1, 0, 0], sizes = [1, 64, 16], strides = [1, 1, 1]} : vector<16x64x16xbf16> to vector<1x64x16xbf16>
    %39 = vector.shape_cast %38 : vector<1x64x16xbf16> to vector<64x16xbf16>
    %c1 = arith.constant 1 : index
    %c0_31 = arith.constant 0 : index
    %c0_32 = arith.constant 0 : index
    %40 = vector.load %arg8[%c1, %c0_31, %c0_32] : memref<16x16x8xbf16, #tpu.memory_space<vmem>>, vector<1x16x8xbf16>
    %41 = vector.shape_cast %40 : vector<1x16x8xbf16> to vector<16x8xbf16>
    %cst_33 = arith.constant dense<0.000000e+00> : vector<64x8xf32>
    %42 = tpu.matmul %39, %41, %cst_33 {dimension_numbers = #tpu.dot_dimension_numbers<[1], [0], [0], [1], [0, 0, 1, 1], [], []>} : vector<64x16xbf16>, vector<16x8xbf16>, vector<64x8xf32> -> vector<64x8xf32>
    %43 = arith.addf %37, %42 : vector<64x8xf32>
    %44 = vector.extract_strided_slice %24 {offsets = [2, 0, 0], sizes = [1, 64, 16], strides = [1, 1, 1]} : vector<16x64x16xbf16> to vector<1x64x16xbf16>
    %45 = vector.shape_cast %44 : vector<1x64x16xbf16> to vector<64x16xbf16>
    %c2 = arith.constant 2 : index
    %c0_34 = arith.constant 0 : index
    %c0_35 = arith.constant 0 : index
    %46 = vector.load %arg8[%c2, %c0_34, %c0_35] : memref<16x16x8xbf16, #tpu.memory_space<vmem>>, vector<1x16x8xbf16>
    %47 = vector.shape_cast %46 : vector<1x16x8xbf16> to vector<16x8xbf16>
    %cst_36 = arith.constant dense<0.000000e+00> : vector<64x8xf32>
    %48 = tpu.matmul %45, %47, %cst_36 {dimension_numbers = #tpu.dot_dimension_numbers<[1], [0], [0], [1], [0, 0, 1, 1], [], []>} : vector<64x16xbf16>, vector<16x8xbf16>, vector<64x8xf32> -> vector<64x8xf32>
    %49 = arith.addf %43, %48 : vector<64x8xf32>
    %50 = vector.extract_strided_slice %24 {offsets = [3, 0, 0], sizes = [1, 64, 16], strides = [1, 1, 1]} : vector<16x64x16xbf16> to vector<1x64x16xbf16>
    %51 = vector.shape_cast %50 : vector<1x64x16xbf16> to vector<64x16xbf16>
    %c3 = arith.constant 3 : index
    %c0_37 = arith.constant 0 : index
    %c0_38 = arith.constant 0 : index
    %52 = vector.load %arg8[%c3, %c0_37, %c0_38] : memref<16x16x8xbf16, #tpu.memory_space<vmem>>, vector<1x16x8xbf16>
    %53 = vector.shape_cast %52 : vector<1x16x8xbf16> to vector<16x8xbf16>
    %cst_39 = arith.constant dense<0.000000e+00> : vector<64x8xf32>
    %54 = tpu.matmul %51, %53, %cst_39 {dimension_numbers = #tpu.dot_dimension_numbers<[1], [0], [0], [1], [0, 0, 1, 1], [], []>} : vector<64x16xbf16>, vector<16x8xbf16>, vector<64x8xf32> -> vector<64x8xf32>
    %55 = arith.addf %49, %54 : vector<64x8xf32>
    %56 = vector.extract_strided_slice %24 {offsets = [4, 0, 0], sizes = [1, 64, 16], strides = [1, 1, 1]} : vector<16x64x16xbf16> to vector<1x64x16xbf16>
    %57 = vector.shape_cast %56 : vector<1x64x16xbf16> to vector<64x16xbf16>
    %c4 = arith.constant 4 : index
    %c0_40 = arith.constant 0 : index
    %c0_41 = arith.constant 0 : index
    %58 = vector.load %arg8[%c4, %c0_40, %c0_41] : memref<16x16x8xbf16, #tpu.memory_space<vmem>>, vector<1x16x8xbf16>
    %59 = vector.shape_cast %58 : vector<1x16x8xbf16> to vector<16x8xbf16>
    %cst_42 = arith.constant dense<0.000000e+00> : vector<64x8xf32>
    %60 = tpu.matmul %57, %59, %cst_42 {dimension_numbers = #tpu.dot_dimension_numbers<[1], [0], [0], [1], [0, 0, 1, 1], [], []>} : vector<64x16xbf16>, vector<16x8xbf16>, vector<64x8xf32> -> vector<64x8xf32>
    %61 = arith.addf %55, %60 : vector<64x8xf32>
    %62 = vector.extract_strided_slice %24 {offsets = [5, 0, 0], sizes = [1, 64, 16], strides = [1, 1, 1]} : vector<16x64x16xbf16> to vector<1x64x16xbf16>
    %63 = vector.shape_cast %62 : vector<1x64x16xbf16> to vector<64x16xbf16>
    %c5 = arith.constant 5 : index
    %c0_43 = arith.constant 0 : index
    %c0_44 = arith.constant 0 : index
    %64 = vector.load %arg8[%c5, %c0_43, %c0_44] : memref<16x16x8xbf16, #tpu.memory_space<vmem>>, vector<1x16x8xbf16>
    %65 = vector.shape_cast %64 : vector<1x16x8xbf16> to vector<16x8xbf16>
    %cst_45 = arith.constant dense<0.000000e+00> : vector<64x8xf32>
    %66 = tpu.matmul %63, %65, %cst_45 {dimension_numbers = #tpu.dot_dimension_numbers<[1], [0], [0], [1], [0, 0, 1, 1], [], []>} : vector<64x16xbf16>, vector<16x8xbf16>, vector<64x8xf32> -> vector<64x8xf32>
    %67 = arith.addf %61, %66 : vector<64x8xf32>
    %68 = vector.extract_strided_slice %24 {offsets = [6, 0, 0], sizes = [1, 64, 16], strides = [1, 1, 1]} : vector<16x64x16xbf16> to vector<1x64x16xbf16>
    %69 = vector.shape_cast %68 : vector<1x64x16xbf16> to vector<64x16xbf16>
    %c6 = arith.constant 6 : index
    %c0_46 = arith.constant 0 : index
    %c0_47 = arith.constant 0 : index
    %70 = vector.load %arg8[%c6, %c0_46, %c0_47] : memref<16x16x8xbf16, #tpu.memory_space<vmem>>, vector<1x16x8xbf16>
    %71 = vector.shape_cast %70 : vector<1x16x8xbf16> to vector<16x8xbf16>
    %cst_48 = arith.constant dense<0.000000e+00> : vector<64x8xf32>
    %72 = tpu.matmul %69, %71, %cst_48 {dimension_numbers = #tpu.dot_dimension_numbers<[1], [0], [0], [1], [0, 0, 1, 1], [], []>} : vector<64x16xbf16>, vector<16x8xbf16>, vector<64x8xf32> -> vector<64x8xf32>
    %73 = arith.addf %67, %72 : vector<64x8xf32>
    %74 = vector.extract_strided_slice %24 {offsets = [7, 0, 0], sizes = [1, 64, 16], strides = [1, 1, 1]} : vector<16x64x16xbf16> to vector<1x64x16xbf16>
    %75 = vector.shape_cast %74 : vector<1x64x16xbf16> to vector<64x16xbf16>
    %c7 = arith.constant 7 : index
    %c0_49 = arith.constant 0 : index
    %c0_50 = arith.constant 0 : index
    %76 = vector.load %arg8[%c7, %c0_49, %c0_50] : memref<16x16x8xbf16, #tpu.memory_space<vmem>>, vector<1x16x8xbf16>
    %77 = vector.shape_cast %76 : vector<1x16x8xbf16> to vector<16x8xbf16>
    %cst_51 = arith.constant dense<0.000000e+00> : vector<64x8xf32>
    %78 = tpu.matmul %75, %77, %cst_51 {dimension_numbers = #tpu.dot_dimension_numbers<[1], [0], [0], [1], [0, 0, 1, 1], [], []>} : vector<64x16xbf16>, vector<16x8xbf16>, vector<64x8xf32> -> vector<64x8xf32>
    %79 = arith.addf %73, %78 : vector<64x8xf32>
    %80 = vector.extract_strided_slice %24 {offsets = [8, 0, 0], sizes = [1, 64, 16], strides = [1, 1, 1]} : vector<16x64x16xbf16> to vector<1x64x16xbf16>
    %81 = vector.shape_cast %80 : vector<1x64x16xbf16> to vector<64x16xbf16>
    %c8 = arith.constant 8 : index
    %c0_52 = arith.constant 0 : index
    %c0_53 = arith.constant 0 : index
    %82 = vector.load %arg8[%c8, %c0_52, %c0_53] : memref<16x16x8xbf16, #tpu.memory_space<vmem>>, vector<1x16x8xbf16>
    %83 = vector.shape_cast %82 : vector<1x16x8xbf16> to vector<16x8xbf16>
    %cst_54 = arith.constant dense<0.000000e+00> : vector<64x8xf32>
    %84 = tpu.matmul %81, %83, %cst_54 {dimension_numbers = #tpu.dot_dimension_numbers<[1], [0], [0], [1], [0, 0, 1, 1], [], []>} : vector<64x16xbf16>, vector<16x8xbf16>, vector<64x8xf32> -> vector<64x8xf32>
    %85 = arith.addf %79, %84 : vector<64x8xf32>
    %86 = vector.extract_strided_slice %24 {offsets = [9, 0, 0], sizes = [1, 64, 16], strides = [1, 1, 1]} : vector<16x64x16xbf16> to vector<1x64x16xbf16>
    %87 = vector.shape_cast %86 : vector<1x64x16xbf16> to vector<64x16xbf16>
    %c9 = arith.constant 9 : index
    %c0_55 = arith.constant 0 : index
    %c0_56 = arith.constant 0 : index
    %88 = vector.load %arg8[%c9, %c0_55, %c0_56] : memref<16x16x8xbf16, #tpu.memory_space<vmem>>, vector<1x16x8xbf16>
    %89 = vector.shape_cast %88 : vector<1x16x8xbf16> to vector<16x8xbf16>
    %cst_57 = arith.constant dense<0.000000e+00> : vector<64x8xf32>
    %90 = tpu.matmul %87, %89, %cst_57 {dimension_numbers = #tpu.dot_dimension_numbers<[1], [0], [0], [1], [0, 0, 1, 1], [], []>} : vector<64x16xbf16>, vector<16x8xbf16>, vector<64x8xf32> -> vector<64x8xf32>
    %91 = arith.addf %85, %90 : vector<64x8xf32>
    %92 = vector.extract_strided_slice %24 {offsets = [10, 0, 0], sizes = [1, 64, 16], strides = [1, 1, 1]} : vector<16x64x16xbf16> to vector<1x64x16xbf16>
    %93 = vector.shape_cast %92 : vector<1x64x16xbf16> to vector<64x16xbf16>
    %c10 = arith.constant 10 : index
    %c0_58 = arith.constant 0 : index
    %c0_59 = arith.constant 0 : index
    %94 = vector.load %arg8[%c10, %c0_58, %c0_59] : memref<16x16x8xbf16, #tpu.memory_space<vmem>>, vector<1x16x8xbf16>
    %95 = vector.shape_cast %94 : vector<1x16x8xbf16> to vector<16x8xbf16>
    %cst_60 = arith.constant dense<0.000000e+00> : vector<64x8xf32>
    %96 = tpu.matmul %93, %95, %cst_60 {dimension_numbers = #tpu.dot_dimension_numbers<[1], [0], [0], [1], [0, 0, 1, 1], [], []>} : vector<64x16xbf16>, vector<16x8xbf16>, vector<64x8xf32> -> vector<64x8xf32>
    %97 = arith.addf %91, %96 : vector<64x8xf32>
    %98 = vector.extract_strided_slice %24 {offsets = [11, 0, 0], sizes = [1, 64, 16], strides = [1, 1, 1]} : vector<16x64x16xbf16> to vector<1x64x16xbf16>
    %99 = vector.shape_cast %98 : vector<1x64x16xbf16> to vector<64x16xbf16>
    %c11 = arith.constant 11 : index
    %c0_61 = arith.constant 0 : index
    %c0_62 = arith.constant 0 : index
    %100 = vector.load %arg8[%c11, %c0_61, %c0_62] : memref<16x16x8xbf16, #tpu.memory_space<vmem>>, vector<1x16x8xbf16>
    %101 = vector.shape_cast %100 : vector<1x16x8xbf16> to vector<16x8xbf16>
    %cst_63 = arith.constant dense<0.000000e+00> : vector<64x8xf32>
    %102 = tpu.matmul %99, %101, %cst_63 {dimension_numbers = #tpu.dot_dimension_numbers<[1], [0], [0], [1], [0, 0, 1, 1], [], []>} : vector<64x16xbf16>, vector<16x8xbf16>, vector<64x8xf32> -> vector<64x8xf32>
    %103 = arith.addf %97, %102 : vector<64x8xf32>
    %104 = vector.extract_strided_slice %24 {offsets = [12, 0, 0], sizes = [1, 64, 16], strides = [1, 1, 1]} : vector<16x64x16xbf16> to vector<1x64x16xbf16>
    %105 = vector.shape_cast %104 : vector<1x64x16xbf16> to vector<64x16xbf16>
    %c12 = arith.constant 12 : index
    %c0_64 = arith.constant 0 : index
    %c0_65 = arith.constant 0 : index
    %106 = vector.load %arg8[%c12, %c0_64, %c0_65] : memref<16x16x8xbf16, #tpu.memory_space<vmem>>, vector<1x16x8xbf16>
    %107 = vector.shape_cast %106 : vector<1x16x8xbf16> to vector<16x8xbf16>
    %cst_66 = arith.constant dense<0.000000e+00> : vector<64x8xf32>
    %108 = tpu.matmul %105, %107, %cst_66 {dimension_numbers = #tpu.dot_dimension_numbers<[1], [0], [0], [1], [0, 0, 1, 1], [], []>} : vector<64x16xbf16>, vector<16x8xbf16>, vector<64x8xf32> -> vector<64x8xf32>
    %109 = arith.addf %103, %108 : vector<64x8xf32>
    %110 = vector.extract_strided_slice %24 {offsets = [13, 0, 0], sizes = [1, 64, 16], strides = [1, 1, 1]} : vector<16x64x16xbf16> to vector<1x64x16xbf16>
    %111 = vector.shape_cast %110 : vector<1x64x16xbf16> to vector<64x16xbf16>
    %c13 = arith.constant 13 : index
    %c0_67 = arith.constant 0 : index
    %c0_68 = arith.constant 0 : index
    %112 = vector.load %arg8[%c13, %c0_67, %c0_68] : memref<16x16x8xbf16, #tpu.memory_space<vmem>>, vector<1x16x8xbf16>
    %113 = vector.shape_cast %112 : vector<1x16x8xbf16> to vector<16x8xbf16>
    %cst_69 = arith.constant dense<0.000000e+00> : vector<64x8xf32>
    %114 = tpu.matmul %111, %113, %cst_69 {dimension_numbers = #tpu.dot_dimension_numbers<[1], [0], [0], [1], [0, 0, 1, 1], [], []>} : vector<64x16xbf16>, vector<16x8xbf16>, vector<64x8xf32> -> vector<64x8xf32>
    %115 = arith.addf %109, %114 : vector<64x8xf32>
    %116 = vector.extract_strided_slice %24 {offsets = [14, 0, 0], sizes = [1, 64, 16], strides = [1, 1, 1]} : vector<16x64x16xbf16> to vector<1x64x16xbf16>
    %117 = vector.shape_cast %116 : vector<1x64x16xbf16> to vector<64x16xbf16>
    %c14 = arith.constant 14 : index
    %c0_70 = arith.constant 0 : index
    %c0_71 = arith.constant 0 : index
    %118 = vector.load %arg8[%c14, %c0_70, %c0_71] : memref<16x16x8xbf16, #tpu.memory_space<vmem>>, vector<1x16x8xbf16>
    %119 = vector.shape_cast %118 : vector<1x16x8xbf16> to vector<16x8xbf16>
    %cst_72 = arith.constant dense<0.000000e+00> : vector<64x8xf32>
    %120 = tpu.matmul %117, %119, %cst_72 {dimension_numbers = #tpu.dot_dimension_numbers<[1], [0], [0], [1], [0, 0, 1, 1], [], []>} : vector<64x16xbf16>, vector<16x8xbf16>, vector<64x8xf32> -> vector<64x8xf32>
    %121 = arith.addf %115, %120 : vector<64x8xf32>
    %122 = vector.extract_strided_slice %24 {offsets = [15, 0, 0], sizes = [1, 64, 16], strides = [1, 1, 1]} : vector<16x64x16xbf16> to vector<1x64x16xbf16>
    %123 = vector.shape_cast %122 : vector<1x64x16xbf16> to vector<64x16xbf16>
    %c15 = arith.constant 15 : index
    %c0_73 = arith.constant 0 : index
    %c0_74 = arith.constant 0 : index
    %124 = vector.load %arg8[%c15, %c0_73, %c0_74] : memref<16x16x8xbf16, #tpu.memory_space<vmem>>, vector<1x16x8xbf16>
    %125 = vector.shape_cast %124 : vector<1x16x8xbf16> to vector<16x8xbf16>
    %cst_75 = arith.constant dense<0.000000e+00> : vector<64x8xf32>
    %126 = tpu.matmul %123, %125, %cst_75 {dimension_numbers = #tpu.dot_dimension_numbers<[1], [0], [0], [1], [0, 0, 1, 1], [], []>} : vector<64x16xbf16>, vector<16x8xbf16>, vector<64x8xf32> -> vector<64x8xf32>
    %127 = arith.addf %121, %126 : vector<64x8xf32>
    %cst_76 = arith.constant 0.000000e+00 : f32
    %128 = vector.broadcast %cst_76 : f32 to vector<64x8xf32>
    %129 = arith.maximumf %127, %128 : vector<64x8xf32>
    %130 = arith.truncf %129 : vector<64x8xf32> to vector<64x8xbf16>
    %c0_77 = arith.constant 0 : index
    %c0_78 = arith.constant 0 : index
    %131 = vector.load %arg11[%c0_77, %c0_78] : memref<8x2048xbf16, #tpu.memory_space<vmem>>, vector<8x2048xbf16>
    %cst_79 = arith.constant dense<0.000000e+00> : vector<64x2048xf32>
    %132 = tpu.matmul %130, %131, %cst_79 {dimension_numbers = #tpu.dot_dimension_numbers<[1], [0], [0], [1], [0, 0, 1, 1], [], []>} : vector<64x8xbf16>, vector<8x2048xbf16>, vector<64x2048xf32> -> vector<64x2048xf32>
    %c0_80 = arith.constant 0 : index
    %c0_81 = arith.constant 0 : index
    %133 = vector.load %arg12[%c0_80, %c0_81] : memref<1x2048xf32, #tpu.memory_space<vmem>>, vector<1x2048xf32>
    %134 = vector.broadcast %133 : vector<1x2048xf32> to vector<64x2048xf32>
    %135 = arith.addf %132, %134 : vector<64x2048xf32>
    %c0_82 = arith.constant 0 : index
    %c0_83 = arith.constant 0 : index
    %136 = vector.load %arg17[%c0_82, %c0_83] : memref<64x2048xf32, #tpu.memory_space<vmem>>, vector<64x2048xf32>
    tpu.vector_store %arg17[%c0_82, %c0_83], %135 {strides = array<i32>} : memref<64x2048xf32, #tpu.memory_space<vmem>>, vector<64x2048xf32>,
    %cst_84 = arith.constant 0.000000e+00 : f32
    %137 = vector.broadcast %cst_84 : f32 to vector<64x128xf32>
    %c0_85 = arith.constant 0 : index
    %c0_86 = arith.constant 0 : index
    %138 = vector.load %arg17[%c0_85, %c0_86] : memref<64x2048xf32, #tpu.memory_space<vmem>>, vector<64x128xf32>
    %c0_87 = arith.constant 0 : index
    %c0_88 = arith.constant 0 : index
    %c0_89 = arith.constant 0 : index
    %139 = vector.load %arg16[%c0_87, %c0_88, %c0_89] : memref<16x64x128xf32, #tpu.memory_space<vmem>>, vector<1x64x128xf32>
    %140 = vector.shape_cast %139 : vector<1x64x128xf32> to vector<64x128xf32>
    %141 = arith.mulf %138, %140 : vector<64x128xf32>
    %142 = arith.addf %137, %141 : vector<64x128xf32>
    %c0_90 = arith.constant 0 : index
    %c128 = arith.constant 128 : index
    %143 = vector.load %arg17[%c0_90, %c128] : memref<64x2048xf32, #tpu.memory_space<vmem>>, vector<64x128xf32>
    %c1_91 = arith.constant 1 : index
    %c0_92 = arith.constant 0 : index
    %c0_93 = arith.constant 0 : index
    %144 = vector.load %arg16[%c1_91, %c0_92, %c0_93] : memref<16x64x128xf32, #tpu.memory_space<vmem>>, vector<1x64x128xf32>
    %145 = vector.shape_cast %144 : vector<1x64x128xf32> to vector<64x128xf32>
    %146 = arith.mulf %143, %145 : vector<64x128xf32>
    %147 = arith.addf %142, %146 : vector<64x128xf32>
    %c0_94 = arith.constant 0 : index
    %c256 = arith.constant 256 : index
    %148 = vector.load %arg17[%c0_94, %c256] : memref<64x2048xf32, #tpu.memory_space<vmem>>, vector<64x128xf32>
    %c2_95 = arith.constant 2 : index
    %c0_96 = arith.constant 0 : index
    %c0_97 = arith.constant 0 : index
    %149 = vector.load %arg16[%c2_95, %c0_96, %c0_97] : memref<16x64x128xf32, #tpu.memory_space<vmem>>, vector<1x64x128xf32>
    %150 = vector.shape_cast %149 : vector<1x64x128xf32> to vector<64x128xf32>
    %151 = arith.mulf %148, %150 : vector<64x128xf32>
    %152 = arith.addf %147, %151 : vector<64x128xf32>
    %c0_98 = arith.constant 0 : index
    %c384 = arith.constant 384 : index
    %153 = vector.load %arg17[%c0_98, %c384] : memref<64x2048xf32, #tpu.memory_space<vmem>>, vector<64x128xf32>
    %c3_99 = arith.constant 3 : index
    %c0_100 = arith.constant 0 : index
    %c0_101 = arith.constant 0 : index
    %154 = vector.load %arg16[%c3_99, %c0_100, %c0_101] : memref<16x64x128xf32, #tpu.memory_space<vmem>>, vector<1x64x128xf32>
    %155 = vector.shape_cast %154 : vector<1x64x128xf32> to vector<64x128xf32>
    %156 = arith.mulf %153, %155 : vector<64x128xf32>
    %157 = arith.addf %152, %156 : vector<64x128xf32>
    %c0_102 = arith.constant 0 : index
    %c512 = arith.constant 512 : index
    %158 = vector.load %arg17[%c0_102, %c512] : memref<64x2048xf32, #tpu.memory_space<vmem>>, vector<64x128xf32>
    %c4_103 = arith.constant 4 : index
    %c0_104 = arith.constant 0 : index
    %c0_105 = arith.constant 0 : index
    %159 = vector.load %arg16[%c4_103, %c0_104, %c0_105] : memref<16x64x128xf32, #tpu.memory_space<vmem>>, vector<1x64x128xf32>
    %160 = vector.shape_cast %159 : vector<1x64x128xf32> to vector<64x128xf32>
    %161 = arith.mulf %158, %160 : vector<64x128xf32>
    %162 = arith.addf %157, %161 : vector<64x128xf32>
    %c0_106 = arith.constant 0 : index
    %c640 = arith.constant 640 : index
    %163 = vector.load %arg17[%c0_106, %c640] : memref<64x2048xf32, #tpu.memory_space<vmem>>, vector<64x128xf32>
    %c5_107 = arith.constant 5 : index
    %c0_108 = arith.constant 0 : index
    %c0_109 = arith.constant 0 : index
    %164 = vector.load %arg16[%c5_107, %c0_108, %c0_109] : memref<16x64x128xf32, #tpu.memory_space<vmem>>, vector<1x64x128xf32>
    %165 = vector.shape_cast %164 : vector<1x64x128xf32> to vector<64x128xf32>
    %166 = arith.mulf %163, %165 : vector<64x128xf32>
    %167 = arith.addf %162, %166 : vector<64x128xf32>
    %c0_110 = arith.constant 0 : index
    %c768 = arith.constant 768 : index
    %168 = vector.load %arg17[%c0_110, %c768] : memref<64x2048xf32, #tpu.memory_space<vmem>>, vector<64x128xf32>
    %c6_111 = arith.constant 6 : index
    %c0_112 = arith.constant 0 : index
    %c0_113 = arith.constant 0 : index
    %169 = vector.load %arg16[%c6_111, %c0_112, %c0_113] : memref<16x64x128xf32, #tpu.memory_space<vmem>>, vector<1x64x128xf32>
    %170 = vector.shape_cast %169 : vector<1x64x128xf32> to vector<64x128xf32>
    %171 = arith.mulf %168, %170 : vector<64x128xf32>
    %172 = arith.addf %167, %171 : vector<64x128xf32>
    %c0_114 = arith.constant 0 : index
    %c896 = arith.constant 896 : index
    %173 = vector.load %arg17[%c0_114, %c896] : memref<64x2048xf32, #tpu.memory_space<vmem>>, vector<64x128xf32>
    %c7_115 = arith.constant 7 : index
    %c0_116 = arith.constant 0 : index
    %c0_117 = arith.constant 0 : index
    %174 = vector.load %arg16[%c7_115, %c0_116, %c0_117] : memref<16x64x128xf32, #tpu.memory_space<vmem>>, vector<1x64x128xf32>
    %175 = vector.shape_cast %174 : vector<1x64x128xf32> to vector<64x128xf32>
    %176 = arith.mulf %173, %175 : vector<64x128xf32>
    %177 = arith.addf %172, %176 : vector<64x128xf32>
    %c0_118 = arith.constant 0 : index
    %c1024 = arith.constant 1024 : index
    %178 = vector.load %arg17[%c0_118, %c1024] : memref<64x2048xf32, #tpu.memory_space<vmem>>, vector<64x128xf32>
    %c8_119 = arith.constant 8 : index
    %c0_120 = arith.constant 0 : index
    %c0_121 = arith.constant 0 : index
    %179 = vector.load %arg16[%c8_119, %c0_120, %c0_121] : memref<16x64x128xf32, #tpu.memory_space<vmem>>, vector<1x64x128xf32>
    %180 = vector.shape_cast %179 : vector<1x64x128xf32> to vector<64x128xf32>
    %181 = arith.mulf %178, %180 : vector<64x128xf32>
    %182 = arith.addf %177, %181 : vector<64x128xf32>
    %c0_122 = arith.constant 0 : index
    %c1152 = arith.constant 1152 : index
    %183 = vector.load %arg17[%c0_122, %c1152] : memref<64x2048xf32, #tpu.memory_space<vmem>>, vector<64x128xf32>
    %c9_123 = arith.constant 9 : index
    %c0_124 = arith.constant 0 : index
    %c0_125 = arith.constant 0 : index
    %184 = vector.load %arg16[%c9_123, %c0_124, %c0_125] : memref<16x64x128xf32, #tpu.memory_space<vmem>>, vector<1x64x128xf32>
    %185 = vector.shape_cast %184 : vector<1x64x128xf32> to vector<64x128xf32>
    %186 = arith.mulf %183, %185 : vector<64x128xf32>
    %187 = arith.addf %182, %186 : vector<64x128xf32>
    %c0_126 = arith.constant 0 : index
    %c1280 = arith.constant 1280 : index
    %188 = vector.load %arg17[%c0_126, %c1280] : memref<64x2048xf32, #tpu.memory_space<vmem>>, vector<64x128xf32>
    %c10_127 = arith.constant 10 : index
    %c0_128 = arith.constant 0 : index
    %c0_129 = arith.constant 0 : index
    %189 = vector.load %arg16[%c10_127, %c0_128, %c0_129] : memref<16x64x128xf32, #tpu.memory_space<vmem>>, vector<1x64x128xf32>
    %190 = vector.shape_cast %189 : vector<1x64x128xf32> to vector<64x128xf32>
    %191 = arith.mulf %188, %190 : vector<64x128xf32>
    %192 = arith.addf %187, %191 : vector<64x128xf32>
    %c0_130 = arith.constant 0 : index
    %c1408 = arith.constant 1408 : index
    %193 = vector.load %arg17[%c0_130, %c1408] : memref<64x2048xf32, #tpu.memory_space<vmem>>, vector<64x128xf32>
    %c11_131 = arith.constant 11 : index
    %c0_132 = arith.constant 0 : index
    %c0_133 = arith.constant 0 : index
    %194 = vector.load %arg16[%c11_131, %c0_132, %c0_133] : memref<16x64x128xf32, #tpu.memory_space<vmem>>, vector<1x64x128xf32>
    %195 = vector.shape_cast %194 : vector<1x64x128xf32> to vector<64x128xf32>
    %196 = arith.mulf %193, %195 : vector<64x128xf32>
    %197 = arith.addf %192, %196 : vector<64x128xf32>
    %c0_134 = arith.constant 0 : index
    %c1536 = arith.constant 1536 : index
    %198 = vector.load %arg17[%c0_134, %c1536] : memref<64x2048xf32, #tpu.memory_space<vmem>>, vector<64x128xf32>
    %c12_135 = arith.constant 12 : index
    %c0_136 = arith.constant 0 : index
    %c0_137 = arith.constant 0 : index
    %199 = vector.load %arg16[%c12_135, %c0_136, %c0_137] : memref<16x64x128xf32, #tpu.memory_space<vmem>>, vector<1x64x128xf32>
    %200 = vector.shape_cast %199 : vector<1x64x128xf32> to vector<64x128xf32>
    %201 = arith.mulf %198, %200 : vector<64x128xf32>
    %202 = arith.addf %197, %201 : vector<64x128xf32>
    %c0_138 = arith.constant 0 : index
    %c1664 = arith.constant 1664 : index
    %203 = vector.load %arg17[%c0_138, %c1664] : memref<64x2048xf32, #tpu.memory_space<vmem>>, vector<64x128xf32>
    %c13_139 = arith.constant 13 : index
    %c0_140 = arith.constant 0 : index
    %c0_141 = arith.constant 0 : index
    %204 = vector.load %arg16[%c13_139, %c0_140, %c0_141] : memref<16x64x128xf32, #tpu.memory_space<vmem>>, vector<1x64x128xf32>
    %205 = vector.shape_cast %204 : vector<1x64x128xf32> to vector<64x128xf32>
    %206 = arith.mulf %203, %205 : vector<64x128xf32>
    %207 = arith.addf %202, %206 : vector<64x128xf32>
    %c0_142 = arith.constant 0 : index
    %c1792 = arith.constant 1792 : index
    %208 = vector.load %arg17[%c0_142, %c1792] : memref<64x2048xf32, #tpu.memory_space<vmem>>, vector<64x128xf32>
    %c14_143 = arith.constant 14 : index
    %c0_144 = arith.constant 0 : index
    %c0_145 = arith.constant 0 : index
    %209 = vector.load %arg16[%c14_143, %c0_144, %c0_145] : memref<16x64x128xf32, #tpu.memory_space<vmem>>, vector<1x64x128xf32>
    %210 = vector.shape_cast %209 : vector<1x64x128xf32> to vector<64x128xf32>
    %211 = arith.mulf %208, %210 : vector<64x128xf32>
    %212 = arith.addf %207, %211 : vector<64x128xf32>
    %c0_146 = arith.constant 0 : index
    %c1920 = arith.constant 1920 : index
    %213 = vector.load %arg17[%c0_146, %c1920] : memref<64x2048xf32, #tpu.memory_space<vmem>>, vector<64x128xf32>
    %c15_147 = arith.constant 15 : index
    %c0_148 = arith.constant 0 : index
    %c0_149 = arith.constant 0 : index
    %214 = vector.load %arg16[%c15_147, %c0_148, %c0_149] : memref<16x64x128xf32, #tpu.memory_space<vmem>>, vector<1x64x128xf32>
    %215 = vector.shape_cast %214 : vector<1x64x128xf32> to vector<64x128xf32>
    %216 = arith.mulf %213, %215 : vector<64x128xf32>
    %217 = arith.addf %212, %216 : vector<64x128xf32>
    %cst_150 = arith.constant 0.000000e+00 : f32
    %218 = vector.broadcast %cst_150 : f32 to vector<64x128xf32>
    %219 = arith.maximumf %217, %218 : vector<64x128xf32>
    %220 = arith.truncf %219 : vector<64x128xf32> to vector<64x128xbf16>
    %c0_151 = arith.constant 0 : index
    %c0_152 = arith.constant 0 : index
    %221 = vector.load %arg13[%c0_151, %c0_152] : memref<128x128xbf16, #tpu.memory_space<vmem>>, vector<128x128xbf16>
    %cst_153 = arith.constant dense<0.000000e+00> : vector<64x128xf32>
    %222 = tpu.matmul %220, %221, %cst_153 {dimension_numbers = #tpu.dot_dimension_numbers<[1], [0], [0], [1], [0, 0, 1, 1], [], []>} : vector<64x128xbf16>, vector<128x128xbf16>, vector<64x128xf32> -> vector<64x128xf32>
    %c0_154 = arith.constant 0 : index
    %c0_155 = arith.constant 0 : index
    %223 = vector.load %arg14[%c0_154, %c0_155] : memref<1x128xf32, #tpu.memory_space<vmem>>, vector<1x128xf32>
    %224 = vector.broadcast %223 : vector<1x128xf32> to vector<64x128xf32>
    %225 = arith.addf %222, %224 : vector<64x128xf32>
    %c0_156 = arith.constant 0 : index
    %c0_157 = arith.constant 0 : index
    %226 = vector.load %arg1[%c0_156, %c0_157] : memref<64x128xf32, #tpu.memory_space<vmem>>, vector<64x128xf32>
    %227 = arith.addf %225, %226 : vector<64x128xf32>
    %c0_158 = arith.constant 0 : index
    %c0_159 = arith.constant 0 : index
    %228 = vector.load %arg15[%c0_158, %c0_159] : memref<64x128xf32, #tpu.memory_space<vmem>>, vector<64x128xf32>
    tpu.vector_store %arg15[%c0_158, %c0_159], %227 {strides = array<i32>} : memref<64x128xf32, #tpu.memory_space<vmem>>, vector<64x128xf32>,
    return
  }
  func.func @transform_0(%arg0: i32) -> (i32, i32) {
    %c0_i32 = arith.constant 0 : i32
    %c0_i32_0 = arith.constant 0 : i32
    return %arg0, %c0_i32 : i32, i32
  }
  func.func @transform_1(%arg0: i32) -> (i32, i32, i32) {
    %c0_i32 = arith.constant 0 : i32
    %c0_i32_0 = arith.constant 0 : i32
    %c0_i32_1 = arith.constant 0 : i32
    return %c0_i32, %arg0, %c0_i32_0 : i32, i32, i32
  }
  func.func @transform_2(%arg0: i32) -> (i32, i32) {
    %c0_i32 = arith.constant 0 : i32
    %c0_i32_0 = arith.constant 0 : i32
    %c0_i32_1 = arith.constant 0 : i32
    return %c0_i32, %c0_i32_0 : i32, i32
  }
  func.func @transform_3(%arg0: i32) -> (i32, i32) {
    %c0_i32 = arith.constant 0 : i32
    %c0_i32_0 = arith.constant 0 : i32
    %c0_i32_1 = arith.constant 0 : i32
    return %c0_i32, %c0_i32_0 : i32, i32
  }
  func.func @transform_4(%arg0: i32) -> (i32, i32) {
    %c0_i32 = arith.constant 0 : i32
    %c0_i32_0 = arith.constant 0 : i32
    %c0_i32_1 = arith.constant 0 : i32
    return %c0_i32, %c0_i32_0 : i32, i32
  }
  func.func @transform_5(%arg0: i32) -> (i32, i32) {
    %c0_i32 = arith.constant 0 : i32
    %c0_i32_0 = arith.constant 0 : i32
    %c0_i32_1 = arith.constant 0 : i32
    return %c0_i32, %c0_i32_0 : i32, i32
  }
  func.func @transform_6(%arg0: i32) -> (i32, i32) {
    %c0_i32 = arith.constant 0 : i32
    %c0_i32_0 = arith.constant 0 : i32
    %c0_i32_1 = arith.constant 0 : i32
    return %c0_i32, %c0_i32_0 : i32, i32
  }
  func.func @transform_7(%arg0: i32) -> (i32, i32, i32) {
    %c0_i32 = arith.constant 0 : i32
    %c0_i32_0 = arith.constant 0 : i32
    %c0_i32_1 = arith.constant 0 : i32
    %c0_i32_2 = arith.constant 0 : i32
    return %c0_i32, %c0_i32_0, %c0_i32_1 : i32, i32, i32
  }
  func.func @transform_8(%arg0: i32) -> (i32, i32) {
    %c0_i32 = arith.constant 0 : i32
    %c0_i32_0 = arith.constant 0 : i32
    %c0_i32_1 = arith.constant 0 : i32
    return %c0_i32, %c0_i32_0 : i32, i32
  }
  func.func @transform_9(%arg0: i32) -> (i32, i32) {
    %c0_i32 = arith.constant 0 : i32
    %c0_i32_0 = arith.constant 0 : i32
    %c0_i32_1 = arith.constant 0 : i32
    return %c0_i32, %c0_i32_0 : i32, i32
  }
  func.func @transform_10(%arg0: i32) -> (i32, i32) {
    %c0_i32 = arith.constant 0 : i32
    %c0_i32_0 = arith.constant 0 : i32
    %c0_i32_1 = arith.constant 0 : i32
    return %c0_i32, %c0_i32_0 : i32, i32
  }
  func.func @transform_11(%arg0: i32) -> (i32, i32) {
    %c0_i32 = arith.constant 0 : i32
    %c0_i32_0 = arith.constant 0 : i32
    %c0_i32_1 = arith.constant 0 : i32
    return %c0_i32, %c0_i32_0 : i32, i32
  }
  func.func @transform_12(%arg0: i32) -> (i32, i32) {
    %c0_i32 = arith.constant 0 : i32
    %c0_i32_0 = arith.constant 0 : i32
    %c0_i32_1 = arith.constant 0 : i32
    return %c0_i32, %c0_i32_0 : i32, i32
  }
  func.func @transform_13(%arg0: i32) -> (i32, i32) {
    %c0_i32 = arith.constant 0 : i32
    %c0_i32_0 = arith.constant 0 : i32
    %c0_i32_1 = arith.constant 0 : i32
    return %c0_i32, %c0_i32_0 : i32, i32
  }
  func.func @transform_14(%arg0: i32) -> (i32, i32) {
    %c0_i32 = arith.constant 0 : i32
    %c0_i32_0 = arith.constant 0 : i32
    return %arg0, %c0_i32 : i32, i32
  }
}

</mosaic_0001>

<llo_original>
// kernel: tpu_custom_call.1
$region0: #{tpu_custom_call.1}
  #allocation0 [shape = 'u32[]', space=smem, size = 0x4, offset = 0x4, fixed_abs, tag = 'smem constant byte address 0x4 - core index']
  #allocation1 [shape = 'u32[72,128]{1,0:T(1,128)}', space=vmem, size = 0x9000, scoped, tag = 'internal scratch']
  #allocation2 [shape = 'f32[16,64,128]{2,1,0:T(8,128)}', space=vmem, size = 0x80000, scoped, tag = 'scratch operand']
  #allocation3 [shape = 'f32[64,2048]{1,0:T(8,128)}', space=vmem, size = 0x80000, scoped, tag = 'scratch operand']
  #allocation22 [shape = 's32[]', space=sflag, size = 0x4, offset = 0, fixed_abs, tag = 'sflag constant byte address 0x0 - dummy sync flag']
  %s0 = inlined_call_operand.hbm [shape: f32[512,128], index: 0, kind: input, shape index: {}]
  %s1 = inlined_call_operand.hbm [shape: bf16[16,512,128], index: 1, kind: input, shape index: {}]
  %s2 = inlined_call_operand.vmem [shape: bf16[128,16], index: 2, kind: input, shape index: {}]
  %s3 = inlined_call_operand.hbm [shape: f32[1,16], index: 3, kind: input, shape index: {}]
  %s4 = inlined_call_operand.vmem [shape: bf16[128,16], index: 4, kind: input, shape index: {}]
  %s5 = inlined_call_operand.hbm [shape: f32[1,16], index: 5, kind: input, shape index: {}]
  %s6 = inlined_call_operand.vmem [shape: bf16[16,8], index: 6, kind: input, shape index: {}]
  %s7 = inlined_call_operand.vmem [shape: bf16[16,16,8], index: 7, kind: input, shape index: {}]
  %s8 = inlined_call_operand.hbm [shape: bf16[128,128], index: 8, kind: input, shape index: {}]
  %s9 = inlined_call_operand.hbm [shape: f32[1,128], index: 9, kind: input, shape index: {}]
  %s10 = inlined_call_operand.hbm [shape: bf16[8,2048], index: 10, kind: input, shape index: {}]
  %s11 = inlined_call_operand.hbm [shape: f32[1,2048], index: 11, kind: input, shape index: {}]
  %s12 = inlined_call_operand.hbm [shape: bf16[128,128], index: 12, kind: input, shape index: {}]
  %s13 = inlined_call_operand.hbm [shape: f32[1,128], index: 13, kind: input, shape index: {}]
  %s14 = inlined_call_operand.hbm [shape: f32[512,128], index: 14, kind: output, shape index: {}]
  %s15 = sld [smem:[#allocation0]]
  $region129: #{tpu_custom_call.1} parent=0
    _
  %s17 = ssub.s32 1, %s15
  %s18 = scalar_select 0, %s17, %s15
  $region1: #{tpu_custom_call.1} parent=0
    #allocation4 [shape = 'u8[65536]{0}', space=vmem, size = 0x10000, scoped, tag = 'input window, operand 0']
    #allocation5 [shape = 's32[2]{0}', space=sflag, size = 0x8, scoped, tag = 'scoped memory for tpu_custom_call.1']
    #allocation6 [shape = 's32[2]{0}', space=sflag, size = 0x8, scoped, tag = 'scoped memory for tpu_custom_call.1']
    #allocation7 [shape = 'u8[524288]{0}', space=vmem, size = 0x80000, scoped, tag = 'input window, operand 1']
    #allocation8 [shape = 's32[2]{0}', space=sflag, size = 0x8, scoped, tag = 'scoped memory for tpu_custom_call.1']
    #allocation9 [shape = 'u8[512]{0}', space=vmem, size = 0x400, scoped, tag = 'input window, operand 3, single buffered']
    #allocation10 [shape = 'u8[512]{0}', space=vmem, size = 0x400, scoped, tag = 'input window, operand 5, single buffered']
    #allocation11 [shape = 's32[1]{0}', space=sflag, size = 0x4, scoped, tag = 'scoped memory for tpu_custom_call.1']
    #allocation12 [shape = 'u8[32768]{0}', space=vmem, size = 0x8000, scoped, tag = 'input window, operand 8, single buffered']
    #allocation13 [shape = 'u8[512]{0}', space=vmem, size = 0x400, scoped, tag = 'input window, operand 9, single buffered']
    #allocation14 [shape = 's32[1]{0}', space=sflag, size = 0x4, scoped, tag = 'scoped memory for tpu_custom_call.1']
    #allocation15 [shape = 'u8[32768]{0}', space=vmem, size = 0x8000, scoped, tag = 'input window, operand 10, single buffered']
    #allocation16 [shape = 'u8[8192]{0}', space=vmem, size = 0x2000, scoped, tag = 'input window, operand 11, single buffered']
    #allocation17 [shape = 's32[1]{0}', space=sflag, size = 0x4, scoped, tag = 'scoped memory for tpu_custom_call.1']
    #allocation18 [shape = 'u8[32768]{0}', space=vmem, size = 0x8000, scoped, tag = 'input window, operand 12, single buffered']
    #allocation19 [shape = 'u8[512]{0}', space=vmem, size = 0x400, scoped, tag = 'input window, operand 13, single buffered']
    #allocation20 [shape = 's32[1]{0}', space=sflag, size = 0x4, scoped, tag = 'scoped memory for tpu_custom_call.1']
    #allocation21 [shape = 'u8[65536]{0}', space=vmem, size = 0x10000, scoped, tag = 'output window, operand 0']
    %19 = vsyncpa [#allocation5], 0
    %s20 = scalar_lea.sflag [#allocation5], 1
    %21 = vsyncpa %s20, 0
    %22 = vsyncpa [#allocation8], 0
    %s23 = scalar_lea.sflag [#allocation8], 1
    %24 = vsyncpa %s23, 0
    %25 = vsyncpa [#allocation11], 0
    %26 = vsyncpa [#allocation14], 0
    %27 = vsyncpa [#allocation17], 0
    %28 = vsyncpa [#allocation20], 0
    %29 = vsyncpa [#allocation6], 0
    %s30 = scalar_lea.sflag [#allocation6], 1
    %31 = vsyncpa %s30, 0
    loop: start=0, step=1, limit=10
    $region2: #{tpu_custom_call.1} parent=1 // loop_pre_header
      _
    $region3: #{tpu_custom_call.1} parent=1 // loop_header
      %s33 = sphi 0, %s37
      %p34 = scmp.ge.s32.totalorder %s33, 10
      %s43 = sphi 0, %s45
      %s46 = sphi 0, %s43
      %s47 = sphi 0, %s46
      %s63 = sphi 0, %s47
      %s69 = sphi 0, %s71
      %s72 = sphi 0, %s69
      %s73 = sphi 0, %s72
      %s89 = sphi 0, %s73
      %s93 = sphi 0, %s93
      %s95 = sphi 0, %s93
      %s96 = sphi 0, %s95
      %s110 = sphi 0, %s96
      %s114 = sphi 0, %s114
      %s116 = sphi 0, %s114
      %s117 = sphi 0, %s116
      %s131 = sphi 0, %s117
      %s135 = sphi 0, %s135
      %s137 = sphi 0, %s135
      %s138 = sphi 0, %s137
      %s152 = sphi 0, %s138
      %s156 = sphi 0, %s156
      %s158 = sphi 0, %s156
      %s159 = sphi 0, %s158
      %s173 = sphi 0, %s159
      %s177 = sphi 0, %s177
      %s179 = sphi 0, %s177
      %s180 = sphi 0, %s179
      %s194 = sphi 0, %s180
      %s198 = sphi 0, %s198
      %s200 = sphi 0, %s198
      %s201 = sphi 0, %s200
      %s215 = sphi 0, %s201
      %s219 = sphi 0, %s219
      %s221 = sphi 0, %s219
      %s222 = sphi 0, %s221
      %s236 = sphi 0, %s222
      %s240 = sphi 0, %s240
      %s242 = sphi 0, %s240
      %s243 = sphi 0, %s242
      %s257 = sphi 0, %s243
      %s261 = sphi 0, %s261
      %s263 = sphi 0, %s261
      %s264 = sphi 0, %s263
      %s278 = sphi 0, %s264
      %s282 = sphi 0, %s282
      %s284 = sphi 0, %s282
      %s285 = sphi 0, %s284
      %s299 = sphi 0, %s285
      %s303 = sphi 0, %s303
      %s305 = sphi 0, %s303
      %s306 = sphi 0, %s305
      %s320 = sphi 0, %s306
      %s324 = sphi 0, %s324
      %s326 = sphi 0, %s324
      %s327 = sphi 0, %s326
      %s341 = sphi 0, %s327
      %s347 = sphi 0, %s349
      %s350 = sphi 0, %s347
      %s351 = sphi 0, %s350
      %s367 = sphi 0, %s351
    $region4: #{tpu_custom_call.1} parent=1 // loop_header_branch
      %36 = sbr.rel (%p34) target = $region8
    $region5: #{tpu_custom_call.1} parent=1 // loop_body
      %s38 = ssub.s32 %s33, 1
      %s39 = ssub.s32 %s33, 2
      %s40 = sadd.s32 %s33, 1
      %s41 = ssub.s32 %s33, %s40
      %p42 = scmp.eq.s32.totalorder %s41, 0
      %s44 = sadd.s32 %s43, 1
      %s45 = scalar_select %p42, %s43, %s44
      %p48 = pneg %p42
      %p49 = scmp.eq.s32.totalorder %s33, 7
      %p50 = por %p48, %p49
      %p51 = scmp.ne.s32.totalorder %s43, %s46
      %p52 = scmp.eq.s32.totalorder %s33, 0
      %p53 = por %p51, %p52
      %p54 = scmp.ne.s32.totalorder %s43, %s46
      %p55 = scmp.eq.s32.totalorder %s38, 7
      %p56 = por %p54, %p55
      %p57 = scmp.ne.s32.totalorder %s46, %s47
      %p58 = scmp.eq.s32.totalorder %s38, 0
      %p59 = por %p57, %p58
      %p60 = scmp.ne.s32.totalorder %s46, %s47
      %p61 = scmp.eq.s32.totalorder %s39, 7
      %p62 = por %p60, %p61
      %p64 = scmp.ne.s32.totalorder %s47, %s63
      %p65 = scmp.eq.s32.totalorder %s39, 0
      %p66 = por %p64, %p65
      %s67 = ssub.s32 %s33, %s40
      %p68 = scmp.eq.s32.totalorder %s67, 0
      %s70 = sadd.s32 %s69, 1
      %s71 = scalar_select %p68, %s69, %s70
      %p74 = pneg %p68
      %p75 = scmp.eq.s32.totalorder %s33, 7
      %p76 = por %p74, %p75
      %p77 = scmp.ne.s32.totalorder %s69, %s72
      %p78 = scmp.eq.s32.totalorder %s33, 0
      %p79 = por %p77, %p78
      %p80 = scmp.ne.s32.totalorder %s69, %s72
      %p81 = scmp.eq.s32.totalorder %s38, 7
      %p82 = por %p80, %p81
      %p83 = scmp.ne.s32.totalorder %s72, %s73
      %p84 = scmp.eq.s32.totalorder %s38, 0
      %p85 = por %p83, %p84
      %p86 = scmp.ne.s32.totalorder %s72, %s73
      %p87 = scmp.eq.s32.totalorder %s39, 7
      %p88 = por %p86, %p87
      %p90 = scmp.ne.s32.totalorder %s73, %s89
      %p91 = scmp.eq.s32.totalorder %s39, 0
      %p92 = por %p90, %p91
      %s94 = sadd.s32 %s93, 1
      %p97 = scmp.eq.s32.totalorder %s33, 7
      %p98 = scmp.ne.s32.totalorder %s93, %s95
      %p99 = scmp.eq.s32.totalorder %s33, 0
      %p100 = por %p98, %p99
      %p101 = scmp.ne.s32.totalorder %s93, %s95
      %p102 = scmp.eq.s32.totalorder %s38, 7
      %p103 = por %p101, %p102
      %p104 = scmp.ne.s32.totalorder %s95, %s96
      %p105 = scmp.eq.s32.totalorder %s38, 0
      %p106 = por %p104, %p105
      %p107 = scmp.ne.s32.totalorder %s95, %s96
      %p108 = scmp.eq.s32.totalorder %s39, 7
      %p109 = por %p107, %p108
      %p111 = scmp.ne.s32.totalorder %s96, %s110
      %p112 = scmp.eq.s32.totalorder %s39, 0
      %p113 = por %p111, %p112
      %s115 = sadd.s32 %s114, 1
      %p118 = scmp.eq.s32.totalorder %s33, 7
      %p119 = scmp.ne.s32.totalorder %s114, %s116
      %p120 = scmp.eq.s32.totalorder %s33, 0
      %p121 = por %p119, %p120
      %p122 = scmp.ne.s32.totalorder %s114, %s116
      %p123 = scmp.eq.s32.totalorder %s38, 7
      %p124 = por %p122, %p123
      %p125 = scmp.ne.s32.totalorder %s116, %s117
      %p126 = scmp.eq.s32.totalorder %s38, 0
      %p127 = por %p125, %p126
      %p128 = scmp.ne.s32.totalorder %s116, %s117
      %p129 = scmp.eq.s32.totalorder %s39, 7
      %p130 = por %p128, %p129
      %p132 = scmp.ne.s32.totalorder %s117, %s131
      %p133 = scmp.eq.s32.totalorder %s39, 0
      %p134 = por %p132, %p133
      %s136 = sadd.s32 %s135, 1
      %p139 = scmp.eq.s32.totalorder %s33, 7
      %p140 = scmp.ne.s32.totalorder %s135, %s137
      %p141 = scmp.eq.s32.totalorder %s33, 0
      %p142 = por %p140, %p141
      %p143 = scmp.ne.s32.totalorder %s135, %s137
      %p144 = scmp.eq.s32.totalorder %s38, 7
      %p145 = por %p143, %p144
      %p146 = scmp.ne.s32.totalorder %s137, %s138
      %p147 = scmp.eq.s32.totalorder %s38, 0
      %p148 = por %p146, %p147
      %p149 = scmp.ne.s32.totalorder %s137, %s138
      %p150 = scmp.eq.s32.totalorder %s39, 7
      %p151 = por %p149, %p150
      %p153 = scmp.ne.s32.totalorder %s138, %s152
      %p154 = scmp.eq.s32.totalorder %s39, 0
      %p155 = por %p153, %p154
      %s157 = sadd.s32 %s156, 1
      %p160 = scmp.eq.s32.totalorder %s33, 7
      %p161 = scmp.ne.s32.totalorder %s156, %s158
      %p162 = scmp.eq.s32.totalorder %s33, 0
      %p163 = por %p161, %p162
      %p164 = scmp.ne.s32.totalorder %s156, %s158
      %p165 = scmp.eq.s32.totalorder %s38, 7
      %p166 = por %p164, %p165
      %p167 = scmp.ne.s32.totalorder %s158, %s159
      %p168 = scmp.eq.s32.totalorder %s38, 0
      %p169 = por %p167, %p168
      %p170 = scmp.ne.s32.totalorder %s158, %s159
      %p171 = scmp.eq.s32.totalorder %s39, 7
      %p172 = por %p170, %p171
      %p174 = scmp.ne.s32.totalorder %s159, %s173
      %p175 = scmp.eq.s32.totalorder %s39, 0
      %p176 = por %p174, %p175
      %s178 = sadd.s32 %s177, 1
      %p181 = scmp.eq.s32.totalorder %s33, 7
      %p182 = scmp.ne.s32.totalorder %s177, %s179
      %p183 = scmp.eq.s32.totalorder %s33, 0
      %p184 = por %p182, %p183
      %p185 = scmp.ne.s32.totalorder %s177, %s179
      %p186 = scmp.eq.s32.totalorder %s38, 7
      %p187 = por %p185, %p186
      %p188 = scmp.ne.s32.totalorder %s179, %s180
      %p189 = scmp.eq.s32.totalorder %s38, 0
      %p190 = por %p188, %p189
      %p191 = scmp.ne.s32.totalorder %s179, %s180
      %p192 = scmp.eq.s32.totalorder %s39, 7
      %p193 = por %p191, %p192
      %p195 = scmp.ne.s32.totalorder %s180, %s194
      %p196 = scmp.eq.s32.totalorder %s39, 0
      %p197 = por %p195, %p196
      %s199 = sadd.s32 %s198, 1
      %p202 = scmp.eq.s32.totalorder %s33, 7
      %p203 = scmp.ne.s32.totalorder %s198, %s200
      %p204 = scmp.eq.s32.totalorder %s33, 0
      %p205 = por %p203, %p204
      %p206 = scmp.ne.s32.totalorder %s198, %s200
      %p207 = scmp.eq.s32.totalorder %s38, 7
      %p208 = por %p206, %p207
      %p209 = scmp.ne.s32.totalorder %s200, %s201
      %p210 = scmp.eq.s32.totalorder %s38, 0
      %p211 = por %p209, %p210
      %p212 = scmp.ne.s32.totalorder %s200, %s201
      %p213 = scmp.eq.s32.totalorder %s39, 7
      %p214 = por %p212, %p213
      %p216 = scmp.ne.s32.totalorder %s201, %s215
      %p217 = scmp.eq.s32.totalorder %s39, 0
      %p218 = por %p216, %p217
      %s220 = sadd.s32 %s219, 1
      %p223 = scmp.eq.s32.totalorder %s33, 7
      %p224 = scmp.ne.s32.totalorder %s219, %s221
      %p225 = scmp.eq.s32.totalorder %s33, 0
      %p226 = por %p224, %p225
      %p227 = scmp.ne.s32.totalorder %s219, %s221
      %p228 = scmp.eq.s32.totalorder %s38, 7
      %p229 = por %p227, %p228
      %p230 = scmp.ne.s32.totalorder %s221, %s222
      %p231 = scmp.eq.s32.totalorder %s38, 0
      %p232 = por %p230, %p231
      %p233 = scmp.ne.s32.totalorder %s221, %s222
      %p234 = scmp.eq.s32.totalorder %s39, 7
      %p235 = por %p233, %p234
      %p237 = scmp.ne.s32.totalorder %s222, %s236
      %p238 = scmp.eq.s32.totalorder %s39, 0
      %p239 = por %p237, %p238
      %s241 = sadd.s32 %s240, 1
      %p244 = scmp.eq.s32.totalorder %s33, 7
      %p245 = scmp.ne.s32.totalorder %s240, %s242
      %p246 = scmp.eq.s32.totalorder %s33, 0
      %p247 = por %p245, %p246
      %p248 = scmp.ne.s32.totalorder %s240, %s242
      %p249 = scmp.eq.s32.totalorder %s38, 7
      %p250 = por %p248, %p249
      %p251 = scmp.ne.s32.totalorder %s242, %s243
      %p252 = scmp.eq.s32.totalorder %s38, 0
      %p253 = por %p251, %p252
      %p254 = scmp.ne.s32.totalorder %s242, %s243
      %p255 = scmp.eq.s32.totalorder %s39, 7
      %p256 = por %p254, %p255
      %p258 = scmp.ne.s32.totalorder %s243, %s257
      %p259 = scmp.eq.s32.totalorder %s39, 0
      %p260 = por %p258, %p259
      %s262 = sadd.s32 %s261, 1
      %p265 = scmp.eq.s32.totalorder %s33, 7
      %p266 = scmp.ne.s32.totalorder %s261, %s263
      %p267 = scmp.eq.s32.totalorder %s33, 0
      %p268 = por %p266, %p267
      %p269 = scmp.ne.s32.totalorder %s261, %s263
      %p270 = scmp.eq.s32.totalorder %s38, 7
      %p271 = por %p269, %p270
      %p272 = scmp.ne.s32.totalorder %s263, %s264
      %p273 = scmp.eq.s32.totalorder %s38, 0
      %p274 = por %p272, %p273
      %p275 = scmp.ne.s32.totalorder %s263, %s264
      %p276 = scmp.eq.s32.totalorder %s39, 7
      %p277 = por %p275, %p276
      %p279 = scmp.ne.s32.totalorder %s264, %s278
      %p280 = scmp.eq.s32.totalorder %s39, 0
      %p281 = por %p279, %p280
      %s283 = sadd.s32 %s282, 1
      %p286 = scmp.eq.s32.totalorder %s33, 7
      %p287 = scmp.ne.s32.totalorder %s282, %s284
      %p288 = scmp.eq.s32.totalorder %s33, 0
      %p289 = por %p287, %p288
      %p290 = scmp.ne.s32.totalorder %s282, %s284
      %p291 = scmp.eq.s32.totalorder %s38, 7
      %p292 = por %p290, %p291
      %p293 = scmp.ne.s32.totalorder %s284, %s285
      %p294 = scmp.eq.s32.totalorder %s38, 0
      %p295 = por %p293, %p294
      %p296 = scmp.ne.s32.totalorder %s284, %s285
      %p297 = scmp.eq.s32.totalorder %s39, 7
      %p298 = por %p296, %p297
      %p300 = scmp.ne.s32.totalorder %s285, %s299
      %p301 = scmp.eq.s32.totalorder %s39, 0
      %p302 = por %p300, %p301
      %s304 = sadd.s32 %s303, 1
      %p307 = scmp.eq.s32.totalorder %s33, 7
      %p308 = scmp.ne.s32.totalorder %s303, %s305
      %p309 = scmp.eq.s32.totalorder %s33, 0
      %p310 = por %p308, %p309
      %p311 = scmp.ne.s32.totalorder %s303, %s305
      %p312 = scmp.eq.s32.totalorder %s38, 7
      %p313 = por %p311, %p312
      %p314 = scmp.ne.s32.totalorder %s305, %s306
      %p315 = scmp.eq.s32.totalorder %s38, 0
      %p316 = por %p314, %p315
      %p317 = scmp.ne.s32.totalorder %s305, %s306
      %p318 = scmp.eq.s32.totalorder %s39, 7
      %p319 = por %p317, %p318
      %p321 = scmp.ne.s32.totalorder %s306, %s320
      %p322 = scmp.eq.s32.totalorder %s39, 0
      %p323 = por %p321, %p322
      %s325 = sadd.s32 %s324, 1
      %p328 = scmp.eq.s32.totalorder %s33, 7
      %p329 = scmp.ne.s32.totalorder %s324, %s326
      %p330 = scmp.eq.s32.totalorder %s33, 0
      %p331 = por %p329, %p330
      %p332 = scmp.ne.s32.totalorder %s324, %s326
      %p333 = scmp.eq.s32.totalorder %s38, 7
      %p334 = por %p332, %p333
      %p335 = scmp.ne.s32.totalorder %s326, %s327
      %p336 = scmp.eq.s32.totalorder %s38, 0
      %p337 = por %p335, %p336
      %p338 = scmp.ne.s32.totalorder %s326, %s327
      %p339 = scmp.eq.s32.totalorder %s39, 7
      %p340 = por %p338, %p339
      %p342 = scmp.ne.s32.totalorder %s327, %s341
      %p343 = scmp.eq.s32.totalorder %s39, 0
      %p344 = por %p342, %p343
      %s345 = ssub.s32 %s33, %s40
      %p346 = scmp.eq.s32.totalorder %s345, 0
      %s348 = sadd.s32 %s347, 1
      %s349 = scalar_select %p346, %s347, %s348
      %p352 = pneg %p346
      %p353 = scmp.eq.s32.totalorder %s33, 7
      %p354 = por %p352, %p353
      %p355 = scmp.ne.s32.totalorder %s347, %s350
      %p356 = scmp.eq.s32.totalorder %s33, 0
      %p357 = por %p355, %p356
      %p358 = scmp.ne.s32.totalorder %s347, %s350
      %p359 = scmp.eq.s32.totalorder %s38, 7
      %p360 = por %p358, %p359
      %p361 = scmp.ne.s32.totalorder %s350, %s351
      %p362 = scmp.eq.s32.totalorder %s38, 0
      %p363 = por %p361, %p362
      %p364 = scmp.ne.s32.totalorder %s350, %s351
      %p365 = scmp.eq.s32.totalorder %s39, 7
      %p366 = por %p364, %p365
      %p368 = scmp.ne.s32.totalorder %s351, %s367
      %p369 = scmp.eq.s32.totalorder %s39, 0
      %p370 = por %p368, %p369
      %p371 = scmp.le.s32.totalorder 1, %s33
      %p372 = scmp.lt.s32.totalorder %s33, 9
      %p373 = pnand %p371, %p372
      %p374 = pneg %p373
      // Predicated region
      $region9: #{tpu_custom_call.1} parent=5 // pred_check
        _
      $region10: #{tpu_custom_call.1} parent=5 // pred_check_branch
        %376 = sbr.rel (%p373) target = $region12
      $region11: #{tpu_custom_call.1} parent=5 // pred_region
        %s377 = ssub.s32 %s33, 1
        // Predicated region
        $region13: #{tpu_custom_call.1} parent=11 // pred_check
          %p378 = pneg %p106
        $region14: #{tpu_custom_call.1} parent=11 // pred_check_branch
          %380 = sbr.rel (%p378) target = $region16
        $region15: #{tpu_custom_call.1} parent=11 // pred_region
          _
        $region16: #{tpu_custom_call.1} parent=11 // pred_fallthru
          _
        // Predicated region
        $region17: #{tpu_custom_call.1} parent=11 // pred_check
          %p381 = pneg %p127
        $region18: #{tpu_custom_call.1} parent=11 // pred_check_branch
          %383 = sbr.rel (%p381) target = $region20
        $region19: #{tpu_custom_call.1} parent=11 // pred_region
          %385 = vsyncadd [#allocation8], 0
          %s387 = sshll.u32 %s3, 4
          %s388 = int_to_ptr.hbm [resolvable:$true] %s387
          %s389 = sshll.u32 [#allocation9], 4
          %s390 = int_to_ptr.vmem [resolvable:$true] %s389
          %392 = dma.hbm_to_vmem [thread:$0]  %s388, 16, %s390, [#allocation8]
        $region20: #{tpu_custom_call.1} parent=11 // pred_fallthru
          _
        // Predicated region
        $region21: #{tpu_custom_call.1} parent=11 // pred_check
          %p393 = pneg %p148
        $region22: #{tpu_custom_call.1} parent=11 // pred_check_branch
          %395 = sbr.rel (%p393) target = $region24
        $region23: #{tpu_custom_call.1} parent=11 // pred_region
          _
        $region24: #{tpu_custom_call.1} parent=11 // pred_fallthru
          _
        // Predicated region
        $region25: #{tpu_custom_call.1} parent=11 // pred_check
          %p396 = pneg %p169
        $region26: #{tpu_custom_call.1} parent=11 // pred_check_branch
          %398 = sbr.rel (%p396) target = $region28
        $region27: #{tpu_custom_call.1} parent=11 // pred_region
          %400 = vsyncadd [#allocation11], 0
          %s402 = sshll.u32 %s5, 4
          %s403 = int_to_ptr.hbm [resolvable:$true] %s402
          %s404 = sshll.u32 [#allocation10], 4
          %s405 = int_to_ptr.vmem [resolvable:$true] %s404
          %407 = dma.hbm_to_vmem [thread:$0]  %s403, 16, %s405, [#allocation11]
        $region28: #{tpu_custom_call.1} parent=11 // pred_fallthru
          _
        // Predicated region
        $region29: #{tpu_custom_call.1} parent=11 // pred_check
          %p408 = pneg %p190
        $region30: #{tpu_custom_call.1} parent=11 // pred_check_branch
          %410 = sbr.rel (%p408) target = $region32
        $region31: #{tpu_custom_call.1} parent=11 // pred_region
          _
        $region32: #{tpu_custom_call.1} parent=11 // pred_fallthru
          _
        // Predicated region
        $region33: #{tpu_custom_call.1} parent=11 // pred_check
          %p411 = pneg %p211
        $region34: #{tpu_custom_call.1} parent=11 // pred_check_branch
          %413 = sbr.rel (%p411) target = $region36
        $region35: #{tpu_custom_call.1} parent=11 // pred_region
          _
        $region36: #{tpu_custom_call.1} parent=11 // pred_fallthru
          _
        // Predicated region
        $region37: #{tpu_custom_call.1} parent=11 // pred_check
          %p414 = pneg %p232
        $region38: #{tpu_custom_call.1} parent=11 // pred_check_branch
          %416 = sbr.rel (%p414) target = $region40
        $region39: #{tpu_custom_call.1} parent=11 // pred_region
          %418 = vsyncadd [#allocation11], 0
          %s419 = sshll.u32 %s8, 4
          %s420 = int_to_ptr.hbm [resolvable:$true] %s419
          %s421 = sshll.u32 [#allocation12], 4
          %s422 = int_to_ptr.vmem [resolvable:$true] %s421
          %427 = dma.hbm_to_vmem [thread:$0]  %s420, 1024, %s422, [#allocation11], 64, 64, 4
        $region40: #{tpu_custom_call.1} parent=11 // pred_fallthru
          _
        // Predicated region
        $region41: #{tpu_custom_call.1} parent=11 // pred_check
          %p428 = pneg %p253
        $region42: #{tpu_custom_call.1} parent=11 // pred_check_branch
          %430 = sbr.rel (%p428) target = $region44
        $region43: #{tpu_custom_call.1} parent=11 // pred_region
          %432 = vsyncadd [#allocation14], 0
          %s434 = sshll.u32 %s9, 4
          %s435 = int_to_ptr.hbm [resolvable:$true] %s434
          %s436 = sshll.u32 [#allocation13], 4
          %s437 = int_to_ptr.vmem [resolvable:$true] %s436
          %439 = dma.hbm_to_vmem [thread:$0]  %s435, 16, %s437, [#allocation14]
        $region44: #{tpu_custom_call.1} parent=11 // pred_fallthru
          _
        // Predicated region
        $region45: #{tpu_custom_call.1} parent=11 // pred_check
          %p440 = pneg %p274
        $region46: #{tpu_custom_call.1} parent=11 // pred_check_branch
          %442 = sbr.rel (%p440) target = $region48
        $region47: #{tpu_custom_call.1} parent=11 // pred_region
          %444 = vsyncadd [#allocation14], 0
          %s446 = sshll.u32 %s10, 4
          %s447 = int_to_ptr.hbm [resolvable:$true] %s446
          %s448 = sshll.u32 [#allocation15], 4
          %s449 = int_to_ptr.vmem [resolvable:$true] %s448
          %451 = dma.hbm_to_vmem [thread:$0]  %s447, 1024, %s449, [#allocation14]
        $region48: #{tpu_custom_call.1} parent=11 // pred_fallthru
          _
        // Predicated region
        $region49: #{tpu_custom_call.1} parent=11 // pred_check
          %p452 = pneg %p295
        $region50: #{tpu_custom_call.1} parent=11 // pred_check_branch
          %454 = sbr.rel (%p452) target = $region52
        $region51: #{tpu_custom_call.1} parent=11 // pred_region
          %456 = vsyncadd [#allocation17], 0
          %s458 = sshll.u32 %s11, 4
          %s459 = int_to_ptr.hbm [resolvable:$true] %s458
          %s460 = sshll.u32 [#allocation16], 4
          %s461 = int_to_ptr.vmem [resolvable:$true] %s460
          %463 = dma.hbm_to_vmem [thread:$0]  %s459, 256, %s461, [#allocation17]
        $region52: #{tpu_custom_call.1} parent=11 // pred_fallthru
          _
        // Predicated region
        $region53: #{tpu_custom_call.1} parent=11 // pred_check
          %p464 = pneg %p316
        $region54: #{tpu_custom_call.1} parent=11 // pred_check_branch
          %466 = sbr.rel (%p464) target = $region56
        $region55: #{tpu_custom_call.1} parent=11 // pred_region
          %468 = vsyncadd [#allocation17], 0
          %s469 = sshll.u32 %s12, 4
          %s470 = int_to_ptr.hbm [resolvable:$true] %s469
          %s471 = sshll.u32 [#allocation18], 4
          %s472 = int_to_ptr.vmem [resolvable:$true] %s471
          %477 = dma.hbm_to_vmem [thread:$0]  %s470, 1024, %s472, [#allocation17], 64, 64, 4
        $region56: #{tpu_custom_call.1} parent=11 // pred_fallthru
          _
        // Predicated region
        $region57: #{tpu_custom_call.1} parent=11 // pred_check
          %p478 = pneg %p337
        $region58: #{tpu_custom_call.1} parent=11 // pred_check_branch
          %480 = sbr.rel (%p478) target = $region60
        $region59: #{tpu_custom_call.1} parent=11 // pred_region
          %482 = vsyncadd [#allocation20], 0
          %s484 = sshll.u32 %s13, 4
          %s485 = int_to_ptr.hbm [resolvable:$true] %s484
          %s486 = sshll.u32 [#allocation19], 4
          %s487 = int_to_ptr.vmem [resolvable:$true] %s486
          %489 = dma.hbm_to_vmem [thread:$0]  %s485, 16, %s487, [#allocation20]
        $region60: #{tpu_custom_call.1} parent=11 // pred_fallthru
          _
      $region12: #{tpu_custom_call.1} parent=5 // pred_fallthru
        _
      %p490 = scmp.lt.s32.totalorder %s33, 8
      // Predicated region
      $region61: #{tpu_custom_call.1} parent=5 // pred_check
        %p491 = pneg %p490
      $region62: #{tpu_custom_call.1} parent=5 // pred_check_branch
        %493 = sbr.rel (%p491) target = $region64
      $region63: #{tpu_custom_call.1} parent=5 // pred_region
        // Predicated region
        $region65: #{tpu_custom_call.1} parent=63 // pred_check
          %p494 = pneg %p53
        $region66: #{tpu_custom_call.1} parent=63 // pred_check_branch
          %496 = sbr.rel (%p494) target = $region68
        $region67: #{tpu_custom_call.1} parent=63 // pred_region
          %s497 = sand.u32 %s43, 1
          %s498 = scalar_lea.sflag [#allocation5], %s497
          %s499 = sand.u32 %s43, 1
          %s500 = smul.addr %s499, 64
          %s501 = scalar_lea.vmem [#allocation4], %s500
          %s502 = smul.u32 8, %s33
          %504 = vsyncadd %s498, 0
          %s505 = smul.addr %s502, 8
          %s506 = scalar_lea.hbm %s0, %s505
          %s507 = sshll.u32 %s506, 4
          %s508 = int_to_ptr.hbm [resolvable:$true] %s507
          %s509 = sshll.u32 %s501, 4
          %s510 = int_to_ptr.vmem [resolvable:$true] %s509
          %515 = dma.hbm_to_vmem [thread:$0]  %s508, 1024, %s510, %s498, 128, 128, 8
        $region68: #{tpu_custom_call.1} parent=63 // pred_fallthru
          _
        // Predicated region
        $region69: #{tpu_custom_call.1} parent=63 // pred_check
          %p516 = pneg %p79
        $region70: #{tpu_custom_call.1} parent=63 // pred_check_branch
          %518 = sbr.rel (%p516) target = $region72
        $region71: #{tpu_custom_call.1} parent=63 // pred_region
          #allocation23 [shape = 'u32[6]{0}', space=smem, size = 0x18, scoped, tag = 'DMA stride descriptor']
          %s519 = sand.u32 %s33, 1
          %s520 = scalar_lea.sflag [#allocation8], %s519
          %s521 = sand.u32 %s69, 1
          %s522 = smul.addr %s521, 512
          %s523 = scalar_lea.vmem [#allocation7], %s522
          %s524 = smul.u32 8, %s33
          %526 = vsyncadd %s520, 0
          %s527 = smul.addr %s524, 4
          %s528 = scalar_lea.hbm %s1, %s527
          %s530 = sshll.u32 1, 14
          %s531 = sxor.u32 4294967295, %s530
          %s533 = sld [smem:[#allocation0]]
          %s534 = sadd.s32 2, %s533
          %s536 = sshll.u32 7, 26
          %s537 = sxor.u32 4294967295, %s536
          %s538 = sand.u32 0, %s537
          %s539 = sshll.u32 %s534, 26
          %s540 = sor.u32 %s538, %s539
          %s541 = sshll.u32 %s528, 4
          %s542 = int_to_ptr.hbm [resolvable:$true] %s541
          %s543 = sshll.u32 %s523, 4
          %s544 = int_to_ptr.vmem [resolvable:$true] %s543
          %550 = sst [smem:[#allocation23]] 4096
          %s551 = scalar_lea.smem [#allocation23], 1
          %552 = sst [smem:[%s551]] 512
          %s553 = scalar_lea.smem [#allocation23], 2
          %554 = sst [smem:[%s553]] 8
          %s555 = scalar_lea.smem [#allocation23], 3
          %556 = sst [smem:[%s555]] 64
          %s557 = scalar_lea.smem [#allocation23], 4
          %558 = sst [smem:[%s557]] 64
          %s559 = scalar_lea.smem [#allocation23], 5
          %560 = sst [smem:[%s559]] 4
          %562 = dma.general %s542, 8192, %s544, %s520, [#allocation22], [#allocation23], %s540, 0
        $region72: #{tpu_custom_call.1} parent=63 // pred_fallthru
          _
      $region64: #{tpu_custom_call.1} parent=5 // pred_fallthru
        _
      %p563 = scmp.le.s32.totalorder 1, %s33
      %p564 = scmp.lt.s32.totalorder %s33, 9
      %p565 = pnand %p563, %p564
      %p566 = pneg %p565
      // Predicated region
      $region73: #{tpu_custom_call.1} parent=5 // pred_check
        _
      $region74: #{tpu_custom_call.1} parent=5 // pred_check_branch
        %568 = sbr.rel (%p565) target = $region76
      $region75: #{tpu_custom_call.1} parent=5 // pred_region
        %s569 = ssub.s32 %s33, 1
        %s570 = sand.u32 %s46, 1
        %s571 = scalar_lea.sflag [#allocation5], %s570
        %s572 = sand.u32 %s46, 1
        %s573 = smul.addr %s572, 64
        %s574 = scalar_lea.vmem [#allocation4], %s573
        // Predicated region
        $region77: #{tpu_custom_call.1} parent=75 // pred_check
          %p575 = pneg %p59
        $region78: #{tpu_custom_call.1} parent=75 // pred_check_branch
          %577 = sbr.rel (%p575) target = $region80
        $region79: #{tpu_custom_call.1} parent=75 // pred_region
          %579 = dma.done %s571, 1024
        $region80: #{tpu_custom_call.1} parent=75 // pred_fallthru
          _
        %s580 = sand.u32 %s38, 1
        %s581 = scalar_lea.sflag [#allocation8], %s580
        %s582 = sand.u32 %s72, 1
        %s583 = smul.addr %s582, 512
        %s584 = scalar_lea.vmem [#allocation7], %s583
        // Predicated region
        $region81: #{tpu_custom_call.1} parent=75 // pred_check
          %p585 = pneg %p85
        $region82: #{tpu_custom_call.1} parent=75 // pred_check_branch
          %587 = sbr.rel (%p585) target = $region84
        $region83: #{tpu_custom_call.1} parent=75 // pred_region
          %589 = dma.done %s581, 8192
        $region84: #{tpu_custom_call.1} parent=75 // pred_fallthru
          _
        // Predicated region
        $region85: #{tpu_custom_call.1} parent=75 // pred_check
          %p590 = pneg %p127
        $region86: #{tpu_custom_call.1} parent=75 // pred_check_branch
          %592 = sbr.rel (%p590) target = $region88
        $region87: #{tpu_custom_call.1} parent=75 // pred_region
          %594 = dma.done [#allocation8], 16
        $region88: #{tpu_custom_call.1} parent=75 // pred_fallthru
          _
        // Predicated region
        $region89: #{tpu_custom_call.1} parent=75 // pred_check
          %p595 = pneg %p169
        $region90: #{tpu_custom_call.1} parent=75 // pred_check_branch
          %597 = sbr.rel (%p595) target = $region92
        $region91: #{tpu_custom_call.1} parent=75 // pred_region
          %599 = dma.done [#allocation11], 16
        $region92: #{tpu_custom_call.1} parent=75 // pred_fallthru
          _
        // Predicated region
        $region93: #{tpu_custom_call.1} parent=75 // pred_check
          %p600 = pneg %p232
        $region94: #{tpu_custom_call.1} parent=75 // pred_check_branch
          %602 = sbr.rel (%p600) target = $region96
        $region95: #{tpu_custom_call.1} parent=75 // pred_region
          %604 = dma.done [#allocation11], 1024
        $region96: #{tpu_custom_call.1} parent=75 // pred_fallthru
          _
        // Predicated region
        $region97: #{tpu_custom_call.1} parent=75 // pred_check
          %p605 = pneg %p253
        $region98: #{tpu_custom_call.1} parent=75 // pred_check_branch
          %607 = sbr.rel (%p605) target = $region100
        $region99: #{tpu_custom_call.1} parent=75 // pred_region
          %609 = dma.done [#allocation14], 16
        $region100: #{tpu_custom_call.1} parent=75 // pred_fallthru
          _
        // Predicated region
        $region101: #{tpu_custom_call.1} parent=75 // pred_check
          %p610 = pneg %p274
        $region102: #{tpu_custom_call.1} parent=75 // pred_check_branch
          %612 = sbr.rel (%p610) target = $region104
        $region103: #{tpu_custom_call.1} parent=75 // pred_region
          %614 = dma.done [#allocation14], 1024
        $region104: #{tpu_custom_call.1} parent=75 // pred_fallthru
          _
        // Predicated region
        $region105: #{tpu_custom_call.1} parent=75 // pred_check
          %p615 = pneg %p295
        $region106: #{tpu_custom_call.1} parent=75 // pred_check_branch
          %617 = sbr.rel (%p615) target = $region108
        $region107: #{tpu_custom_call.1} parent=75 // pred_region
          %619 = dma.done [#allocation17], 256
        $region108: #{tpu_custom_call.1} parent=75 // pred_fallthru
          _
        // Predicated region
        $region109: #{tpu_custom_call.1} parent=75 // pred_check
          %p620 = pneg %p316
        $region110: #{tpu_custom_call.1} parent=75 // pred_check_branch
          %622 = sbr.rel (%p620) target = $region112
        $region111: #{tpu_custom_call.1} parent=75 // pred_region
          %624 = dma.done [#allocation17], 1024
        $region112: #{tpu_custom_call.1} parent=75 // pred_fallthru
          _
        // Predicated region
        $region113: #{tpu_custom_call.1} parent=75 // pred_check
          %p625 = pneg %p337
        $region114: #{tpu_custom_call.1} parent=75 // pred_check_branch
          %627 = sbr.rel (%p625) target = $region116
        $region115: #{tpu_custom_call.1} parent=75 // pred_region
          %629 = dma.done [#allocation20], 16
        $region116: #{tpu_custom_call.1} parent=75 // pred_fallthru
          _
        %s630 = sand.u32 %s46, 1
        %s631 = scalar_lea.sflag [#allocation5], %s630
        %s632 = sand.u32 %s46, 1
        %s633 = smul.addr %s632, 64
        %s634 = scalar_lea.vmem [#allocation4], %s633
        %p635 = pneg %p59
        %p636 = pneg %p56
        %s637 = sand.u32 %s38, 1
        %s638 = scalar_lea.sflag [#allocation8], %s637
        %s639 = sand.u32 %s72, 1
        %s640 = smul.addr %s639, 512
        %s641 = scalar_lea.vmem [#allocation7], %s640
        %p642 = pneg %p85
        %p643 = pneg %p82
        %p644 = pneg %p106
        %p645 = pneg %p103
        %p646 = pneg %p127
        %p647 = pneg %p124
        %p648 = pneg %p148
        %p649 = pneg %p145
        %p650 = pneg %p169
        %p651 = pneg %p166
        %p652 = pneg %p190
        %p653 = pneg %p187
        %p654 = pneg %p211
        %p655 = pneg %p208
        %p656 = pneg %p232
        %p657 = pneg %p229
        %p658 = pneg %p253
        %p659 = pneg %p250
        %p660 = pneg %p274
        %p661 = pneg %p271
        %p662 = pneg %p295
        %p663 = pneg %p292
        %p664 = pneg %p316
        %p665 = pneg %p313
        %p666 = pneg %p337
        %p667 = pneg %p334
        %p668 = pneg %p363
        %p669 = pneg %p360
        %s670 = sand.u32 %s350, 1
        %s671 = scalar_lea.sflag [#allocation6], %s670
        %s672 = sand.u32 %s350, 1
        %s673 = smul.addr %s672, 64
        %s674 = scalar_lea.vmem [#allocation21], %s673
        %s675 = smul.u32 8, %s38
        %s676 = smul.u32 8, %s38
        %s677 = smul.u32 8, %s38
        %v679 = vld [vmem:[%s574] sm:$0xff]
        %v680 = vld [vmem:[%s574 + $0x8] sm:$0xff]
        %v681 = vld [vmem:[%s574 + $0x10] sm:$0xff]
        %v682 = vld [vmem:[%s574 + $0x18] sm:$0xff]
        %v683 = vld [vmem:[%s574 + $0x20] sm:$0xff]
        %v684 = vld [vmem:[%s574 + $0x28] sm:$0xff]
        %v685 = vld [vmem:[%s574 + $0x30] sm:$0xff]
        %v686 = vld [vmem:[%s574 + $0x38] sm:$0xff]
        %v687 = vmax.f32 %v679, 0.0
        %v688 = vmax.f32 %v680, 0.0
        %v689 = vmax.f32 %v681, 0.0
        %v690 = vmax.f32 %v682, 0.0
        %v691 = vmax.f32 %v683, 0.0
        %v692 = vmax.f32 %v684, 0.0
        %v693 = vmax.f32 %v685, 0.0
        %v694 = vmax.f32 %v686, 0.0
        %v695 = vpack.c.bf16 %v688, %v687
        %v696 = vpack.c.bf16 %v690, %v689
        %v697 = vpack.c.bf16 %v692, %v691
        %v698 = vpack.c.bf16 %v694, %v693
        %v699 = vld [vmem:[%s2] sm:$0xf]
        %v700 = vld [vmem:[%s2 + $0x4] sm:$0xf]
        %v701 = vld [vmem:[%s2 + $0x8] sm:$0xf]
        %v702 = vld [vmem:[%s2 + $0xc] sm:$0xf]
        %v703 = vld [vmem:[%s2 + $0x10] sm:$0xf]
        %v704 = vld [vmem:[%s2 + $0x14] sm:$0xf]
        %v705 = vld [vmem:[%s2 + $0x18] sm:$0xf]
        %v706 = vld [vmem:[%s2 + $0x1c] sm:$0xf]
        %v707 = vld [vmem:[%s2 + $0x20] sm:$0xf]
        %v708 = vld [vmem:[%s2 + $0x24] sm:$0xf]
        %v709 = vld [vmem:[%s2 + $0x28] sm:$0xf]
        %v710 = vld [vmem:[%s2 + $0x2c] sm:$0xf]
        %v711 = vld [vmem:[%s2 + $0x30] sm:$0xf]
        %v712 = vld [vmem:[%s2 + $0x34] sm:$0xf]
        %v713 = vld [vmem:[%s2 + $0x38] sm:$0xf]
        %v714 = vld [vmem:[%s2 + $0x3c] sm:$0xf]
        %v715 = vld [vmem:[#allocation9] sm:$0x1]
        %v717 = vperm.slane %v715, 0
        %v735 = vunpack.c.l.b16 %v699
        %v736 = vunpack.c.l.b16 %v700
        %v737 = vunpack.c.l.b16 %v701
        %v738 = vunpack.c.l.b16 %v702
        %v739 = vunpack.c.l.b16 %v703
        %v740 = vunpack.c.l.b16 %v704
        %v741 = vunpack.c.l.b16 %v705
        %v742 = vunpack.c.l.b16 %v706
        %v743 = vunpack.c.l.b16 %v707
        %v744 = vunpack.c.l.b16 %v708
        %v745 = vunpack.c.l.b16 %v709
        %v746 = vunpack.c.l.b16 %v710
        %v747 = vunpack.c.l.b16 %v711
        %v748 = vunpack.c.l.b16 %v712
        %v749 = vunpack.c.l.b16 %v713
        %v750 = vunpack.c.l.b16 %v714
        %v751 = vpack.c.b16 %v736, %v735
        %v752 = vpack.c.b16 %v738, %v737
        %v753 = vpack.c.b16 %v740, %v739
        %v754 = vpack.c.b16 %v742, %v741
        %v755 = vpack.c.b16 %v744, %v743
        %v756 = vpack.c.b16 %v746, %v745
        %v757 = vpack.c.b16 %v748, %v747
        %v758 = vpack.c.b16 %v750, %v749
        %767 = vmatpush.bf16.msra.mxu0 %v758
        %768 = vmatpush.bf16.msra.mxu0 %v757
        %769 = vmatpush.bf16.msra.mxu0 %v756
        %770 = vmatpush.bf16.msra.mxu0 %v755
        %771 = vmatpush.bf16.msra.mxu0 %v754
        %772 = vmatpush.bf16.msra.mxu0 %v753
        %773 = vmatpush.bf16.msra.mxu0 %v752
        %774 = vmatpush.bf16.msra.mxu0 %v751
        %775 = vmatmul.bf16.gmra.mxu0 %v695
        %v776 = vpop.f32.mrf.mxu0
        %v777 = vadd.f32 %v717, %v776
        %v778 = vpop.f32.mrf.mxu0
        %v779 = vadd.f32 %v717, %v778
        %780 = vmatmul.bf16.gmra.mxu0 %v696
        %v781 = vpop.f32.mrf.mxu0
        %v782 = vadd.f32 %v717, %v781
        %v783 = vpop.f32.mrf.mxu0
        %v784 = vadd.f32 %v717, %v783
        %785 = vmatmul.bf16.gmra.mxu0 %v697
        %v786 = vpop.f32.mrf.mxu0
        %v787 = vadd.f32 %v717, %v786
        %v788 = vpop.f32.mrf.mxu0
        %v789 = vadd.f32 %v717, %v788
        %790 = vmatmul.bf16.gmra.mxu0 %v698
        %v791 = vpop.f32.mrf.mxu0
        %v792 = vadd.f32 %v717, %v791
        %v793 = vpop.f32.mrf.mxu0
        %v794 = vadd.f32 %v717, %v793
        %795 = vdwg.mxu0
        %v796 = vmax.f32 %v777, 0.0
        %v797 = vmax.f32 %v779, 0.0
        %v798 = vmax.f32 %v782, 0.0
        %v799 = vmax.f32 %v784, 0.0
        %v800 = vmax.f32 %v787, 0.0
        %v801 = vmax.f32 %v789, 0.0
        %v802 = vmax.f32 %v792, 0.0
        %v803 = vmax.f32 %v794, 0.0
        %v804 = vpack.c.bf16 %v797, %v796
        %v805 = vpack.c.bf16 %v799, %v798
        %v806 = vpack.c.bf16 %v801, %v800
        %v807 = vpack.c.bf16 %v803, %v802
        %v808 = vld [vmem:[%s6] sm:$0xf]
        %v809 = vld [vmem:[%s6 + $0x4] sm:$0xf]
        %v810 = vld [vmem:[%s584] sm:$0xf]
        %v811 = vld [vmem:[%s584 + $0x4] sm:$0xf]
        %v812 = vld [vmem:[%s584 + $0x8] sm:$0xf]
        %v813 = vld [vmem:[%s584 + $0xc] sm:$0xf]
        %v814 = vld [vmem:[%s584 + $0x10] sm:$0xf]
        %v815 = vld [vmem:[%s584 + $0x14] sm:$0xf]
        %v816 = vld [vmem:[%s584 + $0x18] sm:$0xf]
        %v817 = vld [vmem:[%s584 + $0x1c] sm:$0xf]
        %v818 = vld [vmem:[%s584 + $0x20] sm:$0xf]
        %v819 = vld [vmem:[%s584 + $0x24] sm:$0xf]
        %v820 = vld [vmem:[%s584 + $0x28] sm:$0xf]
        %v821 = vld [vmem:[%s584 + $0x2c] sm:$0xf]
        %v822 = vld [vmem:[%s584 + $0x30] sm:$0xf]
        %v823 = vld [vmem:[%s584 + $0x34] sm:$0xf]
        %v824 = vld [vmem:[%s584 + $0x38] sm:$0xf]
        %v825 = vld [vmem:[%s584 + $0x3c] sm:$0xf]
        %v826 = vld [vmem:[%s584 + $0x40] sm:$0xf]
        %v827 = vld [vmem:[%s584 + $0x44] sm:$0xf]
        %v828 = vld [vmem:[%s584 + $0x48] sm:$0xf]
        %v829 = vld [vmem:[%s584 + $0x4c] sm:$0xf]
        %v830 = vld [vmem:[%s584 + $0x50] sm:$0xf]
        %v831 = vld [vmem:[%s584 + $0x54] sm:$0xf]
        %v832 = vld [vmem:[%s584 + $0x58] sm:$0xf]
        %v833 = vld [vmem:[%s584 + $0x5c] sm:$0xf]
        %v834 = vld [vmem:[%s584 + $0x60] sm:$0xf]
        %v835 = vld [vmem:[%s584 + $0x64] sm:$0xf]
        %v836 = vld [vmem:[%s584 + $0x68] sm:$0xf]
        %v837 = vld [vmem:[%s584 + $0x6c] sm:$0xf]
        %v838 = vld [vmem:[%s584 + $0x70] sm:$0xf]
        %v839 = vld [vmem:[%s584 + $0x74] sm:$0xf]
        %v840 = vld [vmem:[%s584 + $0x78] sm:$0xf]
        %v841 = vld [vmem:[%s584 + $0x7c] sm:$0xf]
        %v842 = vld [vmem:[%s584 + $0x80] sm:$0xf]
        %v843 = vld [vmem:[%s584 + $0x84] sm:$0xf]
        %v844 = vld [vmem:[%s584 + $0x88] sm:$0xf]
        %v845 = vld [vmem:[%s584 + $0x8c] sm:$0xf]
        %v846 = vld [vmem:[%s584 + $0x90] sm:$0xf]
        %v847 = vld [vmem:[%s584 + $0x94] sm:$0xf]
        %v848 = vld [vmem:[%s584 + $0x98] sm:$0xf]
        %v849 = vld [vmem:[%s584 + $0x9c] sm:$0xf]
        %v850 = vld [vmem:[%s584 + $0xa0] sm:$0xf]
        %v851 = vld [vmem:[%s584 + $0xa4] sm:$0xf]
        %v852 = vld [vmem:[%s584 + $0xa8] sm:$0xf]
        %v853 = vld [vmem:[%s584 + $0xac] sm:$0xf]
        %v854 = vld [vmem:[%s584 + $0xb0] sm:$0xf]
        %v855 = vld [vmem:[%s584 + $0xb4] sm:$0xf]
        %v856 = vld [vmem:[%s584 + $0xb8] sm:$0xf]
        %v857 = vld [vmem:[%s584 + $0xbc] sm:$0xf]
        %v858 = vld [vmem:[%s584 + $0xc0] sm:$0xf]
        %v859 = vld [vmem:[%s584 + $0xc4] sm:$0xf]
        %v860 = vld [vmem:[%s584 + $0xc8] sm:$0xf]
        %v861 = vld [vmem:[%s584 + $0xcc] sm:$0xf]
        %v862 = vld [vmem:[%s584 + $0xd0] sm:$0xf]
        %v863 = vld [vmem:[%s584 + $0xd4] sm:$0xf]
        %v864 = vld [vmem:[%s584 + $0xd8] sm:$0xf]
        %v865 = vld [vmem:[%s584 + $0xdc] sm:$0xf]
        %v866 = vld [vmem:[%s584 + $0xe0] sm:$0xf]
        %v867 = vld [vmem:[%s584 + $0xe4] sm:$0xf]
        %v868 = vld [vmem:[%s584 + $0xe8] sm:$0xf]
        %v869 = vld [vmem:[%s584 + $0xec] sm:$0xf]
        %v870 = vld [vmem:[%s584 + $0xf0] sm:$0xf]
        %v871 = vld [vmem:[%s584 + $0xf4] sm:$0xf]
        %v872 = vld [vmem:[%s584 + $0xf8] sm:$0xf]
        %v873 = vld [vmem:[%s584 + $0xfc] sm:$0xf]
        %v874 = vld [vmem:[%s584 + $0x100] sm:$0xf]
        %v875 = vld [vmem:[%s584 + $0x104] sm:$0xf]
        %v876 = vld [vmem:[%s584 + $0x108] sm:$0xf]
        %v877 = vld [vmem:[%s584 + $0x10c] sm:$0xf]
        %v878 = vld [vmem:[%s584 + $0x110] sm:$0xf]
        %v879 = vld [vmem:[%s584 + $0x114] sm:$0xf]
        %v880 = vld [vmem:[%s584 + $0x118] sm:$0xf]
        %v881 = vld [vmem:[%s584 + $0x11c] sm:$0xf]
        %v882 = vld [vmem:[%s584 + $0x120] sm:$0xf]
        %v883 = vld [vmem:[%s584 + $0x124] sm:$0xf]
        %v884 = vld [vmem:[%s584 + $0x128] sm:$0xf]
        %v885 = vld [vmem:[%s584 + $0x12c] sm:$0xf]
        %v886 = vld [vmem:[%s584 + $0x130] sm:$0xf]
        %v887 = vld [vmem:[%s584 + $0x134] sm:$0xf]
        %v888 = vld [vmem:[%s584 + $0x138] sm:$0xf]
        %v889 = vld [vmem:[%s584 + $0x13c] sm:$0xf]
        %v890 = vld [vmem:[%s584 + $0x140] sm:$0xf]
        %v891 = vld [vmem:[%s584 + $0x144] sm:$0xf]
        %v892 = vld [vmem:[%s584 + $0x148] sm:$0xf]
        %v893 = vld [vmem:[%s584 + $0x14c] sm:$0xf]
        %v894 = vld [vmem:[%s584 + $0x150] sm:$0xf]
        %v895 = vld [vmem:[%s584 + $0x154] sm:$0xf]
        %v896 = vld [vmem:[%s584 + $0x158] sm:$0xf]
        %v897 = vld [vmem:[%s584 + $0x15c] sm:$0xf]
        %v898 = vld [vmem:[%s584 + $0x160] sm:$0xf]
        %v899 = vld [vmem:[%s584 + $0x164] sm:$0xf]
        %v900 = vld [vmem:[%s584 + $0x168] sm:$0xf]
        %v901 = vld [vmem:[%s584 + $0x16c] sm:$0xf]
        %v902 = vld [vmem:[%s584 + $0x170] sm:$0xf]
        %v903 = vld [vmem:[%s584 + $0x174] sm:$0xf]
        %v904 = vld [vmem:[%s584 + $0x178] sm:$0xf]
        %v905 = vld [vmem:[%s584 + $0x17c] sm:$0xf]
        %v906 = vld [vmem:[%s584 + $0x180] sm:$0xf]
        %v907 = vld [vmem:[%s584 + $0x184] sm:$0xf]
        %v908 = vld [vmem:[%s584 + $0x188] sm:$0xf]
        %v909 = vld [vmem:[%s584 + $0x18c] sm:$0xf]
        %v910 = vld [vmem:[%s584 + $0x190] sm:$0xf]
        %v911 = vld [vmem:[%s584 + $0x194] sm:$0xf]
        %v912 = vld [vmem:[%s584 + $0x198] sm:$0xf]
        %v913 = vld [vmem:[%s584 + $0x19c] sm:$0xf]
        %v914 = vld [vmem:[%s584 + $0x1a0] sm:$0xf]
        %v915 = vld [vmem:[%s584 + $0x1a4] sm:$0xf]
        %v916 = vld [vmem:[%s584 + $0x1a8] sm:$0xf]
        %v917 = vld [vmem:[%s584 + $0x1ac] sm:$0xf]
        %v918 = vld [vmem:[%s584 + $0x1b0] sm:$0xf]
        %v919 = vld [vmem:[%s584 + $0x1b4] sm:$0xf]
        %v920 = vld [vmem:[%s584 + $0x1b8] sm:$0xf]
        %v921 = vld [vmem:[%s584 + $0x1bc] sm:$0xf]
        %v922 = vld [vmem:[%s584 + $0x1c0] sm:$0xf]
        %v923 = vld [vmem:[%s584 + $0x1c4] sm:$0xf]
        %v924 = vld [vmem:[%s584 + $0x1c8] sm:$0xf]
        %v925 = vld [vmem:[%s584 + $0x1cc] sm:$0xf]
        %v926 = vld [vmem:[%s584 + $0x1d0] sm:$0xf]
        %v927 = vld [vmem:[%s584 + $0x1d4] sm:$0xf]
        %v928 = vld [vmem:[%s584 + $0x1d8] sm:$0xf]
        %v929 = vld [vmem:[%s584 + $0x1dc] sm:$0xf]
        %v930 = vld [vmem:[%s584 + $0x1e0] sm:$0xf]
        %v931 = vld [vmem:[%s584 + $0x1e4] sm:$0xf]
        %v932 = vld [vmem:[%s584 + $0x1e8] sm:$0xf]
        %v933 = vld [vmem:[%s584 + $0x1ec] sm:$0xf]
        %v934 = vld [vmem:[%s584 + $0x1f0] sm:$0xf]
        %v935 = vld [vmem:[%s584 + $0x1f4] sm:$0xf]
        %v936 = vld [vmem:[%s584 + $0x1f8] sm:$0xf]
        %v937 = vld [vmem:[%s584 + $0x1fc] sm:$0xf]
        %v938 = vld [vmem:[%s4] sm:$0xf]
        %v939 = vld [vmem:[%s4 + $0x4] sm:$0xf]
        %v940 = vld [vmem:[%s4 + $0x8] sm:$0xf]
        %v941 = vld [vmem:[%s4 + $0xc] sm:$0xf]
        %v942 = vld [vmem:[%s4 + $0x10] sm:$0xf]
        %v943 = vld [vmem:[%s4 + $0x14] sm:$0xf]
        %v944 = vld [vmem:[%s4 + $0x18] sm:$0xf]
        %v945 = vld [vmem:[%s4 + $0x1c] sm:$0xf]
        %v946 = vld [vmem:[%s4 + $0x20] sm:$0xf]
        %v947 = vld [vmem:[%s4 + $0x24] sm:$0xf]
        %v948 = vld [vmem:[%s4 + $0x28] sm:$0xf]
        %v949 = vld [vmem:[%s4 + $0x2c] sm:$0xf]
        %v950 = vld [vmem:[%s4 + $0x30] sm:$0xf]
        %v951 = vld [vmem:[%s4 + $0x34] sm:$0xf]
        %v952 = vld [vmem:[%s4 + $0x38] sm:$0xf]
        %v953 = vld [vmem:[%s4 + $0x3c] sm:$0xf]
        %v954 = vld [vmem:[#allocation10] sm:$0x1]
        %v956 = vperm.slane %v954, 0
        %v1086 = vunpack.c.l.b16 %v810
        %v1087 = vunpack.c.l.b16 %v811
        %v1088 = vunpack.c.l.b16 %v812
        %v1089 = vunpack.c.l.b16 %v813
        %v1090 = vunpack.c.l.b16 %v814
        %v1091 = vunpack.c.l.b16 %v815
        %v1092 = vunpack.c.l.b16 %v816
        %v1093 = vunpack.c.l.b16 %v817
        %v1094 = vunpack.c.l.b16 %v818
        %v1095 = vunpack.c.l.b16 %v819
        %v1096 = vunpack.c.l.b16 %v820
        %v1097 = vunpack.c.l.b16 %v821
        %v1098 = vunpack.c.l.b16 %v822
        %v1099 = vunpack.c.l.b16 %v823
        %v1100 = vunpack.c.l.b16 %v824
        %v1101 = vunpack.c.l.b16 %v825
        %v1102 = vunpack.c.l.b16 %v826
        %v1103 = vunpack.c.l.b16 %v827
        %v1104 = vunpack.c.l.b16 %v828
        %v1105 = vunpack.c.l.b16 %v829
        %v1106 = vunpack.c.l.b16 %v830
        %v1107 = vunpack.c.l.b16 %v831
        %v1108 = vunpack.c.l.b16 %v832
        %v1109 = vunpack.c.l.b16 %v833
        %v1110 = vunpack.c.l.b16 %v834
        %v1111 = vunpack.c.l.b16 %v835
        %v1112 = vunpack.c.l.b16 %v836
        %v1113 = vunpack.c.l.b16 %v837
        %v1114 = vunpack.c.l.b16 %v838
        %v1115 = vunpack.c.l.b16 %v839
        %v1116 = vunpack.c.l.b16 %v840
        %v1117 = vunpack.c.l.b16 %v841
        %v1118 = vunpack.c.l.b16 %v842
        %v1119 = vunpack.c.l.b16 %v843
        %v1120 = vunpack.c.l.b16 %v844
        %v1121 = vunpack.c.l.b16 %v845
        %v1122 = vunpack.c.l.b16 %v846
        %v1123 = vunpack.c.l.b16 %v847
        %v1124 = vunpack.c.l.b16 %v848
        %v1125 = vunpack.c.l.b16 %v849
        %v1126 = vunpack.c.l.b16 %v850
        %v1127 = vunpack.c.l.b16 %v851
        %v1128 = vunpack.c.l.b16 %v852
        %v1129 = vunpack.c.l.b16 %v853
        %v1130 = vunpack.c.l.b16 %v854
        %v1131 = vunpack.c.l.b16 %v855
        %v1132 = vunpack.c.l.b16 %v856
        %v1133 = vunpack.c.l.b16 %v857
        %v1134 = vunpack.c.l.b16 %v858
        %v1135 = vunpack.c.l.b16 %v859
        %v1136 = vunpack.c.l.b16 %v860
        %v1137 = vunpack.c.l.b16 %v861
        %v1138 = vunpack.c.l.b16 %v862
        %v1139 = vunpack.c.l.b16 %v863
        %v1140 = vunpack.c.l.b16 %v864
        %v1141 = vunpack.c.l.b16 %v865
        %v1142 = vunpack.c.l.b16 %v866
        %v1143 = vunpack.c.l.b16 %v867
        %v1144 = vunpack.c.l.b16 %v868
        %v1145 = vunpack.c.l.b16 %v869
        %v1146 = vunpack.c.l.b16 %v870
        %v1147 = vunpack.c.l.b16 %v871
        %v1148 = vunpack.c.l.b16 %v872
        %v1149 = vunpack.c.l.b16 %v873
        %v1150 = vunpack.c.l.b16 %v874
        %v1151 = vunpack.c.l.b16 %v875
        %v1152 = vunpack.c.l.b16 %v876
        %v1153 = vunpack.c.l.b16 %v877
        %v1154 = vunpack.c.l.b16 %v878
        %v1155 = vunpack.c.l.b16 %v879
        %v1156 = vunpack.c.l.b16 %v880
        %v1157 = vunpack.c.l.b16 %v881
        %v1158 = vunpack.c.l.b16 %v882
        %v1159 = vunpack.c.l.b16 %v883
        %v1160 = vunpack.c.l.b16 %v884
        %v1161 = vunpack.c.l.b16 %v885
        %v1162 = vunpack.c.l.b16 %v886
        %v1163 = vunpack.c.l.b16 %v887
        %v1164 = vunpack.c.l.b16 %v888
        %v1165 = vunpack.c.l.b16 %v889
        %v1166 = vunpack.c.l.b16 %v890
        %v1167 = vunpack.c.l.b16 %v891
        %v1168 = vunpack.c.l.b16 %v892
        %v1169 = vunpack.c.l.b16 %v893
        %v1170 = vunpack.c.l.b16 %v894
        %v1171 = vunpack.c.l.b16 %v895
        %v1172 = vunpack.c.l.b16 %v896
        %v1173 = vunpack.c.l.b16 %v897
        %v1174 = vunpack.c.l.b16 %v898
        %v1175 = vunpack.c.l.b16 %v899
        %v1176 = vunpack.c.l.b16 %v900
        %v1177 = vunpack.c.l.b16 %v901
        %v1178 = vunpack.c.l.b16 %v902
        %v1179 = vunpack.c.l.b16 %v903
        %v1180 = vunpack.c.l.b16 %v904
        %v1181 = vunpack.c.l.b16 %v905
        %v1182 = vunpack.c.l.b16 %v906
        %v1183 = vunpack.c.l.b16 %v907
        %v1184 = vunpack.c.l.b16 %v908
        %v1185 = vunpack.c.l.b16 %v909
        %v1186 = vunpack.c.l.b16 %v910
        %v1187 = vunpack.c.l.b16 %v911
        %v1188 = vunpack.c.l.b16 %v912
        %v1189 = vunpack.c.l.b16 %v913
        %v1190 = vunpack.c.l.b16 %v914
        %v1191 = vunpack.c.l.b16 %v915
        %v1192 = vunpack.c.l.b16 %v916
        %v1193 = vunpack.c.l.b16 %v917
        %v1194 = vunpack.c.l.b16 %v918
        %v1195 = vunpack.c.l.b16 %v919
        %v1196 = vunpack.c.l.b16 %v920
        %v1197 = vunpack.c.l.b16 %v921
        %v1198 = vunpack.c.l.b16 %v922
        %v1199 = vunpack.c.l.b16 %v923
        %v1200 = vunpack.c.l.b16 %v924
        %v1201 = vunpack.c.l.b16 %v925
        %v1202 = vunpack.c.l.b16 %v926
        %v1203 = vunpack.c.l.b16 %v927
        %v1204 = vunpack.c.l.b16 %v928
        %v1205 = vunpack.c.l.b16 %v929
        %v1206 = vunpack.c.l.b16 %v930
        %v1207 = vunpack.c.l.b16 %v931
        %v1208 = vunpack.c.l.b16 %v932
        %v1209 = vunpack.c.l.b16 %v933
        %v1210 = vunpack.c.l.b16 %v934
        %v1211 = vunpack.c.l.b16 %v935
        %v1212 = vunpack.c.l.b16 %v936
        %v1213 = vunpack.c.l.b16 %v937
        %v1214 = vpack.c.b16 %v1087, %v1086
        %v1215 = vpack.c.b16 %v1089, %v1088
        %v1216 = vpack.c.b16 %v1091, %v1090
        %v1217 = vpack.c.b16 %v1093, %v1092
        %v1218 = vpack.c.b16 %v1095, %v1094
        %v1219 = vpack.c.b16 %v1097, %v1096
        %v1220 = vpack.c.b16 %v1099, %v1098
        %v1221 = vpack.c.b16 %v1101, %v1100
        %v1222 = vpack.c.b16 %v1103, %v1102
        %v1223 = vpack.c.b16 %v1105, %v1104
        %v1224 = vpack.c.b16 %v1107, %v1106
        %v1225 = vpack.c.b16 %v1109, %v1108
        %v1226 = vpack.c.b16 %v1111, %v1110
        %v1227 = vpack.c.b16 %v1113, %v1112
        %v1228 = vpack.c.b16 %v1115, %v1114
        %v1229 = vpack.c.b16 %v1117, %v1116
        %v1230 = vpack.c.b16 %v1119, %v1118
        %v1231 = vpack.c.b16 %v1121, %v1120
        %v1232 = vpack.c.b16 %v1123, %v1122
        %v1233 = vpack.c.b16 %v1125, %v1124
        %v1234 = vpack.c.b16 %v1127, %v1126
        %v1235 = vpack.c.b16 %v1129, %v1128
        %v1236 = vpack.c.b16 %v1131, %v1130
        %v1237 = vpack.c.b16 %v1133, %v1132
        %v1238 = vpack.c.b16 %v1135, %v1134
        %v1239 = vpack.c.b16 %v1137, %v1136
        %v1240 = vpack.c.b16 %v1139, %v1138
        %v1241 = vpack.c.b16 %v1141, %v1140
        %v1242 = vpack.c.b16 %v1143, %v1142
        %v1243 = vpack.c.b16 %v1145, %v1144
        %v1244 = vpack.c.b16 %v1147, %v1146
        %v1245 = vpack.c.b16 %v1149, %v1148
        %v1246 = vpack.c.b16 %v1151, %v1150
        %v1247 = vpack.c.b16 %v1153, %v1152
        %v1248 = vpack.c.b16 %v1155, %v1154
        %v1249 = vpack.c.b16 %v1157, %v1156
        %v1250 = vpack.c.b16 %v1159, %v1158
        %v1251 = vpack.c.b16 %v1161, %v1160
        %v1252 = vpack.c.b16 %v1163, %v1162
        %v1253 = vpack.c.b16 %v1165, %v1164
        %v1254 = vpack.c.b16 %v1167, %v1166
        %v1255 = vpack.c.b16 %v1169, %v1168
        %v1256 = vpack.c.b16 %v1171, %v1170
        %v1257 = vpack.c.b16 %v1173, %v1172
        %v1258 = vpack.c.b16 %v1175, %v1174
        %v1259 = vpack.c.b16 %v1177, %v1176
        %v1260 = vpack.c.b16 %v1179, %v1178
        %v1261 = vpack.c.b16 %v1181, %v1180
        %v1262 = vpack.c.b16 %v1183, %v1182
        %v1263 = vpack.c.b16 %v1185, %v1184
        %v1264 = vpack.c.b16 %v1187, %v1186
        %v1265 = vpack.c.b16 %v1189, %v1188
        %v1266 = vpack.c.b16 %v1191, %v1190
        %v1267 = vpack.c.b16 %v1193, %v1192
        %v1268 = vpack.c.b16 %v1195, %v1194
        %v1269 = vpack.c.b16 %v1197, %v1196
        %v1270 = vpack.c.b16 %v1199, %v1198
        %v1271 = vpack.c.b16 %v1201, %v1200
        %v1272 = vpack.c.b16 %v1203, %v1202
        %v1273 = vpack.c.b16 %v1205, %v1204
        %v1274 = vpack.c.b16 %v1207, %v1206
        %v1275 = vpack.c.b16 %v1209, %v1208
        %v1276 = vpack.c.b16 %v1211, %v1210
        %v1277 = vpack.c.b16 %v1213, %v1212
        %v1358 = vunpack.c.l.b16 %v938
        %v1359 = vunpack.c.l.b16 %v939
        %v1360 = vunpack.c.l.b16 %v940
        %v1361 = vunpack.c.l.b16 %v941
        %v1362 = vunpack.c.l.b16 %v942
        %v1363 = vunpack.c.l.b16 %v943
        %v1364 = vunpack.c.l.b16 %v944
        %v1365 = vunpack.c.l.b16 %v945
        %v1366 = vunpack.c.l.b16 %v946
        %v1367 = vunpack.c.l.b16 %v947
        %v1368 = vunpack.c.l.b16 %v948
        %v1369 = vunpack.c.l.b16 %v949
        %v1370 = vunpack.c.l.b16 %v950
        %v1371 = vunpack.c.l.b16 %v951
        %v1372 = vunpack.c.l.b16 %v952
        %v1373 = vunpack.c.l.b16 %v953
        %v1374 = vpack.c.b16 %v1359, %v1358
        %v1375 = vpack.c.b16 %v1361, %v1360
        %v1376 = vpack.c.b16 %v1363, %v1362
        %v1377 = vpack.c.b16 %v1365, %v1364
        %v1378 = vpack.c.b16 %v1367, %v1366
        %v1379 = vpack.c.b16 %v1369, %v1368
        %v1380 = vpack.c.b16 %v1371, %v1370
        %v1381 = vpack.c.b16 %v1373, %v1372
        %1390 = vmatpush.bf16.msra.mxu0 %v1381
        %1391 = vmatpush.bf16.msra.mxu0 %v1380
        %1392 = vmatpush.bf16.msra.mxu0 %v1379
        %1393 = vmatpush.bf16.msra.mxu0 %v1378
        %1394 = vmatpush.bf16.msra.mxu0 %v1377
        %1395 = vmatpush.bf16.msra.mxu0 %v1376
        %1396 = vmatpush.bf16.msra.mxu0 %v1375
        %1397 = vmatpush.bf16.msra.mxu0 %v1374
        %1398 = vmatmul.bf16.gmra.mxu0 %v1214
        %v1399 = vpop.f32.mrf.mxu0
        %v1400 = vadd.f32 %v956, %v1399
        %v1401 = vpop.f32.mrf.mxu0
        %v1402 = vadd.f32 %v956, %v1401
        %1403 = vmatmul.bf16.gmra.mxu0 %v1215
        %v1404 = vpop.f32.mrf.mxu0
        %v1405 = vadd.f32 %v956, %v1404
        %v1406 = vpop.f32.mrf.mxu0
        %v1407 = vadd.f32 %v956, %v1406
        %1408 = vmatmul.bf16.gmra.mxu0 %v1216
        %v1409 = vpop.f32.mrf.mxu0
        %v1410 = vadd.f32 %v956, %v1409
        %v1411 = vpop.f32.mrf.mxu0
        %v1412 = vadd.f32 %v956, %v1411
        %1413 = vmatmul.bf16.gmra.mxu0 %v1217
        %v1414 = vpop.f32.mrf.mxu0
        %v1415 = vadd.f32 %v956, %v1414
        %v1416 = vpop.f32.mrf.mxu0
        %v1417 = vadd.f32 %v956, %v1416
        %1418 = vmatmul.bf16.gmra.mxu0 %v1218
        %v1419 = vpop.f32.mrf.mxu0
        %v1420 = vadd.f32 %v956, %v1419
        %v1421 = vpop.f32.mrf.mxu0
        %v1422 = vadd.f32 %v956, %v1421
        %1423 = vmatmul.bf16.gmra.mxu0 %v1219
        %v1424 = vpop.f32.mrf.mxu0
        %v1425 = vadd.f32 %v956, %v1424
        %v1426 = vpop.f32.mrf.mxu0
        %v1427 = vadd.f32 %v956, %v1426
        %1428 = vmatmul.bf16.gmra.mxu0 %v1220
        %v1429 = vpop.f32.mrf.mxu0
        %v1430 = vadd.f32 %v956, %v1429
        %v1431 = vpop.f32.mrf.mxu0
        %v1432 = vadd.f32 %v956, %v1431
        %1433 = vmatmul.bf16.gmra.mxu0 %v1221
        %v1434 = vpop.f32.mrf.mxu0
        %v1435 = vadd.f32 %v956, %v1434
        %v1436 = vpop.f32.mrf.mxu0
        %v1437 = vadd.f32 %v956, %v1436
        %1438 = vmatmul.bf16.gmra.mxu0 %v1222
        %v1439 = vpop.f32.mrf.mxu0
        %v1440 = vadd.f32 %v956, %v1439
        %v1441 = vpop.f32.mrf.mxu0
        %v1442 = vadd.f32 %v956, %v1441
        %1443 = vmatmul.bf16.gmra.mxu0 %v1223
        %v1444 = vpop.f32.mrf.mxu0
        %v1445 = vadd.f32 %v956, %v1444
        %v1446 = vpop.f32.mrf.mxu0
        %v1447 = vadd.f32 %v956, %v1446
        %1448 = vmatmul.bf16.gmra.mxu0 %v1224
        %v1449 = vpop.f32.mrf.mxu0
        %v1450 = vadd.f32 %v956, %v1449
        %v1451 = vpop.f32.mrf.mxu0
        %v1452 = vadd.f32 %v956, %v1451
        %1453 = vmatmul.bf16.gmra.mxu0 %v1225
        %v1454 = vpop.f32.mrf.mxu0
        %v1455 = vadd.f32 %v956, %v1454
        %v1456 = vpop.f32.mrf.mxu0
        %v1457 = vadd.f32 %v956, %v1456
        %1458 = vmatmul.bf16.gmra.mxu0 %v1226
        %v1459 = vpop.f32.mrf.mxu0
        %v1460 = vadd.f32 %v956, %v1459
        %v1461 = vpop.f32.mrf.mxu0
        %v1462 = vadd.f32 %v956, %v1461
        %1463 = vmatmul.bf16.gmra.mxu0 %v1227
        %v1464 = vpop.f32.mrf.mxu0
        %v1465 = vadd.f32 %v956, %v1464
        %v1466 = vpop.f32.mrf.mxu0
        %v1467 = vadd.f32 %v956, %v1466
        %1468 = vmatmul.bf16.gmra.mxu0 %v1228
        %v1469 = vpop.f32.mrf.mxu0
        %v1470 = vadd.f32 %v956, %v1469
        %v1471 = vpop.f32.mrf.mxu0
        %v1472 = vadd.f32 %v956, %v1471
        %1473 = vmatmul.bf16.gmra.mxu0 %v1229
        %v1474 = vpop.f32.mrf.mxu0
        %v1475 = vadd.f32 %v956, %v1474
        %v1476 = vpop.f32.mrf.mxu0
        %v1477 = vadd.f32 %v956, %v1476
        %1478 = vmatmul.bf16.gmra.mxu0 %v1230
        %v1479 = vpop.f32.mrf.mxu0
        %v1480 = vadd.f32 %v956, %v1479
        %v1481 = vpop.f32.mrf.mxu0
        %v1482 = vadd.f32 %v956, %v1481
        %1483 = vmatmul.bf16.gmra.mxu0 %v1231
        %v1484 = vpop.f32.mrf.mxu0
        %v1485 = vadd.f32 %v956, %v1484
        %v1486 = vpop.f32.mrf.mxu0
        %v1487 = vadd.f32 %v956, %v1486
        %1488 = vmatmul.bf16.gmra.mxu0 %v1232
        %v1489 = vpop.f32.mrf.mxu0
        %v1490 = vadd.f32 %v956, %v1489
        %v1491 = vpop.f32.mrf.mxu0
        %v1492 = vadd.f32 %v956, %v1491
        %1493 = vmatmul.bf16.gmra.mxu0 %v1233
        %v1494 = vpop.f32.mrf.mxu0
        %v1495 = vadd.f32 %v956, %v1494
        %v1496 = vpop.f32.mrf.mxu0
        %v1497 = vadd.f32 %v956, %v1496
        %1498 = vmatmul.bf16.gmra.mxu0 %v1234
        %v1499 = vpop.f32.mrf.mxu0
        %v1500 = vadd.f32 %v956, %v1499
        %v1501 = vpop.f32.mrf.mxu0
        %v1502 = vadd.f32 %v956, %v1501
        %1503 = vmatmul.bf16.gmra.mxu0 %v1235
        %v1504 = vpop.f32.mrf.mxu0
        %v1505 = vadd.f32 %v956, %v1504
        %v1506 = vpop.f32.mrf.mxu0
        %v1507 = vadd.f32 %v956, %v1506
        %1508 = vmatmul.bf16.gmra.mxu0 %v1236
        %v1509 = vpop.f32.mrf.mxu0
        %v1510 = vadd.f32 %v956, %v1509
        %v1511 = vpop.f32.mrf.mxu0
        %v1512 = vadd.f32 %v956, %v1511
        %1513 = vmatmul.bf16.gmra.mxu0 %v1237
        %v1514 = vpop.f32.mrf.mxu0
        %v1515 = vadd.f32 %v956, %v1514
        %v1516 = vpop.f32.mrf.mxu0
        %v1517 = vadd.f32 %v956, %v1516
        %1518 = vmatmul.bf16.gmra.mxu0 %v1238
        %v1519 = vpop.f32.mrf.mxu0
        %v1520 = vadd.f32 %v956, %v1519
        %v1521 = vpop.f32.mrf.mxu0
        %v1522 = vadd.f32 %v956, %v1521
        %1523 = vmatmul.bf16.gmra.mxu0 %v1239
        %v1524 = vpop.f32.mrf.mxu0
        %v1525 = vadd.f32 %v956, %v1524
        %v1526 = vpop.f32.mrf.mxu0
        %v1527 = vadd.f32 %v956, %v1526
        %1528 = vmatmul.bf16.gmra.mxu0 %v1240
        %v1529 = vpop.f32.mrf.mxu0
        %v1530 = vadd.f32 %v956, %v1529
        %v1531 = vpop.f32.mrf.mxu0
        %v1532 = vadd.f32 %v956, %v1531
        %1533 = vmatmul.bf16.gmra.mxu0 %v1241
        %v1534 = vpop.f32.mrf.mxu0
        %v1535 = vadd.f32 %v956, %v1534
        %v1536 = vpop.f32.mrf.mxu0
        %v1537 = vadd.f32 %v956, %v1536
        %1538 = vmatmul.bf16.gmra.mxu0 %v1242
        %v1539 = vpop.f32.mrf.mxu0
        %v1540 = vadd.f32 %v956, %v1539
        %v1541 = vpop.f32.mrf.mxu0
        %v1542 = vadd.f32 %v956, %v1541
        %1543 = vmatmul.bf16.gmra.mxu0 %v1243
        %v1544 = vpop.f32.mrf.mxu0
        %v1545 = vadd.f32 %v956, %v1544
        %v1546 = vpop.f32.mrf.mxu0
        %v1547 = vadd.f32 %v956, %v1546
        %1548 = vmatmul.bf16.gmra.mxu0 %v1244
        %v1549 = vpop.f32.mrf.mxu0
        %v1550 = vadd.f32 %v956, %v1549
        %v1551 = vpop.f32.mrf.mxu0
        %v1552 = vadd.f32 %v956, %v1551
        %1553 = vmatmul.bf16.gmra.mxu0 %v1245
        %v1554 = vpop.f32.mrf.mxu0
        %v1555 = vadd.f32 %v956, %v1554
        %v1556 = vpop.f32.mrf.mxu0
        %v1557 = vadd.f32 %v956, %v1556
        %1558 = vmatmul.bf16.gmra.mxu0 %v1246
        %v1559 = vpop.f32.mrf.mxu0
        %v1560 = vadd.f32 %v956, %v1559
        %v1561 = vpop.f32.mrf.mxu0
        %v1562 = vadd.f32 %v956, %v1561
        %1563 = vmatmul.bf16.gmra.mxu0 %v1247
        %v1564 = vpop.f32.mrf.mxu0
        %v1565 = vadd.f32 %v956, %v1564
        %v1566 = vpop.f32.mrf.mxu0
        %v1567 = vadd.f32 %v956, %v1566
        %1568 = vmatmul.bf16.gmra.mxu0 %v1248
        %v1569 = vpop.f32.mrf.mxu0
        %v1570 = vadd.f32 %v956, %v1569
        %v1571 = vpop.f32.mrf.mxu0
        %v1572 = vadd.f32 %v956, %v1571
        %1573 = vmatmul.bf16.gmra.mxu0 %v1249
        %v1574 = vpop.f32.mrf.mxu0
        %v1575 = vadd.f32 %v956, %v1574
        %v1576 = vpop.f32.mrf.mxu0
        %v1577 = vadd.f32 %v956, %v1576
        %1578 = vmatmul.bf16.gmra.mxu0 %v1250
        %v1579 = vpop.f32.mrf.mxu0
        %v1580 = vadd.f32 %v956, %v1579
        %v1581 = vpop.f32.mrf.mxu0
        %v1582 = vadd.f32 %v956, %v1581
        %1583 = vmatmul.bf16.gmra.mxu0 %v1251
        %v1584 = vpop.f32.mrf.mxu0
        %v1585 = vadd.f32 %v956, %v1584
        %v1586 = vpop.f32.mrf.mxu0
        %v1587 = vadd.f32 %v956, %v1586
        %1588 = vmatmul.bf16.gmra.mxu0 %v1252
        %v1589 = vpop.f32.mrf.mxu0
        %v1590 = vadd.f32 %v956, %v1589
        %v1591 = vpop.f32.mrf.mxu0
        %v1592 = vadd.f32 %v956, %v1591
        %1593 = vmatmul.bf16.gmra.mxu0 %v1253
        %v1594 = vpop.f32.mrf.mxu0
        %v1595 = vadd.f32 %v956, %v1594
        %v1596 = vpop.f32.mrf.mxu0
        %v1597 = vadd.f32 %v956, %v1596
        %1598 = vmatmul.bf16.gmra.mxu0 %v1254
        %v1599 = vpop.f32.mrf.mxu0
        %v1600 = vadd.f32 %v956, %v1599
        %v1601 = vpop.f32.mrf.mxu0
        %v1602 = vadd.f32 %v956, %v1601
        %1603 = vmatmul.bf16.gmra.mxu0 %v1255
        %v1604 = vpop.f32.mrf.mxu0
        %v1605 = vadd.f32 %v956, %v1604
        %v1606 = vpop.f32.mrf.mxu0
        %v1607 = vadd.f32 %v956, %v1606
        %1608 = vmatmul.bf16.gmra.mxu0 %v1256
        %v1609 = vpop.f32.mrf.mxu0
        %v1610 = vadd.f32 %v956, %v1609
        %v1611 = vpop.f32.mrf.mxu0
        %v1612 = vadd.f32 %v956, %v1611
        %1613 = vmatmul.bf16.gmra.mxu0 %v1257
        %v1614 = vpop.f32.mrf.mxu0
        %v1615 = vadd.f32 %v956, %v1614
        %v1616 = vpop.f32.mrf.mxu0
        %v1617 = vadd.f32 %v956, %v1616
        %1618 = vmatmul.bf16.gmra.mxu0 %v1258
        %v1619 = vpop.f32.mrf.mxu0
        %v1620 = vadd.f32 %v956, %v1619
        %v1621 = vpop.f32.mrf.mxu0
        %v1622 = vadd.f32 %v956, %v1621
        %1623 = vmatmul.bf16.gmra.mxu0 %v1259
        %v1624 = vpop.f32.mrf.mxu0
        %v1625 = vadd.f32 %v956, %v1624
        %v1626 = vpop.f32.mrf.mxu0
        %v1627 = vadd.f32 %v956, %v1626
        %1628 = vmatmul.bf16.gmra.mxu0 %v1260
        %v1629 = vpop.f32.mrf.mxu0
        %v1630 = vadd.f32 %v956, %v1629
        %v1631 = vpop.f32.mrf.mxu0
        %v1632 = vadd.f32 %v956, %v1631
        %1633 = vmatmul.bf16.gmra.mxu0 %v1261
        %v1634 = vpop.f32.mrf.mxu0
        %v1635 = vadd.f32 %v956, %v1634
        %v1636 = vpop.f32.mrf.mxu0
        %v1637 = vadd.f32 %v956, %v1636
        %1638 = vmatmul.bf16.gmra.mxu0 %v1262
        %v1639 = vpop.f32.mrf.mxu0
        %v1640 = vadd.f32 %v956, %v1639
        %v1641 = vpop.f32.mrf.mxu0
        %v1642 = vadd.f32 %v956, %v1641
        %1643 = vmatmul.bf16.gmra.mxu0 %v1263
        %v1644 = vpop.f32.mrf.mxu0
        %v1645 = vadd.f32 %v956, %v1644
        %v1646 = vpop.f32.mrf.mxu0
        %v1647 = vadd.f32 %v956, %v1646
        %1648 = vmatmul.bf16.gmra.mxu0 %v1264
        %v1649 = vpop.f32.mrf.mxu0
        %v1650 = vadd.f32 %v956, %v1649
        %v1651 = vpop.f32.mrf.mxu0
        %v1652 = vadd.f32 %v956, %v1651
        %1653 = vmatmul.bf16.gmra.mxu0 %v1265
        %v1654 = vpop.f32.mrf.mxu0
        %v1655 = vadd.f32 %v956, %v1654
        %v1656 = vpop.f32.mrf.mxu0
        %v1657 = vadd.f32 %v956, %v1656
        %1658 = vmatmul.bf16.gmra.mxu0 %v1266
        %v1659 = vpop.f32.mrf.mxu0
        %v1660 = vadd.f32 %v956, %v1659
        %v1661 = vpop.f32.mrf.mxu0
        %v1662 = vadd.f32 %v956, %v1661
        %1663 = vmatmul.bf16.gmra.mxu0 %v1267
        %v1664 = vpop.f32.mrf.mxu0
        %v1665 = vadd.f32 %v956, %v1664
        %v1666 = vpop.f32.mrf.mxu0
        %v1667 = vadd.f32 %v956, %v1666
        %1668 = vmatmul.bf16.gmra.mxu0 %v1268
        %v1669 = vpop.f32.mrf.mxu0
        %v1670 = vadd.f32 %v956, %v1669
        %v1671 = vpop.f32.mrf.mxu0
        %v1672 = vadd.f32 %v956, %v1671
        %1673 = vmatmul.bf16.gmra.mxu0 %v1269
        %v1674 = vpop.f32.mrf.mxu0
        %v1675 = vadd.f32 %v956, %v1674
        %v1676 = vpop.f32.mrf.mxu0
        %v1677 = vadd.f32 %v956, %v1676
        %1678 = vmatmul.bf16.gmra.mxu0 %v1270
        %v1679 = vpop.f32.mrf.mxu0
        %v1680 = vadd.f32 %v956, %v1679
        %v1681 = vpop.f32.mrf.mxu0
        %v1682 = vadd.f32 %v956, %v1681
        %1683 = vmatmul.bf16.gmra.mxu0 %v1271
        %v1684 = vpop.f32.mrf.mxu0
        %v1685 = vadd.f32 %v956, %v1684
        %v1686 = vpop.f32.mrf.mxu0
        %v1687 = vadd.f32 %v956, %v1686
        %1688 = vmatmul.bf16.gmra.mxu0 %v1272
        %v1689 = vpop.f32.mrf.mxu0
        %v1690 = vadd.f32 %v956, %v1689
        %v1691 = vpop.f32.mrf.mxu0
        %v1692 = vadd.f32 %v956, %v1691
        %1693 = vmatmul.bf16.gmra.mxu0 %v1273
        %v1694 = vpop.f32.mrf.mxu0
        %v1695 = vadd.f32 %v956, %v1694
        %v1696 = vpop.f32.mrf.mxu0
        %v1697 = vadd.f32 %v956, %v1696
        %1698 = vmatmul.bf16.gmra.mxu0 %v1274
        %v1699 = vpop.f32.mrf.mxu0
        %v1700 = vadd.f32 %v956, %v1699
        %v1701 = vpop.f32.mrf.mxu0
        %v1702 = vadd.f32 %v956, %v1701
        %1703 = vmatmul.bf16.gmra.mxu0 %v1275
        %v1704 = vpop.f32.mrf.mxu0
        %v1705 = vadd.f32 %v956, %v1704
        %v1706 = vpop.f32.mrf.mxu0
        %v1707 = vadd.f32 %v956, %v1706
        %1708 = vmatmul.bf16.gmra.mxu0 %v1276
        %v1709 = vpop.f32.mrf.mxu0
        %v1710 = vadd.f32 %v956, %v1709
        %v1711 = vpop.f32.mrf.mxu0
        %v1712 = vadd.f32 %v956, %v1711
        %1713 = vmatmul.bf16.gmra.mxu0 %v1277
        %v1714 = vpop.f32.mrf.mxu0
        %v1715 = vadd.f32 %v956, %v1714
        %v1716 = vpop.f32.mrf.mxu0
        %v1717 = vadd.f32 %v956, %v1716
        %1718 = vdwg.mxu0
        %v1719 = vmax.f32 %v1400, 0.0
        %v1720 = vmax.f32 %v1402, 0.0
        %v1721 = vmax.f32 %v1405, 0.0
        %v1722 = vmax.f32 %v1407, 0.0
        %v1723 = vmax.f32 %v1410, 0.0
        %v1724 = vmax.f32 %v1412, 0.0
        %v1725 = vmax.f32 %v1415, 0.0
        %v1726 = vmax.f32 %v1417, 0.0
        %v1727 = vmax.f32 %v1420, 0.0
        %v1728 = vmax.f32 %v1422, 0.0
        %v1729 = vmax.f32 %v1425, 0.0
        %v1730 = vmax.f32 %v1427, 0.0
        %v1731 = vmax.f32 %v1430, 0.0
        %v1732 = vmax.f32 %v1432, 0.0
        %v1733 = vmax.f32 %v1435, 0.0
        %v1734 = vmax.f32 %v1437, 0.0
        %v1735 = vmax.f32 %v1440, 0.0
        %v1736 = vmax.f32 %v1442, 0.0
        %v1737 = vmax.f32 %v1445, 0.0
        %v1738 = vmax.f32 %v1447, 0.0
        %v1739 = vmax.f32 %v1450, 0.0
        %v1740 = vmax.f32 %v1452, 0.0
        %v1741 = vmax.f32 %v1455, 0.0
        %v1742 = vmax.f32 %v1457, 0.0
        %v1743 = vmax.f32 %v1460, 0.0
        %v1744 = vmax.f32 %v1462, 0.0
        %v1745 = vmax.f32 %v1465, 0.0
        %v1746 = vmax.f32 %v1467, 0.0
        %v1747 = vmax.f32 %v1470, 0.0
        %v1748 = vmax.f32 %v1472, 0.0
        %v1749 = vmax.f32 %v1475, 0.0
        %v1750 = vmax.f32 %v1477, 0.0
        %v1751 = vmax.f32 %v1480, 0.0
        %v1752 = vmax.f32 %v1482, 0.0
        %v1753 = vmax.f32 %v1485, 0.0
        %v1754 = vmax.f32 %v1487, 0.0
        %v1755 = vmax.f32 %v1490, 0.0
        %v1756 = vmax.f32 %v1492, 0.0
        %v1757 = vmax.f32 %v1495, 0.0
        %v1758 = vmax.f32 %v1497, 0.0
        %v1759 = vmax.f32 %v1500, 0.0
        %v1760 = vmax.f32 %v1502, 0.0
        %v1761 = vmax.f32 %v1505, 0.0
        %v1762 = vmax.f32 %v1507, 0.0
        %v1763 = vmax.f32 %v1510, 0.0
        %v1764 = vmax.f32 %v1512, 0.0
        %v1765 = vmax.f32 %v1515, 0.0
        %v1766 = vmax.f32 %v1517, 0.0
        %v1767 = vmax.f32 %v1520, 0.0
        %v1768 = vmax.f32 %v1522, 0.0
        %v1769 = vmax.f32 %v1525, 0.0
        %v1770 = vmax.f32 %v1527, 0.0
        %v1771 = vmax.f32 %v1530, 0.0
        %v1772 = vmax.f32 %v1532, 0.0
        %v1773 = vmax.f32 %v1535, 0.0
        %v1774 = vmax.f32 %v1537, 0.0
        %v1775 = vmax.f32 %v1540, 0.0
        %v1776 = vmax.f32 %v1542, 0.0
        %v1777 = vmax.f32 %v1545, 0.0
        %v1778 = vmax.f32 %v1547, 0.0
        %v1779 = vmax.f32 %v1550, 0.0
        %v1780 = vmax.f32 %v1552, 0.0
        %v1781 = vmax.f32 %v1555, 0.0
        %v1782 = vmax.f32 %v1557, 0.0
        %v1783 = vmax.f32 %v1560, 0.0
        %v1784 = vmax.f32 %v1562, 0.0
        %v1785 = vmax.f32 %v1565, 0.0
        %v1786 = vmax.f32 %v1567, 0.0
        %v1787 = vmax.f32 %v1570, 0.0
        %v1788 = vmax.f32 %v1572, 0.0
        %v1789 = vmax.f32 %v1575, 0.0
        %v1790 = vmax.f32 %v1577, 0.0
        %v1791 = vmax.f32 %v1580, 0.0
        %v1792 = vmax.f32 %v1582, 0.0
        %v1793 = vmax.f32 %v1585, 0.0
        %v1794 = vmax.f32 %v1587, 0.0
        %v1795 = vmax.f32 %v1590, 0.0
        %v1796 = vmax.f32 %v1592, 0.0
        %v1797 = vmax.f32 %v1595, 0.0
        %v1798 = vmax.f32 %v1597, 0.0
        %v1799 = vmax.f32 %v1600, 0.0
        %v1800 = vmax.f32 %v1602, 0.0
        %v1801 = vmax.f32 %v1605, 0.0
        %v1802 = vmax.f32 %v1607, 0.0
        %v1803 = vmax.f32 %v1610, 0.0
        %v1804 = vmax.f32 %v1612, 0.0
        %v1805 = vmax.f32 %v1615, 0.0
        %v1806 = vmax.f32 %v1617, 0.0
        %v1807 = vmax.f32 %v1620, 0.0
        %v1808 = vmax.f32 %v1622, 0.0
        %v1809 = vmax.f32 %v1625, 0.0
        %v1810 = vmax.f32 %v1627, 0.0
        %v1811 = vmax.f32 %v1630, 0.0
        %v1812 = vmax.f32 %v1632, 0.0
        %v1813 = vmax.f32 %v1635, 0.0
        %v1814 = vmax.f32 %v1637, 0.0
        %v1815 = vmax.f32 %v1640, 0.0
        %v1816 = vmax.f32 %v1642, 0.0
        %v1817 = vmax.f32 %v1645, 0.0
        %v1818 = vmax.f32 %v1647, 0.0
        %v1819 = vmax.f32 %v1650, 0.0
        %v1820 = vmax.f32 %v1652, 0.0
        %v1821 = vmax.f32 %v1655, 0.0
        %v1822 = vmax.f32 %v1657, 0.0
        %v1823 = vmax.f32 %v1660, 0.0
        %v1824 = vmax.f32 %v1662, 0.0
        %v1825 = vmax.f32 %v1665, 0.0
        %v1826 = vmax.f32 %v1667, 0.0
        %v1827 = vmax.f32 %v1670, 0.0
        %v1828 = vmax.f32 %v1672, 0.0
        %v1829 = vmax.f32 %v1675, 0.0
        %v1830 = vmax.f32 %v1677, 0.0
        %v1831 = vmax.f32 %v1680, 0.0
        %v1832 = vmax.f32 %v1682, 0.0
        %v1833 = vmax.f32 %v1685, 0.0
        %v1834 = vmax.f32 %v1687, 0.0
        %v1835 = vmax.f32 %v1690, 0.0
        %v1836 = vmax.f32 %v1692, 0.0
        %v1837 = vmax.f32 %v1695, 0.0
        %v1838 = vmax.f32 %v1697, 0.0
        %v1839 = vmax.f32 %v1700, 0.0
        %v1840 = vmax.f32 %v1702, 0.0
        %v1841 = vmax.f32 %v1705, 0.0
        %v1842 = vmax.f32 %v1707, 0.0
        %v1843 = vmax.f32 %v1710, 0.0
        %v1844 = vmax.f32 %v1712, 0.0
        %v1845 = vmax.f32 %v1715, 0.0
        %v1846 = vmax.f32 %v1717, 0.0
        %v1847 = vpack.c.bf16 %v1719, %v1719
        %v1848 = vpack.c.bf16 %v1720, %v1720
        %v1849 = vpack.c.bf16 %v1721, %v1721
        %v1850 = vpack.c.bf16 %v1722, %v1722
        %v1851 = vpack.c.bf16 %v1723, %v1723
        %v1852 = vpack.c.bf16 %v1724, %v1724
        %v1853 = vpack.c.bf16 %v1725, %v1725
        %v1854 = vpack.c.bf16 %v1726, %v1726
        %v1855 = vpack.c.bf16 %v1727, %v1727
        %v1856 = vpack.c.bf16 %v1728, %v1728
        %v1857 = vpack.c.bf16 %v1729, %v1729
        %v1858 = vpack.c.bf16 %v1730, %v1730
        %v1859 = vpack.c.bf16 %v1731, %v1731
        %v1860 = vpack.c.bf16 %v1732, %v1732
        %v1861 = vpack.c.bf16 %v1733, %v1733
        %v1862 = vpack.c.bf16 %v1734, %v1734
        %v1863 = vpack.c.bf16 %v1735, %v1735
        %v1864 = vpack.c.bf16 %v1736, %v1736
        %v1865 = vpack.c.bf16 %v1737, %v1737
        %v1866 = vpack.c.bf16 %v1738, %v1738
        %v1867 = vpack.c.bf16 %v1739, %v1739
        %v1868 = vpack.c.bf16 %v1740, %v1740
        %v1869 = vpack.c.bf16 %v1741, %v1741
        %v1870 = vpack.c.bf16 %v1742, %v1742
        %v1871 = vpack.c.bf16 %v1743, %v1743
        %v1872 = vpack.c.bf16 %v1744, %v1744
        %v1873 = vpack.c.bf16 %v1745, %v1745
        %v1874 = vpack.c.bf16 %v1746, %v1746
        %v1875 = vpack.c.bf16 %v1747, %v1747
        %v1876 = vpack.c.bf16 %v1748, %v1748
        %v1877 = vpack.c.bf16 %v1749, %v1749
        %v1878 = vpack.c.bf16 %v1750, %v1750
        %v1879 = vpack.c.bf16 %v1751, %v1751
        %v1880 = vpack.c.bf16 %v1752, %v1752
        %v1881 = vpack.c.bf16 %v1753, %v1753
        %v1882 = vpack.c.bf16 %v1754, %v1754
        %v1883 = vpack.c.bf16 %v1755, %v1755
        %v1884 = vpack.c.bf16 %v1756, %v1756
        %v1885 = vpack.c.bf16 %v1757, %v1757
        %v1886 = vpack.c.bf16 %v1758, %v1758
        %v1887 = vpack.c.bf16 %v1759, %v1759
        %v1888 = vpack.c.bf16 %v1760, %v1760
        %v1889 = vpack.c.bf16 %v1761, %v1761
        %v1890 = vpack.c.bf16 %v1762, %v1762
        %v1891 = vpack.c.bf16 %v1763, %v1763
        %v1892 = vpack.c.bf16 %v1764, %v1764
        %v1893 = vpack.c.bf16 %v1765, %v1765
        %v1894 = vpack.c.bf16 %v1766, %v1766
        %v1895 = vpack.c.bf16 %v1767, %v1767
        %v1896 = vpack.c.bf16 %v1768, %v1768
        %v1897 = vpack.c.bf16 %v1769, %v1769
        %v1898 = vpack.c.bf16 %v1770, %v1770
        %v1899 = vpack.c.bf16 %v1771, %v1771
        %v1900 = vpack.c.bf16 %v1772, %v1772
        %v1901 = vpack.c.bf16 %v1773, %v1773
        %v1902 = vpack.c.bf16 %v1774, %v1774
        %v1903 = vpack.c.bf16 %v1775, %v1775
        %v1904 = vpack.c.bf16 %v1776, %v1776
        %v1905 = vpack.c.bf16 %v1777, %v1777
        %v1906 = vpack.c.bf16 %v1778, %v1778
        %v1907 = vpack.c.bf16 %v1779, %v1779
        %v1908 = vpack.c.bf16 %v1780, %v1780
        %v1909 = vpack.c.bf16 %v1781, %v1781
        %v1910 = vpack.c.bf16 %v1782, %v1782
        %v1911 = vpack.c.bf16 %v1783, %v1783
        %v1912 = vpack.c.bf16 %v1784, %v1784
        %v1913 = vpack.c.bf16 %v1785, %v1785
        %v1914 = vpack.c.bf16 %v1786, %v1786
        %v1915 = vpack.c.bf16 %v1787, %v1787
        %v1916 = vpack.c.bf16 %v1788, %v1788
        %v1917 = vpack.c.bf16 %v1789, %v1789
        %v1918 = vpack.c.bf16 %v1790, %v1790
        %v1919 = vpack.c.bf16 %v1791, %v1791
        %v1920 = vpack.c.bf16 %v1792, %v1792
        %v1921 = vpack.c.bf16 %v1793, %v1793
        %v1922 = vpack.c.bf16 %v1794, %v1794
        %v1923 = vpack.c.bf16 %v1795, %v1795
        %v1924 = vpack.c.bf16 %v1796, %v1796
        %v1925 = vpack.c.bf16 %v1797, %v1797
        %v1926 = vpack.c.bf16 %v1798, %v1798
        %v1927 = vpack.c.bf16 %v1799, %v1799
        %v1928 = vpack.c.bf16 %v1800, %v1800
        %v1929 = vpack.c.bf16 %v1801, %v1801
        %v1930 = vpack.c.bf16 %v1802, %v1802
        %v1931 = vpack.c.bf16 %v1803, %v1803
        %v1932 = vpack.c.bf16 %v1804, %v1804
        %v1933 = vpack.c.bf16 %v1805, %v1805
        %v1934 = vpack.c.bf16 %v1806, %v1806
        %v1935 = vpack.c.bf16 %v1807, %v1807
        %v1936 = vpack.c.bf16 %v1808, %v1808
        %v1937 = vpack.c.bf16 %v1809, %v1809
        %v1938 = vpack.c.bf16 %v1810, %v1810
        %v1939 = vpack.c.bf16 %v1811, %v1811
        %v1940 = vpack.c.bf16 %v1812, %v1812
        %v1941 = vpack.c.bf16 %v1813, %v1813
        %v1942 = vpack.c.bf16 %v1814, %v1814
        %v1943 = vpack.c.bf16 %v1815, %v1815
        %v1944 = vpack.c.bf16 %v1816, %v1816
        %v1945 = vpack.c.bf16 %v1817, %v1817
        %v1946 = vpack.c.bf16 %v1818, %v1818
        %v1947 = vpack.c.bf16 %v1819, %v1819
        %v1948 = vpack.c.bf16 %v1820, %v1820
        %v1949 = vpack.c.bf16 %v1821, %v1821
        %v1950 = vpack.c.bf16 %v1822, %v1822
        %v1951 = vpack.c.bf16 %v1823, %v1823
        %v1952 = vpack.c.bf16 %v1824, %v1824
        %v1953 = vpack.c.bf16 %v1825, %v1825
        %v1954 = vpack.c.bf16 %v1826, %v1826
        %v1955 = vpack.c.bf16 %v1827, %v1827
        %v1956 = vpack.c.bf16 %v1828, %v1828
        %v1957 = vpack.c.bf16 %v1829, %v1829
        %v1958 = vpack.c.bf16 %v1830, %v1830
        %v1959 = vpack.c.bf16 %v1831, %v1831
        %v1960 = vpack.c.bf16 %v1832, %v1832
        %v1961 = vpack.c.bf16 %v1833, %v1833
        %v1962 = vpack.c.bf16 %v1834, %v1834
        %v1963 = vpack.c.bf16 %v1835, %v1835
        %v1964 = vpack.c.bf16 %v1836, %v1836
        %v1965 = vpack.c.bf16 %v1837, %v1837
        %v1966 = vpack.c.bf16 %v1838, %v1838
        %v1967 = vpack.c.bf16 %v1839, %v1839
        %v1968 = vpack.c.bf16 %v1840, %v1840
        %v1969 = vpack.c.bf16 %v1841, %v1841
        %v1970 = vpack.c.bf16 %v1842, %v1842
        %v1971 = vpack.c.bf16 %v1843, %v1843
        %v1972 = vpack.c.bf16 %v1844, %v1844
        %v1973 = vpack.c.bf16 %v1845, %v1845
        %v1974 = vpack.c.bf16 %v1846, %v1846
        %v1975 = vld [vmem:[#allocation12] sm:$0xf]
        %v1976 = vld [vmem:[#allocation12 + $0x4] sm:$0xf]
        %v1977 = vld [vmem:[#allocation12 + $0x8] sm:$0xf]
        %v1978 = vld [vmem:[#allocation12 + $0xc] sm:$0xf]
        %v1979 = vld [vmem:[#allocation12 + $0x10] sm:$0xf]
        %v1980 = vld [vmem:[#allocation12 + $0x14] sm:$0xf]
        %v1981 = vld [vmem:[#allocation12 + $0x18] sm:$0xf]
        %v1982 = vld [vmem:[#allocation12 + $0x1c] sm:$0xf]
        %v1983 = vld [vmem:[#allocation12 + $0x20] sm:$0xf]
        %v1984 = vld [vmem:[#allocation12 + $0x24] sm:$0xf]
        %v1985 = vld [vmem:[#allocation12 + $0x28] sm:$0xf]
        %v1986 = vld [vmem:[#allocation12 + $0x2c] sm:$0xf]
        %v1987 = vld [vmem:[#allocation12 + $0x30] sm:$0xf]
        %v1988 = vld [vmem:[#allocation12 + $0x34] sm:$0xf]
        %v1989 = vld [vmem:[#allocation12 + $0x38] sm:$0xf]
        %v1990 = vld [vmem:[#allocation12 + $0x3c] sm:$0xf]
        %v1991 = vld [vmem:[#allocation13] sm:$0x1]
        %v1993 = vperm.slane %v1991, 0
        %v2011 = vunpack.c.l.b16 %v1975
        %v2012 = vunpack.c.l.b16 %v1976
        %v2013 = vunpack.c.l.b16 %v1977
        %v2014 = vunpack.c.l.b16 %v1978
        %v2015 = vunpack.c.l.b16 %v1979
        %v2016 = vunpack.c.l.b16 %v1980
        %v2017 = vunpack.c.l.b16 %v1981
        %v2018 = vunpack.c.l.b16 %v1982
        %v2019 = vunpack.c.l.b16 %v1983
        %v2020 = vunpack.c.l.b16 %v1984
        %v2021 = vunpack.c.l.b16 %v1985
        %v2022 = vunpack.c.l.b16 %v1986
        %v2023 = vunpack.c.l.b16 %v1987
        %v2024 = vunpack.c.l.b16 %v1988
        %v2025 = vunpack.c.l.b16 %v1989
        %v2026 = vunpack.c.l.b16 %v1990
        %v2027 = vpack.c.b16 %v2012, %v2011
        %v2028 = vpack.c.b16 %v2014, %v2013
        %v2029 = vpack.c.b16 %v2016, %v2015
        %v2030 = vpack.c.b16 %v2018, %v2017
        %v2031 = vpack.c.b16 %v2020, %v2019
        %v2032 = vpack.c.b16 %v2022, %v2021
        %v2033 = vpack.c.b16 %v2024, %v2023
        %v2034 = vpack.c.b16 %v2026, %v2025
        %2043 = vmatpush.bf16.msra.mxu0 %v2034
        %2044 = vmatpush.bf16.msra.mxu0 %v2033
        %2045 = vmatpush.bf16.msra.mxu0 %v2032
        %2046 = vmatpush.bf16.msra.mxu0 %v2031
        %2047 = vmatpush.bf16.msra.mxu0 %v2030
        %2048 = vmatpush.bf16.msra.mxu0 %v2029
        %2049 = vmatpush.bf16.msra.mxu0 %v2028
        %2050 = vmatpush.bf16.msra.mxu0 %v2027
        %2051 = vmatmul.bf16.gmra.mxu0 %v1214
        %v2052 = vpop.f32.mrf.mxu0
        %v2053 = vadd.f32 %v1993, %v2052
        %v2054 = vpop.f32.mrf.mxu0
        %v2055 = vadd.f32 %v1993, %v2054
        %2056 = vmatmul.bf16.gmra.mxu0 %v1215
        %v2057 = vpop.f32.mrf.mxu0
        %v2058 = vadd.f32 %v1993, %v2057
        %v2059 = vpop.f32.mrf.mxu0
        %v2060 = vadd.f32 %v1993, %v2059
        %2061 = vmatmul.bf16.gmra.mxu0 %v1216
        %v2062 = vpop.f32.mrf.mxu0
        %v2063 = vadd.f32 %v1993, %v2062
        %v2064 = vpop.f32.mrf.mxu0
        %v2065 = vadd.f32 %v1993, %v2064
        %2066 = vmatmul.bf16.gmra.mxu0 %v1217
        %v2067 = vpop.f32.mrf.mxu0
        %v2068 = vadd.f32 %v1993, %v2067
        %v2069 = vpop.f32.mrf.mxu0
        %v2070 = vadd.f32 %v1993, %v2069
        %2071 = vmatmul.bf16.gmra.mxu0 %v1218
        %v2072 = vpop.f32.mrf.mxu0
        %v2073 = vadd.f32 %v1993, %v2072
        %v2074 = vpop.f32.mrf.mxu0
        %v2075 = vadd.f32 %v1993, %v2074
        %2076 = vmatmul.bf16.gmra.mxu0 %v1219
        %v2077 = vpop.f32.mrf.mxu0
        %v2078 = vadd.f32 %v1993, %v2077
        %v2079 = vpop.f32.mrf.mxu0
        %v2080 = vadd.f32 %v1993, %v2079
        %2081 = vmatmul.bf16.gmra.mxu0 %v1220
        %v2082 = vpop.f32.mrf.mxu0
        %v2083 = vadd.f32 %v1993, %v2082
        %v2084 = vpop.f32.mrf.mxu0
        %v2085 = vadd.f32 %v1993, %v2084
        %2086 = vmatmul.bf16.gmra.mxu0 %v1221
        %v2087 = vpop.f32.mrf.mxu0
        %v2088 = vadd.f32 %v1993, %v2087
        %v2089 = vpop.f32.mrf.mxu0
        %v2090 = vadd.f32 %v1993, %v2089
        %2091 = vmatmul.bf16.gmra.mxu0 %v1222
        %v2092 = vpop.f32.mrf.mxu0
        %v2093 = vadd.f32 %v1993, %v2092
        %v2094 = vpop.f32.mrf.mxu0
        %v2095 = vadd.f32 %v1993, %v2094
        %2096 = vmatmul.bf16.gmra.mxu0 %v1223
        %v2097 = vpop.f32.mrf.mxu0
        %v2098 = vadd.f32 %v1993, %v2097
        %v2099 = vpop.f32.mrf.mxu0
        %v2100 = vadd.f32 %v1993, %v2099
        %2101 = vmatmul.bf16.gmra.mxu0 %v1224
        %v2102 = vpop.f32.mrf.mxu0
        %v2103 = vadd.f32 %v1993, %v2102
        %v2104 = vpop.f32.mrf.mxu0
        %v2105 = vadd.f32 %v1993, %v2104
        %2106 = vmatmul.bf16.gmra.mxu0 %v1225
        %v2107 = vpop.f32.mrf.mxu0
        %v2108 = vadd.f32 %v1993, %v2107
        %v2109 = vpop.f32.mrf.mxu0
        %v2110 = vadd.f32 %v1993, %v2109
        %2111 = vmatmul.bf16.gmra.mxu0 %v1226
        %v2112 = vpop.f32.mrf.mxu0
        %v2113 = vadd.f32 %v1993, %v2112
        %v2114 = vpop.f32.mrf.mxu0
        %v2115 = vadd.f32 %v1993, %v2114
        %2116 = vmatmul.bf16.gmra.mxu0 %v1227
        %v2117 = vpop.f32.mrf.mxu0
        %v2118 = vadd.f32 %v1993, %v2117
        %v2119 = vpop.f32.mrf.mxu0
        %v2120 = vadd.f32 %v1993, %v2119
        %2121 = vmatmul.bf16.gmra.mxu0 %v1228
        %v2122 = vpop.f32.mrf.mxu0
        %v2123 = vadd.f32 %v1993, %v2122
        %v2124 = vpop.f32.mrf.mxu0
        %v2125 = vadd.f32 %v1993, %v2124
        %2126 = vmatmul.bf16.gmra.mxu0 %v1229
        %v2127 = vpop.f32.mrf.mxu0
        %v2128 = vadd.f32 %v1993, %v2127
        %v2129 = vpop.f32.mrf.mxu0
        %v2130 = vadd.f32 %v1993, %v2129
        %2131 = vmatmul.bf16.gmra.mxu0 %v1230
        %v2132 = vpop.f32.mrf.mxu0
        %v2133 = vadd.f32 %v1993, %v2132
        %v2134 = vpop.f32.mrf.mxu0
        %v2135 = vadd.f32 %v1993, %v2134
        %2136 = vmatmul.bf16.gmra.mxu0 %v1231
        %v2137 = vpop.f32.mrf.mxu0
        %v2138 = vadd.f32 %v1993, %v2137
        %v2139 = vpop.f32.mrf.mxu0
        %v2140 = vadd.f32 %v1993, %v2139
        %2141 = vmatmul.bf16.gmra.mxu0 %v1232
        %v2142 = vpop.f32.mrf.mxu0
        %v2143 = vadd.f32 %v1993, %v2142
        %v2144 = vpop.f32.mrf.mxu0
        %v2145 = vadd.f32 %v1993, %v2144
        %2146 = vmatmul.bf16.gmra.mxu0 %v1233
        %v2147 = vpop.f32.mrf.mxu0
        %v2148 = vadd.f32 %v1993, %v2147
        %v2149 = vpop.f32.mrf.mxu0
        %v2150 = vadd.f32 %v1993, %v2149
        %2151 = vmatmul.bf16.gmra.mxu0 %v1234
        %v2152 = vpop.f32.mrf.mxu0
        %v2153 = vadd.f32 %v1993, %v2152
        %v2154 = vpop.f32.mrf.mxu0
        %v2155 = vadd.f32 %v1993, %v2154
        %2156 = vmatmul.bf16.gmra.mxu0 %v1235
        %v2157 = vpop.f32.mrf.mxu0
        %v2158 = vadd.f32 %v1993, %v2157
        %v2159 = vpop.f32.mrf.mxu0
        %v2160 = vadd.f32 %v1993, %v2159
        %2161 = vmatmul.bf16.gmra.mxu0 %v1236
        %v2162 = vpop.f32.mrf.mxu0
        %v2163 = vadd.f32 %v1993, %v2162
        %v2164 = vpop.f32.mrf.mxu0
        %v2165 = vadd.f32 %v1993, %v2164
        %2166 = vmatmul.bf16.gmra.mxu0 %v1237
        %v2167 = vpop.f32.mrf.mxu0
        %v2168 = vadd.f32 %v1993, %v2167
        %v2169 = vpop.f32.mrf.mxu0
        %v2170 = vadd.f32 %v1993, %v2169
        %2171 = vmatmul.bf16.gmra.mxu0 %v1238
        %v2172 = vpop.f32.mrf.mxu0
        %v2173 = vadd.f32 %v1993, %v2172
        %v2174 = vpop.f32.mrf.mxu0
        %v2175 = vadd.f32 %v1993, %v2174
        %2176 = vmatmul.bf16.gmra.mxu0 %v1239
        %v2177 = vpop.f32.mrf.mxu0
        %v2178 = vadd.f32 %v1993, %v2177
        %v2179 = vpop.f32.mrf.mxu0
        %v2180 = vadd.f32 %v1993, %v2179
        %2181 = vmatmul.bf16.gmra.mxu0 %v1240
        %v2182 = vpop.f32.mrf.mxu0
        %v2183 = vadd.f32 %v1993, %v2182
        %v2184 = vpop.f32.mrf.mxu0
        %v2185 = vadd.f32 %v1993, %v2184
        %2186 = vmatmul.bf16.gmra.mxu0 %v1241
        %v2187 = vpop.f32.mrf.mxu0
        %v2188 = vadd.f32 %v1993, %v2187
        %v2189 = vpop.f32.mrf.mxu0
        %v2190 = vadd.f32 %v1993, %v2189
        %2191 = vmatmul.bf16.gmra.mxu0 %v1242
        %v2192 = vpop.f32.mrf.mxu0
        %v2193 = vadd.f32 %v1993, %v2192
        %v2194 = vpop.f32.mrf.mxu0
        %v2195 = vadd.f32 %v1993, %v2194
        %2196 = vmatmul.bf16.gmra.mxu0 %v1243
        %v2197 = vpop.f32.mrf.mxu0
        %v2198 = vadd.f32 %v1993, %v2197
        %v2199 = vpop.f32.mrf.mxu0
        %v2200 = vadd.f32 %v1993, %v2199
        %2201 = vmatmul.bf16.gmra.mxu0 %v1244
        %v2202 = vpop.f32.mrf.mxu0
        %v2203 = vadd.f32 %v1993, %v2202
        %v2204 = vpop.f32.mrf.mxu0
        %v2205 = vadd.f32 %v1993, %v2204
        %2206 = vmatmul.bf16.gmra.mxu0 %v1245
        %v2207 = vpop.f32.mrf.mxu0
        %v2208 = vadd.f32 %v1993, %v2207
        %v2209 = vpop.f32.mrf.mxu0
        %v2210 = vadd.f32 %v1993, %v2209
        %2211 = vmatmul.bf16.gmra.mxu0 %v1246
        %v2212 = vpop.f32.mrf.mxu0
        %v2213 = vadd.f32 %v1993, %v2212
        %v2214 = vpop.f32.mrf.mxu0
        %v2215 = vadd.f32 %v1993, %v2214
        %2216 = vmatmul.bf16.gmra.mxu0 %v1247
        %v2217 = vpop.f32.mrf.mxu0
        %v2218 = vadd.f32 %v1993, %v2217
        %v2219 = vpop.f32.mrf.mxu0
        %v2220 = vadd.f32 %v1993, %v2219
        %2221 = vmatmul.bf16.gmra.mxu0 %v1248
        %v2222 = vpop.f32.mrf.mxu0
        %v2223 = vadd.f32 %v1993, %v2222
        %v2224 = vpop.f32.mrf.mxu0
        %v2225 = vadd.f32 %v1993, %v2224
        %2226 = vmatmul.bf16.gmra.mxu0 %v1249
        %v2227 = vpop.f32.mrf.mxu0
        %v2228 = vadd.f32 %v1993, %v2227
        %v2229 = vpop.f32.mrf.mxu0
        %v2230 = vadd.f32 %v1993, %v2229
        %2231 = vmatmul.bf16.gmra.mxu0 %v1250
        %v2232 = vpop.f32.mrf.mxu0
        %v2233 = vadd.f32 %v1993, %v2232
        %v2234 = vpop.f32.mrf.mxu0
        %v2235 = vadd.f32 %v1993, %v2234
        %2236 = vmatmul.bf16.gmra.mxu0 %v1251
        %v2237 = vpop.f32.mrf.mxu0
        %v2238 = vadd.f32 %v1993, %v2237
        %v2239 = vpop.f32.mrf.mxu0
        %v2240 = vadd.f32 %v1993, %v2239
        %2241 = vmatmul.bf16.gmra.mxu0 %v1252
        %v2242 = vpop.f32.mrf.mxu0
        %v2243 = vadd.f32 %v1993, %v2242
        %v2244 = vpop.f32.mrf.mxu0
        %v2245 = vadd.f32 %v1993, %v2244
        %2246 = vmatmul.bf16.gmra.mxu0 %v1253
        %v2247 = vpop.f32.mrf.mxu0
        %v2248 = vadd.f32 %v1993, %v2247
        %v2249 = vpop.f32.mrf.mxu0
        %v2250 = vadd.f32 %v1993, %v2249
        %2251 = vmatmul.bf16.gmra.mxu0 %v1254
        %v2252 = vpop.f32.mrf.mxu0
        %v2253 = vadd.f32 %v1993, %v2252
        %v2254 = vpop.f32.mrf.mxu0
        %v2255 = vadd.f32 %v1993, %v2254
        %2256 = vmatmul.bf16.gmra.mxu0 %v1255
        %v2257 = vpop.f32.mrf.mxu0
        %v2258 = vadd.f32 %v1993, %v2257
        %v2259 = vpop.f32.mrf.mxu0
        %v2260 = vadd.f32 %v1993, %v2259
        %2261 = vmatmul.bf16.gmra.mxu0 %v1256
        %v2262 = vpop.f32.mrf.mxu0
        %v2263 = vadd.f32 %v1993, %v2262
        %v2264 = vpop.f32.mrf.mxu0
        %v2265 = vadd.f32 %v1993, %v2264
        %2266 = vmatmul.bf16.gmra.mxu0 %v1257
        %v2267 = vpop.f32.mrf.mxu0
        %v2268 = vadd.f32 %v1993, %v2267
        %v2269 = vpop.f32.mrf.mxu0
        %v2270 = vadd.f32 %v1993, %v2269
        %2271 = vmatmul.bf16.gmra.mxu0 %v1258
        %v2272 = vpop.f32.mrf.mxu0
        %v2273 = vadd.f32 %v1993, %v2272
        %v2274 = vpop.f32.mrf.mxu0
        %v2275 = vadd.f32 %v1993, %v2274
        %2276 = vmatmul.bf16.gmra.mxu0 %v1259
        %v2277 = vpop.f32.mrf.mxu0
        %v2278 = vadd.f32 %v1993, %v2277
        %v2279 = vpop.f32.mrf.mxu0
        %v2280 = vadd.f32 %v1993, %v2279
        %2281 = vmatmul.bf16.gmra.mxu0 %v1260
        %v2282 = vpop.f32.mrf.mxu0
        %v2283 = vadd.f32 %v1993, %v2282
        %v2284 = vpop.f32.mrf.mxu0
        %v2285 = vadd.f32 %v1993, %v2284
        %2286 = vmatmul.bf16.gmra.mxu0 %v1261
        %v2287 = vpop.f32.mrf.mxu0
        %v2288 = vadd.f32 %v1993, %v2287
        %v2289 = vpop.f32.mrf.mxu0
        %v2290 = vadd.f32 %v1993, %v2289
        %2291 = vmatmul.bf16.gmra.mxu0 %v1262
        %v2292 = vpop.f32.mrf.mxu0
        %v2293 = vadd.f32 %v1993, %v2292
        %v2294 = vpop.f32.mrf.mxu0
        %v2295 = vadd.f32 %v1993, %v2294
        %2296 = vmatmul.bf16.gmra.mxu0 %v1263
        %v2297 = vpop.f32.mrf.mxu0
        %v2298 = vadd.f32 %v1993, %v2297
        %v2299 = vpop.f32.mrf.mxu0
        %v2300 = vadd.f32 %v1993, %v2299
        %2301 = vmatmul.bf16.gmra.mxu0 %v1264
        %v2302 = vpop.f32.mrf.mxu0
        %v2303 = vadd.f32 %v1993, %v2302
        %v2304 = vpop.f32.mrf.mxu0
        %v2305 = vadd.f32 %v1993, %v2304
        %2306 = vmatmul.bf16.gmra.mxu0 %v1265
        %v2307 = vpop.f32.mrf.mxu0
        %v2308 = vadd.f32 %v1993, %v2307
        %v2309 = vpop.f32.mrf.mxu0
        %v2310 = vadd.f32 %v1993, %v2309
        %2311 = vmatmul.bf16.gmra.mxu0 %v1266
        %v2312 = vpop.f32.mrf.mxu0
        %v2313 = vadd.f32 %v1993, %v2312
        %v2314 = vpop.f32.mrf.mxu0
        %v2315 = vadd.f32 %v1993, %v2314
        %2316 = vmatmul.bf16.gmra.mxu0 %v1267
        %v2317 = vpop.f32.mrf.mxu0
        %v2318 = vadd.f32 %v1993, %v2317
        %v2319 = vpop.f32.mrf.mxu0
        %v2320 = vadd.f32 %v1993, %v2319
        %2321 = vmatmul.bf16.gmra.mxu0 %v1268
        %v2322 = vpop.f32.mrf.mxu0
        %v2323 = vadd.f32 %v1993, %v2322
        %v2324 = vpop.f32.mrf.mxu0
        %v2325 = vadd.f32 %v1993, %v2324
        %2326 = vmatmul.bf16.gmra.mxu0 %v1269
        %v2327 = vpop.f32.mrf.mxu0
        %v2328 = vadd.f32 %v1993, %v2327
        %v2329 = vpop.f32.mrf.mxu0
        %v2330 = vadd.f32 %v1993, %v2329
        %2331 = vmatmul.bf16.gmra.mxu0 %v1270
        %v2332 = vpop.f32.mrf.mxu0
        %v2333 = vadd.f32 %v1993, %v2332
        %v2334 = vpop.f32.mrf.mxu0
        %v2335 = vadd.f32 %v1993, %v2334
        %2336 = vmatmul.bf16.gmra.mxu0 %v1271
        %v2337 = vpop.f32.mrf.mxu0
        %v2338 = vadd.f32 %v1993, %v2337
        %v2339 = vpop.f32.mrf.mxu0
        %v2340 = vadd.f32 %v1993, %v2339
        %2341 = vmatmul.bf16.gmra.mxu0 %v1272
        %v2342 = vpop.f32.mrf.mxu0
        %v2343 = vadd.f32 %v1993, %v2342
        %v2344 = vpop.f32.mrf.mxu0
        %v2345 = vadd.f32 %v1993, %v2344
        %2346 = vmatmul.bf16.gmra.mxu0 %v1273
        %v2347 = vpop.f32.mrf.mxu0
        %v2348 = vadd.f32 %v1993, %v2347
        %v2349 = vpop.f32.mrf.mxu0
        %v2350 = vadd.f32 %v1993, %v2349
        %2351 = vmatmul.bf16.gmra.mxu0 %v1274
        %v2352 = vpop.f32.mrf.mxu0
        %v2353 = vadd.f32 %v1993, %v2352
        %v2354 = vpop.f32.mrf.mxu0
        %v2355 = vadd.f32 %v1993, %v2354
        %2356 = vmatmul.bf16.gmra.mxu0 %v1275
        %v2357 = vpop.f32.mrf.mxu0
        %v2358 = vadd.f32 %v1993, %v2357
        %v2359 = vpop.f32.mrf.mxu0
        %v2360 = vadd.f32 %v1993, %v2359
        %2361 = vmatmul.bf16.gmra.mxu0 %v1276
        %v2362 = vpop.f32.mrf.mxu0
        %v2363 = vadd.f32 %v1993, %v2362
        %v2364 = vpop.f32.mrf.mxu0
        %v2365 = vadd.f32 %v1993, %v2364
        %2366 = vmatmul.bf16.gmra.mxu0 %v1277
        %v2367 = vpop.f32.mrf.mxu0
        %v2368 = vadd.f32 %v1993, %v2367
        %v2369 = vpop.f32.mrf.mxu0
        %v2370 = vadd.f32 %v1993, %v2369
        %2371 = vdwg.mxu0
        %2372 = vst [vmem:[#allocation2] sm:$0xff] %v2053
        %2373 = vst [vmem:[#allocation2 + $0x8] sm:$0xff] %v2055
        %2374 = vst [vmem:[#allocation2 + $0x10] sm:$0xff] %v2058
        %2375 = vst [vmem:[#allocation2 + $0x18] sm:$0xff] %v2060
        %2376 = vst [vmem:[#allocation2 + $0x20] sm:$0xff] %v2063
        %2377 = vst [vmem:[#allocation2 + $0x28] sm:$0xff] %v2065
        %2378 = vst [vmem:[#allocation2 + $0x30] sm:$0xff] %v2068
        %2379 = vst [vmem:[#allocation2 + $0x38] sm:$0xff] %v2070
        %2380 = vst [vmem:[#allocation2 + $0x40] sm:$0xff] %v2073
        %2381 = vst [vmem:[#allocation2 + $0x48] sm:$0xff] %v2075
        %2382 = vst [vmem:[#allocation2 + $0x50] sm:$0xff] %v2078
        %2383 = vst [vmem:[#allocation2 + $0x58] sm:$0xff] %v2080
        %2384 = vst [vmem:[#allocation2 + $0x60] sm:$0xff] %v2083
        %2385 = vst [vmem:[#allocation2 + $0x68] sm:$0xff] %v2085
        %2386 = vst [vmem:[#allocation2 + $0x70] sm:$0xff] %v2088
        %2387 = vst [vmem:[#allocation2 + $0x78] sm:$0xff] %v2090
        %2388 = vst [vmem:[#allocation2 + $0x80] sm:$0xff] %v2093
        %2389 = vst [vmem:[#allocation2 + $0x88] sm:$0xff] %v2095
        %2390 = vst [vmem:[#allocation2 + $0x90] sm:$0xff] %v2098
        %2391 = vst [vmem:[#allocation2 + $0x98] sm:$0xff] %v2100
        %2392 = vst [vmem:[#allocation2 + $0xa0] sm:$0xff] %v2103
        %2393 = vst [vmem:[#allocation2 + $0xa8] sm:$0xff] %v2105
        %2394 = vst [vmem:[#allocation2 + $0xb0] sm:$0xff] %v2108
        %2395 = vst [vmem:[#allocation2 + $0xb8] sm:$0xff] %v2110
        %2396 = vst [vmem:[#allocation2 + $0xc0] sm:$0xff] %v2113
        %2397 = vst [vmem:[#allocation2 + $0xc8] sm:$0xff] %v2115
        %2398 = vst [vmem:[#allocation2 + $0xd0] sm:$0xff] %v2118
        %2399 = vst [vmem:[#allocation2 + $0xd8] sm:$0xff] %v2120
        %2400 = vst [vmem:[#allocation2 + $0xe0] sm:$0xff] %v2123
        %2401 = vst [vmem:[#allocation2 + $0xe8] sm:$0xff] %v2125
        %2402 = vst [vmem:[#allocation2 + $0xf0] sm:$0xff] %v2128
        %2403 = vst [vmem:[#allocation2 + $0xf8] sm:$0xff] %v2130
        %2404 = vst [vmem:[#allocation2 + $0x100] sm:$0xff] %v2133
        %2405 = vst [vmem:[#allocation2 + $0x108] sm:$0xff] %v2135
        %2406 = vst [vmem:[#allocation2 + $0x110] sm:$0xff] %v2138
        %2407 = vst [vmem:[#allocation2 + $0x118] sm:$0xff] %v2140
        %2408 = vst [vmem:[#allocation2 + $0x120] sm:$0xff] %v2143
        %2409 = vst [vmem:[#allocation2 + $0x128] sm:$0xff] %v2145
        %2410 = vst [vmem:[#allocation2 + $0x130] sm:$0xff] %v2148
        %2411 = vst [vmem:[#allocation2 + $0x138] sm:$0xff] %v2150
        %2412 = vst [vmem:[#allocation2 + $0x140] sm:$0xff] %v2153
        %2413 = vst [vmem:[#allocation2 + $0x148] sm:$0xff] %v2155
        %2414 = vst [vmem:[#allocation2 + $0x150] sm:$0xff] %v2158
        %2415 = vst [vmem:[#allocation2 + $0x158] sm:$0xff] %v2160
        %2416 = vst [vmem:[#allocation2 + $0x160] sm:$0xff] %v2163
        %2417 = vst [vmem:[#allocation2 + $0x168] sm:$0xff] %v2165
        %2418 = vst [vmem:[#allocation2 + $0x170] sm:$0xff] %v2168
        %2419 = vst [vmem:[#allocation2 + $0x178] sm:$0xff] %v2170
        %2420 = vst [vmem:[#allocation2 + $0x180] sm:$0xff] %v2173
        %2421 = vst [vmem:[#allocation2 + $0x188] sm:$0xff] %v2175
        %2422 = vst [vmem:[#allocation2 + $0x190] sm:$0xff] %v2178
        %2423 = vst [vmem:[#allocation2 + $0x198] sm:$0xff] %v2180
        %2424 = vst [vmem:[#allocation2 + $0x1a0] sm:$0xff] %v2183
        %2425 = vst [vmem:[#allocation2 + $0x1a8] sm:$0xff] %v2185
        %2426 = vst [vmem:[#allocation2 + $0x1b0] sm:$0xff] %v2188
        %2427 = vst [vmem:[#allocation2 + $0x1b8] sm:$0xff] %v2190
        %2428 = vst [vmem:[#allocation2 + $0x1c0] sm:$0xff] %v2193
        %2429 = vst [vmem:[#allocation2 + $0x1c8] sm:$0xff] %v2195
        %2430 = vst [vmem:[#allocation2 + $0x1d0] sm:$0xff] %v2198
        %2431 = vst [vmem:[#allocation2 + $0x1d8] sm:$0xff] %v2200
        %2432 = vst [vmem:[#allocation2 + $0x1e0] sm:$0xff] %v2203
        %2433 = vst [vmem:[#allocation2 + $0x1e8] sm:$0xff] %v2205
        %2434 = vst [vmem:[#allocation2 + $0x1f0] sm:$0xff] %v2208
        %2435 = vst [vmem:[#allocation2 + $0x1f8] sm:$0xff] %v2210
        %2436 = vst [vmem:[#allocation2 + $0x200] sm:$0xff] %v2213
        %2437 = vst [vmem:[#allocation2 + $0x208] sm:$0xff] %v2215
        %2438 = vst [vmem:[#allocation2 + $0x210] sm:$0xff] %v2218
        %2439 = vst [vmem:[#allocation2 + $0x218] sm:$0xff] %v2220
        %2440 = vst [vmem:[#allocation2 + $0x220] sm:$0xff] %v2223
        %2441 = vst [vmem:[#allocation2 + $0x228] sm:$0xff] %v2225
        %2442 = vst [vmem:[#allocation2 + $0x230] sm:$0xff] %v2228
        %2443 = vst [vmem:[#allocation2 + $0x238] sm:$0xff] %v2230
        %2444 = vst [vmem:[#allocation2 + $0x240] sm:$0xff] %v2233
        %2445 = vst [vmem:[#allocation2 + $0x248] sm:$0xff] %v2235
        %2446 = vst [vmem:[#allocation2 + $0x250] sm:$0xff] %v2238
        %2447 = vst [vmem:[#allocation2 + $0x258] sm:$0xff] %v2240
        %2448 = vst [vmem:[#allocation2 + $0x260] sm:$0xff] %v2243
        %2449 = vst [vmem:[#allocation2 + $0x268] sm:$0xff] %v2245
        %2450 = vst [vmem:[#allocation2 + $0x270] sm:$0xff] %v2248
        %2451 = vst [vmem:[#allocation2 + $0x278] sm:$0xff] %v2250
        %2452 = vst [vmem:[#allocation2 + $0x280] sm:$0xff] %v2253
        %2453 = vst [vmem:[#allocation2 + $0x288] sm:$0xff] %v2255
        %2454 = vst [vmem:[#allocation2 + $0x290] sm:$0xff] %v2258
        %2455 = vst [vmem:[#allocation2 + $0x298] sm:$0xff] %v2260
        %2456 = vst [vmem:[#allocation2 + $0x2a0] sm:$0xff] %v2263
        %2457 = vst [vmem:[#allocation2 + $0x2a8] sm:$0xff] %v2265
        %2458 = vst [vmem:[#allocation2 + $0x2b0] sm:$0xff] %v2268
        %2459 = vst [vmem:[#allocation2 + $0x2b8] sm:$0xff] %v2270
        %2460 = vst [vmem:[#allocation2 + $0x2c0] sm:$0xff] %v2273
        %2461 = vst [vmem:[#allocation2 + $0x2c8] sm:$0xff] %v2275
        %2462 = vst [vmem:[#allocation2 + $0x2d0] sm:$0xff] %v2278
        %2463 = vst [vmem:[#allocation2 + $0x2d8] sm:$0xff] %v2280
        %2464 = vst [vmem:[#allocation2 + $0x2e0] sm:$0xff] %v2283
        %2465 = vst [vmem:[#allocation2 + $0x2e8] sm:$0xff] %v2285
        %2466 = vst [vmem:[#allocation2 + $0x2f0] sm:$0xff] %v2288
        %2467 = vst [vmem:[#allocation2 + $0x2f8] sm:$0xff] %v2290
        %2468 = vst [vmem:[#allocation2 + $0x300] sm:$0xff] %v2293
        %2469 = vst [vmem:[#allocation2 + $0x308] sm:$0xff] %v2295
        %2470 = vst [vmem:[#allocation2 + $0x310] sm:$0xff] %v2298
        %2471 = vst [vmem:[#allocation2 + $0x318] sm:$0xff] %v2300
        %2472 = vst [vmem:[#allocation2 + $0x320] sm:$0xff] %v2303
        %2473 = vst [vmem:[#allocation2 + $0x328] sm:$0xff] %v2305
        %2474 = vst [vmem:[#allocation2 + $0x330] sm:$0xff] %v2308
        %2475 = vst [vmem:[#allocation2 + $0x338] sm:$0xff] %v2310
        %2476 = vst [vmem:[#allocation2 + $0x340] sm:$0xff] %v2313
        %2477 = vst [vmem:[#allocation2 + $0x348] sm:$0xff] %v2315
        %2478 = vst [vmem:[#allocation2 + $0x350] sm:$0xff] %v2318
        %2479 = vst [vmem:[#allocation2 + $0x358] sm:$0xff] %v2320
        %2480 = vst [vmem:[#allocation2 + $0x360] sm:$0xff] %v2323
        %2481 = vst [vmem:[#allocation2 + $0x368] sm:$0xff] %v2325
        %2482 = vst [vmem:[#allocation2 + $0x370] sm:$0xff] %v2328
        %2483 = vst [vmem:[#allocation2 + $0x378] sm:$0xff] %v2330
        %2484 = vst [vmem:[#allocation2 + $0x380] sm:$0xff] %v2333
        %2485 = vst [vmem:[#allocation2 + $0x388] sm:$0xff] %v2335
        %2486 = vst [vmem:[#allocation2 + $0x390] sm:$0xff] %v2338
        %2487 = vst [vmem:[#allocation2 + $0x398] sm:$0xff] %v2340
        %2488 = vst [vmem:[#allocation2 + $0x3a0] sm:$0xff] %v2343
        %2489 = vst [vmem:[#allocation2 + $0x3a8] sm:$0xff] %v2345
        %2490 = vst [vmem:[#allocation2 + $0x3b0] sm:$0xff] %v2348
        %2491 = vst [vmem:[#allocation2 + $0x3b8] sm:$0xff] %v2350
        %2492 = vst [vmem:[#allocation2 + $0x3c0] sm:$0xff] %v2353
        %2493 = vst [vmem:[#allocation2 + $0x3c8] sm:$0xff] %v2355
        %2494 = vst [vmem:[#allocation2 + $0x3d0] sm:$0xff] %v2358
        %2495 = vst [vmem:[#allocation2 + $0x3d8] sm:$0xff] %v2360
        %2496 = vst [vmem:[#allocation2 + $0x3e0] sm:$0xff] %v2363
        %2497 = vst [vmem:[#allocation2 + $0x3e8] sm:$0xff] %v2365
        %2498 = vst [vmem:[#allocation2 + $0x3f0] sm:$0xff] %v2368
        %2499 = vst [vmem:[#allocation2 + $0x3f8] sm:$0xff] %v2370
        %v2500 = vld [vmem:[%s7] sm:$0xf]
        %v2501 = vld [vmem:[%s7 + $0x4] sm:$0xf]
        %v2510 = vunpack.c.l.b16 %v1847
        %v2511 = vunpack.c.l.b16 %v1848
        %v2512 = vunpack.c.l.b16 %v1849
        %v2513 = vunpack.c.l.b16 %v1850
        %v2514 = vunpack.c.l.b16 %v1851
        %v2515 = vunpack.c.l.b16 %v1852
        %v2516 = vunpack.c.l.b16 %v1853
        %v2517 = vunpack.c.l.b16 %v1854
        %v2518 = vpack.c.b16 %v2511, %v2510
        %v2519 = vpack.c.b16 %v2513, %v2512
        %v2520 = vpack.c.b16 %v2515, %v2514
        %v2521 = vpack.c.b16 %v2517, %v2516
        %v2524 = vunpack.c.l.b16 %v2500
        %v2525 = vunpack.c.l.b16 %v2501
        %v2526 = vpack.c.b16 %v2525, %v2524
        %vm2528 = vcmask 130048
        %v2530 = vsel %vm2528, %v2518, 0
        %v2533 = vsel %vm2528, %v2519, 0
        %v2536 = vsel %vm2528, %v2520, 0
        %v2539 = vsel %vm2528, %v2521, 0
        %2541 = vmatpush.bf16.msra.mxu0 0
        %2542 = vmatpush.bf16.msra.mxu0 0
        %2543 = vmatpush.bf16.msra.mxu0 0
        %2544 = vmatpush.bf16.msra.mxu0 0
        %2545 = vmatpush.bf16.msra.mxu0 0
        %2546 = vmatpush.bf16.msra.mxu0 0
        %2547 = vmatpush.bf16.msra.mxu0 0
        %2548 = vmatpush.bf16.msra.mxu0 %v2526
        %2549 = vmatmul.bf16.gmra.mxu0 %v2530
        %v2550 = vpop.f32.mrf.mxu0
        %v2551 = vadd.f32 0.0, %v2550
        %v2552 = vpop.f32.mrf.mxu0
        %v2553 = vadd.f32 0.0, %v2552
        %2554 = vmatmul.bf16.gmra.mxu0 %v2533
        %v2555 = vpop.f32.mrf.mxu0
        %v2556 = vadd.f32 0.0, %v2555
        %v2557 = vpop.f32.mrf.mxu0
        %v2558 = vadd.f32 0.0, %v2557
        %2559 = vmatmul.bf16.gmra.mxu0 %v2536
        %v2560 = vpop.f32.mrf.mxu0
        %v2561 = vadd.f32 0.0, %v2560
        %v2562 = vpop.f32.mrf.mxu0
        %v2563 = vadd.f32 0.0, %v2562
        %2564 = vmatmul.bf16.gmra.mxu0 %v2539
        %v2565 = vpop.f32.mrf.mxu0
        %v2566 = vadd.f32 0.0, %v2565
        %v2567 = vpop.f32.mrf.mxu0
        %v2568 = vadd.f32 0.0, %v2567
        %2569 = vdwg.mxu0
        %v2572 = vunpack.c.l.b16 %v808
        %v2573 = vunpack.c.l.b16 %v809
        %v2574 = vpack.c.b16 %v2573, %v2572
        %v2577 = vsel %vm2528, %v804, 0
        %v2580 = vsel %vm2528, %v805, 0
        %v2583 = vsel %vm2528, %v806, 0
        %v2586 = vsel %vm2528, %v807, 0
        %2588 = vmatpush.bf16.msra.mxu0 0
        %2589 = vmatpush.bf16.msra.mxu0 0
        %2590 = vmatpush.bf16.msra.mxu0 0
        %2591 = vmatpush.bf16.msra.mxu0 0
        %2592 = vmatpush.bf16.msra.mxu0 0
        %2593 = vmatpush.bf16.msra.mxu0 0
        %2594 = vmatpush.bf16.msra.mxu0 0
        %2595 = vmatpush.bf16.msra.mxu0 %v2574
        %2596 = vmatmul.bf16.gmra.mxu0 %v2577
        %v2597 = vpop.f32.mrf.mxu0
        %v2598 = vadd.f32 %v2551, %v2597
        %v2599 = vpop.f32.mrf.mxu0
        %v2600 = vadd.f32 %v2553, %v2599
        %2601 = vmatmul.bf16.gmra.mxu0 %v2580
        %v2602 = vpop.f32.mrf.mxu0
        %v2603 = vadd.f32 %v2556, %v2602
        %v2604 = vpop.f32.mrf.mxu0
        %v2605 = vadd.f32 %v2558, %v2604
        %2606 = vmatmul.bf16.gmra.mxu0 %v2583
        %v2607 = vpop.f32.mrf.mxu0
        %v2608 = vadd.f32 %v2561, %v2607
        %v2609 = vpop.f32.mrf.mxu0
        %v2610 = vadd.f32 %v2563, %v2609
        %2611 = vmatmul.bf16.gmra.mxu0 %v2586
        %v2612 = vpop.f32.mrf.mxu0
        %v2613 = vadd.f32 %v2566, %v2612
        %v2614 = vpop.f32.mrf.mxu0
        %v2615 = vadd.f32 %v2568, %v2614
        %2616 = vdwg.mxu0
        %s2617 = scalar_lea.vmem %s7, 8
        %v2618 = vld [vmem:[%s2617] sm:$0xf]
        %v2619 = vld [vmem:[%s2617 + $0x4] sm:$0xf]
        %v2628 = vunpack.c.l.b16 %v1855
        %v2629 = vunpack.c.l.b16 %v1856
        %v2630 = vunpack.c.l.b16 %v1857
        %v2631 = vunpack.c.l.b16 %v1858
        %v2632 = vunpack.c.l.b16 %v1859
        %v2633 = vunpack.c.l.b16 %v1860
        %v2634 = vunpack.c.l.b16 %v1861
        %v2635 = vunpack.c.l.b16 %v1862
        %v2636 = vpack.c.b16 %v2629, %v2628
        %v2637 = vpack.c.b16 %v2631, %v2630
        %v2638 = vpack.c.b16 %v2633, %v2632
        %v2639 = vpack.c.b16 %v2635, %v2634
        %v2642 = vunpack.c.l.b16 %v2618
        %v2643 = vunpack.c.l.b16 %v2619
        %v2644 = vpack.c.b16 %v2643, %v2642
        %v2647 = vsel %vm2528, %v2636, 0
        %v2650 = vsel %vm2528, %v2637, 0
        %v2653 = vsel %vm2528, %v2638, 0
        %v2656 = vsel %vm2528, %v2639, 0
        %2658 = vmatpush.bf16.msra.mxu0 0
        %2659 = vmatpush.bf16.msra.mxu0 0
        %2660 = vmatpush.bf16.msra.mxu0 0
        %2661 = vmatpush.bf16.msra.mxu0 0
        %2662 = vmatpush.bf16.msra.mxu0 0
        %2663 = vmatpush.bf16.msra.mxu0 0
        %2664 = vmatpush.bf16.msra.mxu0 0
        %2665 = vmatpush.bf16.msra.mxu0 %v2644
        %2666 = vmatmul.bf16.gmra.mxu0 %v2647
        %v2667 = vpop.f32.mrf.mxu0
        %v2668 = vadd.f32 0.0, %v2667
        %v2669 = vpop.f32.mrf.mxu0
        %v2670 = vadd.f32 0.0, %v2669
        %2671 = vmatmul.bf16.gmra.mxu0 %v2650
        %v2672 = vpop.f32.mrf.mxu0
        %v2673 = vadd.f32 0.0, %v2672
        %v2674 = vpop.f32.mrf.mxu0
        %v2675 = vadd.f32 0.0, %v2674
        %2676 = vmatmul.bf16.gmra.mxu0 %v2653
        %v2677 = vpop.f32.mrf.mxu0
        %v2678 = vadd.f32 0.0, %v2677
        %v2679 = vpop.f32.mrf.mxu0
        %v2680 = vadd.f32 0.0, %v2679
        %2681 = vmatmul.bf16.gmra.mxu0 %v2656
        %v2682 = vpop.f32.mrf.mxu0
        %v2683 = vadd.f32 0.0, %v2682
        %v2684 = vpop.f32.mrf.mxu0
        %v2685 = vadd.f32 0.0, %v2684
        %2686 = vdwg.mxu0
        %v2687 = vadd.f32 %v2598, %v2668
        %v2688 = vadd.f32 %v2600, %v2670
        %v2689 = vadd.f32 %v2603, %v2673
        %v2690 = vadd.f32 %v2605, %v2675
        %v2691 = vadd.f32 %v2608, %v2678
        %v2692 = vadd.f32 %v2610, %v2680
        %v2693 = vadd.f32 %v2613, %v2683
        %v2694 = vadd.f32 %v2615, %v2685
        %s2695 = scalar_lea.vmem %s7, 16
        %v2696 = vld [vmem:[%s2695] sm:$0xf]
        %v2697 = vld [vmem:[%s2695 + $0x4] sm:$0xf]
        %v2706 = vunpack.c.l.b16 %v1863
        %v2707 = vunpack.c.l.b16 %v1864
        %v2708 = vunpack.c.l.b16 %v1865
        %v2709 = vunpack.c.l.b16 %v1866
        %v2710 = vunpack.c.l.b16 %v1867
        %v2711 = vunpack.c.l.b16 %v1868
        %v2712 = vunpack.c.l.b16 %v1869
        %v2713 = vunpack.c.l.b16 %v1870
        %v2714 = vpack.c.b16 %v2707, %v2706
        %v2715 = vpack.c.b16 %v2709, %v2708
        %v2716 = vpack.c.b16 %v2711, %v2710
        %v2717 = vpack.c.b16 %v2713, %v2712
        %v2720 = vunpack.c.l.b16 %v2696
        %v2721 = vunpack.c.l.b16 %v2697
        %v2722 = vpack.c.b16 %v2721, %v2720
        %v2725 = vsel %vm2528, %v2714, 0
        %v2728 = vsel %vm2528, %v2715, 0
        %v2731 = vsel %vm2528, %v2716, 0
        %v2734 = vsel %vm2528, %v2717, 0
        %2736 = vmatpush.bf16.msra.mxu0 0
        %2737 = vmatpush.bf16.msra.mxu0 0
        %2738 = vmatpush.bf16.msra.mxu0 0
        %2739 = vmatpush.bf16.msra.mxu0 0
        %2740 = vmatpush.bf16.msra.mxu0 0
        %2741 = vmatpush.bf16.msra.mxu0 0
        %2742 = vmatpush.bf16.msra.mxu0 0
        %2743 = vmatpush.bf16.msra.mxu0 %v2722
        %2744 = vmatmul.bf16.gmra.mxu0 %v2725
        %v2745 = vpop.f32.mrf.mxu0
        %v2746 = vadd.f32 0.0, %v2745
        %v2747 = vpop.f32.mrf.mxu0
        %v2748 = vadd.f32 0.0, %v2747
        %2749 = vmatmul.bf16.gmra.mxu0 %v2728
        %v2750 = vpop.f32.mrf.mxu0
        %v2751 = vadd.f32 0.0, %v2750
        %v2752 = vpop.f32.mrf.mxu0
        %v2753 = vadd.f32 0.0, %v2752
        %2754 = vmatmul.bf16.gmra.mxu0 %v2731
        %v2755 = vpop.f32.mrf.mxu0
        %v2756 = vadd.f32 0.0, %v2755
        %v2757 = vpop.f32.mrf.mxu0
        %v2758 = vadd.f32 0.0, %v2757
        %2759 = vmatmul.bf16.gmra.mxu0 %v2734
        %v2760 = vpop.f32.mrf.mxu0
        %v2761 = vadd.f32 0.0, %v2760
        %v2762 = vpop.f32.mrf.mxu0
        %v2763 = vadd.f32 0.0, %v2762
        %2764 = vdwg.mxu0
        %v2765 = vadd.f32 %v2687, %v2746
        %v2766 = vadd.f32 %v2688, %v2748
        %v2767 = vadd.f32 %v2689, %v2751
        %v2768 = vadd.f32 %v2690, %v2753
        %v2769 = vadd.f32 %v2691, %v2756
        %v2770 = vadd.f32 %v2692, %v2758
        %v2771 = vadd.f32 %v2693, %v2761
        %v2772 = vadd.f32 %v2694, %v2763
        %s2773 = scalar_lea.vmem %s7, 24
        %v2774 = vld [vmem:[%s2773] sm:$0xf]
        %v2775 = vld [vmem:[%s2773 + $0x4] sm:$0xf]
        %v2784 = vunpack.c.l.b16 %v1871
        %v2785 = vunpack.c.l.b16 %v1872
        %v2786 = vunpack.c.l.b16 %v1873
        %v2787 = vunpack.c.l.b16 %v1874
        %v2788 = vunpack.c.l.b16 %v1875
        %v2789 = vunpack.c.l.b16 %v1876
        %v2790 = vunpack.c.l.b16 %v1877
        %v2791 = vunpack.c.l.b16 %v1878
        %v2792 = vpack.c.b16 %v2785, %v2784
        %v2793 = vpack.c.b16 %v2787, %v2786
        %v2794 = vpack.c.b16 %v2789, %v2788
        %v2795 = vpack.c.b16 %v2791, %v2790
        %v2798 = vunpack.c.l.b16 %v2774
        %v2799 = vunpack.c.l.b16 %v2775
        %v2800 = vpack.c.b16 %v2799, %v2798
        %v2803 = vsel %vm2528, %v2792, 0
        %v2806 = vsel %vm2528, %v2793, 0
        %v2809 = vsel %vm2528, %v2794, 0
        %v2812 = vsel %vm2528, %v2795, 0
        %2814 = vmatpush.bf16.msra.mxu0 0
        %2815 = vmatpush.bf16.msra.mxu0 0
        %2816 = vmatpush.bf16.msra.mxu0 0
        %2817 = vmatpush.bf16.msra.mxu0 0
        %2818 = vmatpush.bf16.msra.mxu0 0
        %2819 = vmatpush.bf16.msra.mxu0 0
        %2820 = vmatpush.bf16.msra.mxu0 0
        %2821 = vmatpush.bf16.msra.mxu0 %v2800
        %2822 = vmatmul.bf16.gmra.mxu0 %v2803
        %v2823 = vpop.f32.mrf.mxu0
        %v2824 = vadd.f32 0.0, %v2823
        %v2825 = vpop.f32.mrf.mxu0
        %v2826 = vadd.f32 0.0, %v2825
        %2827 = vmatmul.bf16.gmra.mxu0 %v2806
        %v2828 = vpop.f32.mrf.mxu0
        %v2829 = vadd.f32 0.0, %v2828
        %v2830 = vpop.f32.mrf.mxu0
        %v2831 = vadd.f32 0.0, %v2830
        %2832 = vmatmul.bf16.gmra.mxu0 %v2809
        %v2833 = vpop.f32.mrf.mxu0
        %v2834 = vadd.f32 0.0, %v2833
        %v2835 = vpop.f32.mrf.mxu0
        %v2836 = vadd.f32 0.0, %v2835
        %2837 = vmatmul.bf16.gmra.mxu0 %v2812
        %v2838 = vpop.f32.mrf.mxu0
        %v2839 = vadd.f32 0.0, %v2838
        %v2840 = vpop.f32.mrf.mxu0
        %v2841 = vadd.f32 0.0, %v2840
        %2842 = vdwg.mxu0
        %v2843 = vadd.f32 %v2765, %v2824
        %v2844 = vadd.f32 %v2766, %v2826
        %v2845 = vadd.f32 %v2767, %v2829
        %v2846 = vadd.f32 %v2768, %v2831
        %v2847 = vadd.f32 %v2769, %v2834
        %v2848 = vadd.f32 %v2770, %v2836
        %v2849 = vadd.f32 %v2771, %v2839
        %v2850 = vadd.f32 %v2772, %v2841
        %s2851 = scalar_lea.vmem %s7, 32
        %v2852 = vld [vmem:[%s2851] sm:$0xf]
        %v2853 = vld [vmem:[%s2851 + $0x4] sm:$0xf]
        %v2862 = vunpack.c.l.b16 %v1879
        %v2863 = vunpack.c.l.b16 %v1880
        %v2864 = vunpack.c.l.b16 %v1881
        %v2865 = vunpack.c.l.b16 %v1882
        %v2866 = vunpack.c.l.b16 %v1883
        %v2867 = vunpack.c.l.b16 %v1884
        %v2868 = vunpack.c.l.b16 %v1885
        %v2869 = vunpack.c.l.b16 %v1886
        %v2870 = vpack.c.b16 %v2863, %v2862
        %v2871 = vpack.c.b16 %v2865, %v2864
        %v2872 = vpack.c.b16 %v2867, %v2866
        %v2873 = vpack.c.b16 %v2869, %v2868
        %v2876 = vunpack.c.l.b16 %v2852
        %v2877 = vunpack.c.l.b16 %v2853
        %v2878 = vpack.c.b16 %v2877, %v2876
        %v2881 = vsel %vm2528, %v2870, 0
        %v2884 = vsel %vm2528, %v2871, 0
        %v2887 = vsel %vm2528, %v2872, 0
        %v2890 = vsel %vm2528, %v2873, 0
        %2892 = vmatpush.bf16.msra.mxu0 0
        %2893 = vmatpush.bf16.msra.mxu0 0
        %2894 = vmatpush.bf16.msra.mxu0 0
        %2895 = vmatpush.bf16.msra.mxu0 0
        %2896 = vmatpush.bf16.msra.mxu0 0
        %2897 = vmatpush.bf16.msra.mxu0 0
        %2898 = vmatpush.bf16.msra.mxu0 0
        %2899 = vmatpush.bf16.msra.mxu0 %v2878
        %2900 = vmatmul.bf16.gmra.mxu0 %v2881
        %v2901 = vpop.f32.mrf.mxu0
        %v2902 = vadd.f32 0.0, %v2901
        %v2903 = vpop.f32.mrf.mxu0
        %v2904 = vadd.f32 0.0, %v2903
        %2905 = vmatmul.bf16.gmra.mxu0 %v2884
        %v2906 = vpop.f32.mrf.mxu0
        %v2907 = vadd.f32 0.0, %v2906
        %v2908 = vpop.f32.mrf.mxu0
        %v2909 = vadd.f32 0.0, %v2908
        %2910 = vmatmul.bf16.gmra.mxu0 %v2887
        %v2911 = vpop.f32.mrf.mxu0
        %v2912 = vadd.f32 0.0, %v2911
        %v2913 = vpop.f32.mrf.mxu0
        %v2914 = vadd.f32 0.0, %v2913
        %2915 = vmatmul.bf16.gmra.mxu0 %v2890
        %v2916 = vpop.f32.mrf.mxu0
        %v2917 = vadd.f32 0.0, %v2916
        %v2918 = vpop.f32.mrf.mxu0
        %v2919 = vadd.f32 0.0, %v2918
        %2920 = vdwg.mxu0
        %v2921 = vadd.f32 %v2843, %v2902
        %v2922 = vadd.f32 %v2844, %v2904
        %v2923 = vadd.f32 %v2845, %v2907
        %v2924 = vadd.f32 %v2846, %v2909
        %v2925 = vadd.f32 %v2847, %v2912
        %v2926 = vadd.f32 %v2848, %v2914
        %v2927 = vadd.f32 %v2849, %v2917
        %v2928 = vadd.f32 %v2850, %v2919
        %s2929 = scalar_lea.vmem %s7, 40
        %v2930 = vld [vmem:[%s2929] sm:$0xf]
        %v2931 = vld [vmem:[%s2929 + $0x4] sm:$0xf]
        %v2940 = vunpack.c.l.b16 %v1887
        %v2941 = vunpack.c.l.b16 %v1888
        %v2942 = vunpack.c.l.b16 %v1889
        %v2943 = vunpack.c.l.b16 %v1890
        %v2944 = vunpack.c.l.b16 %v1891
        %v2945 = vunpack.c.l.b16 %v1892
        %v2946 = vunpack.c.l.b16 %v1893
        %v2947 = vunpack.c.l.b16 %v1894
        %v2948 = vpack.c.b16 %v2941, %v2940
        %v2949 = vpack.c.b16 %v2943, %v2942
        %v2950 = vpack.c.b16 %v2945, %v2944
        %v2951 = vpack.c.b16 %v2947, %v2946
        %v2954 = vunpack.c.l.b16 %v2930
        %v2955 = vunpack.c.l.b16 %v2931
        %v2956 = vpack.c.b16 %v2955, %v2954
        %v2959 = vsel %vm2528, %v2948, 0
        %v2962 = vsel %vm2528, %v2949, 0
        %v2965 = vsel %vm2528, %v2950, 0
        %v2968 = vsel %vm2528, %v2951, 0
        %2970 = vmatpush.bf16.msra.mxu0 0
        %2971 = vmatpush.bf16.msra.mxu0 0
        %2972 = vmatpush.bf16.msra.mxu0 0
        %2973 = vmatpush.bf16.msra.mxu0 0
        %2974 = vmatpush.bf16.msra.mxu0 0
        %2975 = vmatpush.bf16.msra.mxu0 0
        %2976 = vmatpush.bf16.msra.mxu0 0
        %2977 = vmatpush.bf16.msra.mxu0 %v2956
        %2978 = vmatmul.bf16.gmra.mxu0 %v2959
        %v2979 = vpop.f32.mrf.mxu0
        %v2980 = vadd.f32 0.0, %v2979
        %v2981 = vpop.f32.mrf.mxu0
        %v2982 = vadd.f32 0.0, %v2981
        %2983 = vmatmul.bf16.gmra.mxu0 %v2962
        %v2984 = vpop.f32.mrf.mxu0
        %v2985 = vadd.f32 0.0, %v2984
        %v2986 = vpop.f32.mrf.mxu0
        %v2987 = vadd.f32 0.0, %v2986
        %2988 = vmatmul.bf16.gmra.mxu0 %v2965
        %v2989 = vpop.f32.mrf.mxu0
        %v2990 = vadd.f32 0.0, %v2989
        %v2991 = vpop.f32.mrf.mxu0
        %v2992 = vadd.f32 0.0, %v2991
        %2993 = vmatmul.bf16.gmra.mxu0 %v2968
        %v2994 = vpop.f32.mrf.mxu0
        %v2995 = vadd.f32 0.0, %v2994
        %v2996 = vpop.f32.mrf.mxu0
        %v2997 = vadd.f32 0.0, %v2996
        %2998 = vdwg.mxu0
        %v2999 = vadd.f32 %v2921, %v2980
        %v3000 = vadd.f32 %v2922, %v2982
        %v3001 = vadd.f32 %v2923, %v2985
        %v3002 = vadd.f32 %v2924, %v2987
        %v3003 = vadd.f32 %v2925, %v2990
        %v3004 = vadd.f32 %v2926, %v2992
        %v3005 = vadd.f32 %v2927, %v2995
        %v3006 = vadd.f32 %v2928, %v2997
        %s3007 = scalar_lea.vmem %s7, 48
        %v3008 = vld [vmem:[%s3007] sm:$0xf]
        %v3009 = vld [vmem:[%s3007 + $0x4] sm:$0xf]
        %v3018 = vunpack.c.l.b16 %v1895
        %v3019 = vunpack.c.l.b16 %v1896
        %v3020 = vunpack.c.l.b16 %v1897
        %v3021 = vunpack.c.l.b16 %v1898
        %v3022 = vunpack.c.l.b16 %v1899
        %v3023 = vunpack.c.l.b16 %v1900
        %v3024 = vunpack.c.l.b16 %v1901
        %v3025 = vunpack.c.l.b16 %v1902
        %v3026 = vpack.c.b16 %v3019, %v3018
        %v3027 = vpack.c.b16 %v3021, %v3020
        %v3028 = vpack.c.b16 %v3023, %v3022
        %v3029 = vpack.c.b16 %v3025, %v3024
        %v3032 = vunpack.c.l.b16 %v3008
        %v3033 = vunpack.c.l.b16 %v3009
        %v3034 = vpack.c.b16 %v3033, %v3032
        %v3037 = vsel %vm2528, %v3026, 0
        %v3040 = vsel %vm2528, %v3027, 0
        %v3043 = vsel %vm2528, %v3028, 0
        %v3046 = vsel %vm2528, %v3029, 0
        %3048 = vmatpush.bf16.msra.mxu0 0
        %3049 = vmatpush.bf16.msra.mxu0 0
        %3050 = vmatpush.bf16.msra.mxu0 0
        %3051 = vmatpush.bf16.msra.mxu0 0
        %3052 = vmatpush.bf16.msra.mxu0 0
        %3053 = vmatpush.bf16.msra.mxu0 0
        %3054 = vmatpush.bf16.msra.mxu0 0
        %3055 = vmatpush.bf16.msra.mxu0 %v3034
        %3056 = vmatmul.bf16.gmra.mxu0 %v3037
        %v3057 = vpop.f32.mrf.mxu0
        %v3058 = vadd.f32 0.0, %v3057
        %v3059 = vpop.f32.mrf.mxu0
        %v3060 = vadd.f32 0.0, %v3059
        %3061 = vmatmul.bf16.gmra.mxu0 %v3040
        %v3062 = vpop.f32.mrf.mxu0
        %v3063 = vadd.f32 0.0, %v3062
        %v3064 = vpop.f32.mrf.mxu0
        %v3065 = vadd.f32 0.0, %v3064
        %3066 = vmatmul.bf16.gmra.mxu0 %v3043
        %v3067 = vpop.f32.mrf.mxu0
        %v3068 = vadd.f32 0.0, %v3067
        %v3069 = vpop.f32.mrf.mxu0
        %v3070 = vadd.f32 0.0, %v3069
        %3071 = vmatmul.bf16.gmra.mxu0 %v3046
        %v3072 = vpop.f32.mrf.mxu0
        %v3073 = vadd.f32 0.0, %v3072
        %v3074 = vpop.f32.mrf.mxu0
        %v3075 = vadd.f32 0.0, %v3074
        %3076 = vdwg.mxu0
        %v3077 = vadd.f32 %v2999, %v3058
        %v3078 = vadd.f32 %v3000, %v3060
        %v3079 = vadd.f32 %v3001, %v3063
        %v3080 = vadd.f32 %v3002, %v3065
        %v3081 = vadd.f32 %v3003, %v3068
        %v3082 = vadd.f32 %v3004, %v3070
        %v3083 = vadd.f32 %v3005, %v3073
        %v3084 = vadd.f32 %v3006, %v3075
        %s3085 = scalar_lea.vmem %s7, 56
        %v3086 = vld [vmem:[%s3085] sm:$0xf]
        %v3087 = vld [vmem:[%s3085 + $0x4] sm:$0xf]
        %v3096 = vunpack.c.l.b16 %v1903
        %v3097 = vunpack.c.l.b16 %v1904
        %v3098 = vunpack.c.l.b16 %v1905
        %v3099 = vunpack.c.l.b16 %v1906
        %v3100 = vunpack.c.l.b16 %v1907
        %v3101 = vunpack.c.l.b16 %v1908
        %v3102 = vunpack.c.l.b16 %v1909
        %v3103 = vunpack.c.l.b16 %v1910
        %v3104 = vpack.c.b16 %v3097, %v3096
        %v3105 = vpack.c.b16 %v3099, %v3098
        %v3106 = vpack.c.b16 %v3101, %v3100
        %v3107 = vpack.c.b16 %v3103, %v3102
        %v3110 = vunpack.c.l.b16 %v3086
        %v3111 = vunpack.c.l.b16 %v3087
        %v3112 = vpack.c.b16 %v3111, %v3110
        %v3115 = vsel %vm2528, %v3104, 0
        %v3118 = vsel %vm2528, %v3105, 0
        %v3121 = vsel %vm2528, %v3106, 0
        %v3124 = vsel %vm2528, %v3107, 0
        %3126 = vmatpush.bf16.msra.mxu0 0
        %3127 = vmatpush.bf16.msra.mxu0 0
        %3128 = vmatpush.bf16.msra.mxu0 0
        %3129 = vmatpush.bf16.msra.mxu0 0
        %3130 = vmatpush.bf16.msra.mxu0 0
        %3131 = vmatpush.bf16.msra.mxu0 0
        %3132 = vmatpush.bf16.msra.mxu0 0
        %3133 = vmatpush.bf16.msra.mxu0 %v3112
        %3134 = vmatmul.bf16.gmra.mxu0 %v3115
        %v3135 = vpop.f32.mrf.mxu0
        %v3136 = vadd.f32 0.0, %v3135
        %v3137 = vpop.f32.mrf.mxu0
        %v3138 = vadd.f32 0.0, %v3137
        %3139 = vmatmul.bf16.gmra.mxu0 %v3118
        %v3140 = vpop.f32.mrf.mxu0
        %v3141 = vadd.f32 0.0, %v3140
        %v3142 = vpop.f32.mrf.mxu0
        %v3143 = vadd.f32 0.0, %v3142
        %3144 = vmatmul.bf16.gmra.mxu0 %v3121
        %v3145 = vpop.f32.mrf.mxu0
        %v3146 = vadd.f32 0.0, %v3145
        %v3147 = vpop.f32.mrf.mxu0
        %v3148 = vadd.f32 0.0, %v3147
        %3149 = vmatmul.bf16.gmra.mxu0 %v3124
        %v3150 = vpop.f32.mrf.mxu0
        %v3151 = vadd.f32 0.0, %v3150
        %v3152 = vpop.f32.mrf.mxu0
        %v3153 = vadd.f32 0.0, %v3152
        %3154 = vdwg.mxu0
        %v3155 = vadd.f32 %v3077, %v3136
        %v3156 = vadd.f32 %v3078, %v3138
        %v3157 = vadd.f32 %v3079, %v3141
        %v3158 = vadd.f32 %v3080, %v3143
        %v3159 = vadd.f32 %v3081, %v3146
        %v3160 = vadd.f32 %v3082, %v3148
        %v3161 = vadd.f32 %v3083, %v3151
        %v3162 = vadd.f32 %v3084, %v3153
        %s3163 = scalar_lea.vmem %s7, 64
        %v3164 = vld [vmem:[%s3163] sm:$0xf]
        %v3165 = vld [vmem:[%s3163 + $0x4] sm:$0xf]
        %v3174 = vunpack.c.l.b16 %v1911
        %v3175 = vunpack.c.l.b16 %v1912
        %v3176 = vunpack.c.l.b16 %v1913
        %v3177 = vunpack.c.l.b16 %v1914
        %v3178 = vunpack.c.l.b16 %v1915
        %v3179 = vunpack.c.l.b16 %v1916
        %v3180 = vunpack.c.l.b16 %v1917
        %v3181 = vunpack.c.l.b16 %v1918
        %v3182 = vpack.c.b16 %v3175, %v3174
        %v3183 = vpack.c.b16 %v3177, %v3176
        %v3184 = vpack.c.b16 %v3179, %v3178
        %v3185 = vpack.c.b16 %v3181, %v3180
        %v3188 = vunpack.c.l.b16 %v3164
        %v3189 = vunpack.c.l.b16 %v3165
        %v3190 = vpack.c.b16 %v3189, %v3188
        %v3193 = vsel %vm2528, %v3182, 0
        %v3196 = vsel %vm2528, %v3183, 0
        %v3199 = vsel %vm2528, %v3184, 0
        %v3202 = vsel %vm2528, %v3185, 0
        %3204 = vmatpush.bf16.msra.mxu0 0
        %3205 = vmatpush.bf16.msra.mxu0 0
        %3206 = vmatpush.bf16.msra.mxu0 0
        %3207 = vmatpush.bf16.msra.mxu0 0
        %3208 = vmatpush.bf16.msra.mxu0 0
        %3209 = vmatpush.bf16.msra.mxu0 0
        %3210 = vmatpush.bf16.msra.mxu0 0
        %3211 = vmatpush.bf16.msra.mxu0 %v3190
        %3212 = vmatmul.bf16.gmra.mxu0 %v3193
        %v3213 = vpop.f32.mrf.mxu0
        %v3214 = vadd.f32 0.0, %v3213
        %v3215 = vpop.f32.mrf.mxu0
        %v3216 = vadd.f32 0.0, %v3215
        %3217 = vmatmul.bf16.gmra.mxu0 %v3196
        %v3218 = vpop.f32.mrf.mxu0
        %v3219 = vadd.f32 0.0, %v3218
        %v3220 = vpop.f32.mrf.mxu0
        %v3221 = vadd.f32 0.0, %v3220
        %3222 = vmatmul.bf16.gmra.mxu0 %v3199
        %v3223 = vpop.f32.mrf.mxu0
        %v3224 = vadd.f32 0.0, %v3223
        %v3225 = vpop.f32.mrf.mxu0
        %v3226 = vadd.f32 0.0, %v3225
        %3227 = vmatmul.bf16.gmra.mxu0 %v3202
        %v3228 = vpop.f32.mrf.mxu0
        %v3229 = vadd.f32 0.0, %v3228
        %v3230 = vpop.f32.mrf.mxu0
        %v3231 = vadd.f32 0.0, %v3230
        %3232 = vdwg.mxu0
        %v3233 = vadd.f32 %v3155, %v3214
        %v3234 = vadd.f32 %v3156, %v3216
        %v3235 = vadd.f32 %v3157, %v3219
        %v3236 = vadd.f32 %v3158, %v3221
        %v3237 = vadd.f32 %v3159, %v3224
        %v3238 = vadd.f32 %v3160, %v3226
        %v3239 = vadd.f32 %v3161, %v3229
        %v3240 = vadd.f32 %v3162, %v3231
        %s3241 = scalar_lea.vmem %s7, 72
        %v3242 = vld [vmem:[%s3241] sm:$0xf]
        %v3243 = vld [vmem:[%s3241 + $0x4] sm:$0xf]
        %v3252 = vunpack.c.l.b16 %v1919
        %v3253 = vunpack.c.l.b16 %v1920
        %v3254 = vunpack.c.l.b16 %v1921
        %v3255 = vunpack.c.l.b16 %v1922
        %v3256 = vunpack.c.l.b16 %v1923
        %v3257 = vunpack.c.l.b16 %v1924
        %v3258 = vunpack.c.l.b16 %v1925
        %v3259 = vunpack.c.l.b16 %v1926
        %v3260 = vpack.c.b16 %v3253, %v3252
        %v3261 = vpack.c.b16 %v3255, %v3254
        %v3262 = vpack.c.b16 %v3257, %v3256
        %v3263 = vpack.c.b16 %v3259, %v3258
        %v3266 = vunpack.c.l.b16 %v3242
        %v3267 = vunpack.c.l.b16 %v3243
        %v3268 = vpack.c.b16 %v3267, %v3266
        %v3271 = vsel %vm2528, %v3260, 0
        %v3274 = vsel %vm2528, %v3261, 0
        %v3277 = vsel %vm2528, %v3262, 0
        %v3280 = vsel %vm2528, %v3263, 0
        %3282 = vmatpush.bf16.msra.mxu0 0
        %3283 = vmatpush.bf16.msra.mxu0 0
        %3284 = vmatpush.bf16.msra.mxu0 0
        %3285 = vmatpush.bf16.msra.mxu0 0
        %3286 = vmatpush.bf16.msra.mxu0 0
        %3287 = vmatpush.bf16.msra.mxu0 0
        %3288 = vmatpush.bf16.msra.mxu0 0
        %3289 = vmatpush.bf16.msra.mxu0 %v3268
        %3290 = vmatmul.bf16.gmra.mxu0 %v3271
        %v3291 = vpop.f32.mrf.mxu0
        %v3292 = vadd.f32 0.0, %v3291
        %v3293 = vpop.f32.mrf.mxu0
        %v3294 = vadd.f32 0.0, %v3293
        %3295 = vmatmul.bf16.gmra.mxu0 %v3274
        %v3296 = vpop.f32.mrf.mxu0
        %v3297 = vadd.f32 0.0, %v3296
        %v3298 = vpop.f32.mrf.mxu0
        %v3299 = vadd.f32 0.0, %v3298
        %3300 = vmatmul.bf16.gmra.mxu0 %v3277
        %v3301 = vpop.f32.mrf.mxu0
        %v3302 = vadd.f32 0.0, %v3301
        %v3303 = vpop.f32.mrf.mxu0
        %v3304 = vadd.f32 0.0, %v3303
        %3305 = vmatmul.bf16.gmra.mxu0 %v3280
        %v3306 = vpop.f32.mrf.mxu0
        %v3307 = vadd.f32 0.0, %v3306
        %v3308 = vpop.f32.mrf.mxu0
        %v3309 = vadd.f32 0.0, %v3308
        %3310 = vdwg.mxu0
        %v3311 = vadd.f32 %v3233, %v3292
        %v3312 = vadd.f32 %v3234, %v3294
        %v3313 = vadd.f32 %v3235, %v3297
        %v3314 = vadd.f32 %v3236, %v3299
        %v3315 = vadd.f32 %v3237, %v3302
        %v3316 = vadd.f32 %v3238, %v3304
        %v3317 = vadd.f32 %v3239, %v3307
        %v3318 = vadd.f32 %v3240, %v3309
        %s3319 = scalar_lea.vmem %s7, 80
        %v3320 = vld [vmem:[%s3319] sm:$0xf]
        %v3321 = vld [vmem:[%s3319 + $0x4] sm:$0xf]
        %v3330 = vunpack.c.l.b16 %v1927
        %v3331 = vunpack.c.l.b16 %v1928
        %v3332 = vunpack.c.l.b16 %v1929
        %v3333 = vunpack.c.l.b16 %v1930
        %v3334 = vunpack.c.l.b16 %v1931
        %v3335 = vunpack.c.l.b16 %v1932
        %v3336 = vunpack.c.l.b16 %v1933
        %v3337 = vunpack.c.l.b16 %v1934
        %v3338 = vpack.c.b16 %v3331, %v3330
        %v3339 = vpack.c.b16 %v3333, %v3332
        %v3340 = vpack.c.b16 %v3335, %v3334
        %v3341 = vpack.c.b16 %v3337, %v3336
        %v3344 = vunpack.c.l.b16 %v3320
        %v3345 = vunpack.c.l.b16 %v3321
        %v3346 = vpack.c.b16 %v3345, %v3344
        %v3349 = vsel %vm2528, %v3338, 0
        %v3352 = vsel %vm2528, %v3339, 0
        %v3355 = vsel %vm2528, %v3340, 0
        %v3358 = vsel %vm2528, %v3341, 0
        %3360 = vmatpush.bf16.msra.mxu0 0
        %3361 = vmatpush.bf16.msra.mxu0 0
        %3362 = vmatpush.bf16.msra.mxu0 0
        %3363 = vmatpush.bf16.msra.mxu0 0
        %3364 = vmatpush.bf16.msra.mxu0 0
        %3365 = vmatpush.bf16.msra.mxu0 0
        %3366 = vmatpush.bf16.msra.mxu0 0
        %3367 = vmatpush.bf16.msra.mxu0 %v3346
        %3368 = vmatmul.bf16.gmra.mxu0 %v3349
        %v3369 = vpop.f32.mrf.mxu0
        %v3370 = vadd.f32 0.0, %v3369
        %v3371 = vpop.f32.mrf.mxu0
        %v3372 = vadd.f32 0.0, %v3371
        %3373 = vmatmul.bf16.gmra.mxu0 %v3352
        %v3374 = vpop.f32.mrf.mxu0
        %v3375 = vadd.f32 0.0, %v3374
        %v3376 = vpop.f32.mrf.mxu0
        %v3377 = vadd.f32 0.0, %v3376
        %3378 = vmatmul.bf16.gmra.mxu0 %v3355
        %v3379 = vpop.f32.mrf.mxu0
        %v3380 = vadd.f32 0.0, %v3379
        %v3381 = vpop.f32.mrf.mxu0
        %v3382 = vadd.f32 0.0, %v3381
        %3383 = vmatmul.bf16.gmra.mxu0 %v3358
        %v3384 = vpop.f32.mrf.mxu0
        %v3385 = vadd.f32 0.0, %v3384
        %v3386 = vpop.f32.mrf.mxu0
        %v3387 = vadd.f32 0.0, %v3386
        %3388 = vdwg.mxu0
        %v3389 = vadd.f32 %v3311, %v3370
        %v3390 = vadd.f32 %v3312, %v3372
        %v3391 = vadd.f32 %v3313, %v3375
        %v3392 = vadd.f32 %v3314, %v3377
        %v3393 = vadd.f32 %v3315, %v3380
        %v3394 = vadd.f32 %v3316, %v3382
        %v3395 = vadd.f32 %v3317, %v3385
        %v3396 = vadd.f32 %v3318, %v3387
        %s3397 = scalar_lea.vmem %s7, 88
        %v3398 = vld [vmem:[%s3397] sm:$0xf]
        %v3399 = vld [vmem:[%s3397 + $0x4] sm:$0xf]
        %v3408 = vunpack.c.l.b16 %v1935
        %v3409 = vunpack.c.l.b16 %v1936
        %v3410 = vunpack.c.l.b16 %v1937
        %v3411 = vunpack.c.l.b16 %v1938
        %v3412 = vunpack.c.l.b16 %v1939
        %v3413 = vunpack.c.l.b16 %v1940
        %v3414 = vunpack.c.l.b16 %v1941
        %v3415 = vunpack.c.l.b16 %v1942
        %v3416 = vpack.c.b16 %v3409, %v3408
        %v3417 = vpack.c.b16 %v3411, %v3410
        %v3418 = vpack.c.b16 %v3413, %v3412
        %v3419 = vpack.c.b16 %v3415, %v3414
        %v3422 = vunpack.c.l.b16 %v3398
        %v3423 = vunpack.c.l.b16 %v3399
        %v3424 = vpack.c.b16 %v3423, %v3422
        %v3427 = vsel %vm2528, %v3416, 0
        %v3430 = vsel %vm2528, %v3417, 0
        %v3433 = vsel %vm2528, %v3418, 0
        %v3436 = vsel %vm2528, %v3419, 0
        %3438 = vmatpush.bf16.msra.mxu0 0
        %3439 = vmatpush.bf16.msra.mxu0 0
        %3440 = vmatpush.bf16.msra.mxu0 0
        %3441 = vmatpush.bf16.msra.mxu0 0
        %3442 = vmatpush.bf16.msra.mxu0 0
        %3443 = vmatpush.bf16.msra.mxu0 0
        %3444 = vmatpush.bf16.msra.mxu0 0
        %3445 = vmatpush.bf16.msra.mxu0 %v3424
        %3446 = vmatmul.bf16.gmra.mxu0 %v3427
        %v3447 = vpop.f32.mrf.mxu0
        %v3448 = vadd.f32 0.0, %v3447
        %v3449 = vpop.f32.mrf.mxu0
        %v3450 = vadd.f32 0.0, %v3449
        %3451 = vmatmul.bf16.gmra.mxu0 %v3430
        %v3452 = vpop.f32.mrf.mxu0
        %v3453 = vadd.f32 0.0, %v3452
        %v3454 = vpop.f32.mrf.mxu0
        %v3455 = vadd.f32 0.0, %v3454
        %3456 = vmatmul.bf16.gmra.mxu0 %v3433
        %v3457 = vpop.f32.mrf.mxu0
        %v3458 = vadd.f32 0.0, %v3457
        %v3459 = vpop.f32.mrf.mxu0
        %v3460 = vadd.f32 0.0, %v3459
        %3461 = vmatmul.bf16.gmra.mxu0 %v3436
        %v3462 = vpop.f32.mrf.mxu0
        %v3463 = vadd.f32 0.0, %v3462
        %v3464 = vpop.f32.mrf.mxu0
        %v3465 = vadd.f32 0.0, %v3464
        %3466 = vdwg.mxu0
        %v3467 = vadd.f32 %v3389, %v3448
        %v3468 = vadd.f32 %v3390, %v3450
        %v3469 = vadd.f32 %v3391, %v3453
        %v3470 = vadd.f32 %v3392, %v3455
        %v3471 = vadd.f32 %v3393, %v3458
        %v3472 = vadd.f32 %v3394, %v3460
        %v3473 = vadd.f32 %v3395, %v3463
        %v3474 = vadd.f32 %v3396, %v3465
        %s3475 = scalar_lea.vmem %s7, 96
        %v3476 = vld [vmem:[%s3475] sm:$0xf]
        %v3477 = vld [vmem:[%s3475 + $0x4] sm:$0xf]
        %v3486 = vunpack.c.l.b16 %v1943
        %v3487 = vunpack.c.l.b16 %v1944
        %v3488 = vunpack.c.l.b16 %v1945
        %v3489 = vunpack.c.l.b16 %v1946
        %v3490 = vunpack.c.l.b16 %v1947
        %v3491 = vunpack.c.l.b16 %v1948
        %v3492 = vunpack.c.l.b16 %v1949
        %v3493 = vunpack.c.l.b16 %v1950
        %v3494 = vpack.c.b16 %v3487, %v3486
        %v3495 = vpack.c.b16 %v3489, %v3488
        %v3496 = vpack.c.b16 %v3491, %v3490
        %v3497 = vpack.c.b16 %v3493, %v3492
        %v3500 = vunpack.c.l.b16 %v3476
        %v3501 = vunpack.c.l.b16 %v3477
        %v3502 = vpack.c.b16 %v3501, %v3500
        %v3505 = vsel %vm2528, %v3494, 0
        %v3508 = vsel %vm2528, %v3495, 0
        %v3511 = vsel %vm2528, %v3496, 0
        %v3514 = vsel %vm2528, %v3497, 0
        %3516 = vmatpush.bf16.msra.mxu0 0
        %3517 = vmatpush.bf16.msra.mxu0 0
        %3518 = vmatpush.bf16.msra.mxu0 0
        %3519 = vmatpush.bf16.msra.mxu0 0
        %3520 = vmatpush.bf16.msra.mxu0 0
        %3521 = vmatpush.bf16.msra.mxu0 0
        %3522 = vmatpush.bf16.msra.mxu0 0
        %3523 = vmatpush.bf16.msra.mxu0 %v3502
        %3524 = vmatmul.bf16.gmra.mxu0 %v3505
        %v3525 = vpop.f32.mrf.mxu0
        %v3526 = vadd.f32 0.0, %v3525
        %v3527 = vpop.f32.mrf.mxu0
        %v3528 = vadd.f32 0.0, %v3527
        %3529 = vmatmul.bf16.gmra.mxu0 %v3508
        %v3530 = vpop.f32.mrf.mxu0
        %v3531 = vadd.f32 0.0, %v3530
        %v3532 = vpop.f32.mrf.mxu0
        %v3533 = vadd.f32 0.0, %v3532
        %3534 = vmatmul.bf16.gmra.mxu0 %v3511
        %v3535 = vpop.f32.mrf.mxu0
        %v3536 = vadd.f32 0.0, %v3535
        %v3537 = vpop.f32.mrf.mxu0
        %v3538 = vadd.f32 0.0, %v3537
        %3539 = vmatmul.bf16.gmra.mxu0 %v3514
        %v3540 = vpop.f32.mrf.mxu0
        %v3541 = vadd.f32 0.0, %v3540
        %v3542 = vpop.f32.mrf.mxu0
        %v3543 = vadd.f32 0.0, %v3542
        %3544 = vdwg.mxu0
        %v3545 = vadd.f32 %v3467, %v3526
        %v3546 = vadd.f32 %v3468, %v3528
        %v3547 = vadd.f32 %v3469, %v3531
        %v3548 = vadd.f32 %v3470, %v3533
        %v3549 = vadd.f32 %v3471, %v3536
        %v3550 = vadd.f32 %v3472, %v3538
        %v3551 = vadd.f32 %v3473, %v3541
        %v3552 = vadd.f32 %v3474, %v3543
        %s3553 = scalar_lea.vmem %s7, 104
        %v3554 = vld [vmem:[%s3553] sm:$0xf]
        %v3555 = vld [vmem:[%s3553 + $0x4] sm:$0xf]
        %v3564 = vunpack.c.l.b16 %v1951
        %v3565 = vunpack.c.l.b16 %v1952
        %v3566 = vunpack.c.l.b16 %v1953
        %v3567 = vunpack.c.l.b16 %v1954
        %v3568 = vunpack.c.l.b16 %v1955
        %v3569 = vunpack.c.l.b16 %v1956
        %v3570 = vunpack.c.l.b16 %v1957
        %v3571 = vunpack.c.l.b16 %v1958
        %v3572 = vpack.c.b16 %v3565, %v3564
        %v3573 = vpack.c.b16 %v3567, %v3566
        %v3574 = vpack.c.b16 %v3569, %v3568
        %v3575 = vpack.c.b16 %v3571, %v3570
        %v3578 = vunpack.c.l.b16 %v3554
        %v3579 = vunpack.c.l.b16 %v3555
        %v3580 = vpack.c.b16 %v3579, %v3578
        %v3583 = vsel %vm2528, %v3572, 0
        %v3586 = vsel %vm2528, %v3573, 0
        %v3589 = vsel %vm2528, %v3574, 0
        %v3592 = vsel %vm2528, %v3575, 0
        %3594 = vmatpush.bf16.msra.mxu0 0
        %3595 = vmatpush.bf16.msra.mxu0 0
        %3596 = vmatpush.bf16.msra.mxu0 0
        %3597 = vmatpush.bf16.msra.mxu0 0
        %3598 = vmatpush.bf16.msra.mxu0 0
        %3599 = vmatpush.bf16.msra.mxu0 0
        %3600 = vmatpush.bf16.msra.mxu0 0
        %3601 = vmatpush.bf16.msra.mxu0 %v3580
        %3602 = vmatmul.bf16.gmra.mxu0 %v3583
        %v3603 = vpop.f32.mrf.mxu0
        %v3604 = vadd.f32 0.0, %v3603
        %v3605 = vpop.f32.mrf.mxu0
        %v3606 = vadd.f32 0.0, %v3605
        %3607 = vmatmul.bf16.gmra.mxu0 %v3586
        %v3608 = vpop.f32.mrf.mxu0
        %v3609 = vadd.f32 0.0, %v3608
        %v3610 = vpop.f32.mrf.mxu0
        %v3611 = vadd.f32 0.0, %v3610
        %3612 = vmatmul.bf16.gmra.mxu0 %v3589
        %v3613 = vpop.f32.mrf.mxu0
        %v3614 = vadd.f32 0.0, %v3613
        %v3615 = vpop.f32.mrf.mxu0
        %v3616 = vadd.f32 0.0, %v3615
        %3617 = vmatmul.bf16.gmra.mxu0 %v3592
        %v3618 = vpop.f32.mrf.mxu0
        %v3619 = vadd.f32 0.0, %v3618
        %v3620 = vpop.f32.mrf.mxu0
        %v3621 = vadd.f32 0.0, %v3620
        %3622 = vdwg.mxu0
        %v3623 = vadd.f32 %v3545, %v3604
        %v3624 = vadd.f32 %v3546, %v3606
        %v3625 = vadd.f32 %v3547, %v3609
        %v3626 = vadd.f32 %v3548, %v3611
        %v3627 = vadd.f32 %v3549, %v3614
        %v3628 = vadd.f32 %v3550, %v3616
        %v3629 = vadd.f32 %v3551, %v3619
        %v3630 = vadd.f32 %v3552, %v3621
        %s3631 = scalar_lea.vmem %s7, 112
        %v3632 = vld [vmem:[%s3631] sm:$0xf]
        %v3633 = vld [vmem:[%s3631 + $0x4] sm:$0xf]
        %v3642 = vunpack.c.l.b16 %v1959
        %v3643 = vunpack.c.l.b16 %v1960
        %v3644 = vunpack.c.l.b16 %v1961
        %v3645 = vunpack.c.l.b16 %v1962
        %v3646 = vunpack.c.l.b16 %v1963
        %v3647 = vunpack.c.l.b16 %v1964
        %v3648 = vunpack.c.l.b16 %v1965
        %v3649 = vunpack.c.l.b16 %v1966
        %v3650 = vpack.c.b16 %v3643, %v3642
        %v3651 = vpack.c.b16 %v3645, %v3644
        %v3652 = vpack.c.b16 %v3647, %v3646
        %v3653 = vpack.c.b16 %v3649, %v3648
        %v3656 = vunpack.c.l.b16 %v3632
        %v3657 = vunpack.c.l.b16 %v3633
        %v3658 = vpack.c.b16 %v3657, %v3656
        %v3661 = vsel %vm2528, %v3650, 0
        %v3664 = vsel %vm2528, %v3651, 0
        %v3667 = vsel %vm2528, %v3652, 0
        %v3670 = vsel %vm2528, %v3653, 0
        %3672 = vmatpush.bf16.msra.mxu0 0
        %3673 = vmatpush.bf16.msra.mxu0 0
        %3674 = vmatpush.bf16.msra.mxu0 0
        %3675 = vmatpush.bf16.msra.mxu0 0
        %3676 = vmatpush.bf16.msra.mxu0 0
        %3677 = vmatpush.bf16.msra.mxu0 0
        %3678 = vmatpush.bf16.msra.mxu0 0
        %3679 = vmatpush.bf16.msra.mxu0 %v3658
        %3680 = vmatmul.bf16.gmra.mxu0 %v3661
        %v3681 = vpop.f32.mrf.mxu0
        %v3682 = vadd.f32 0.0, %v3681
        %v3683 = vpop.f32.mrf.mxu0
        %v3684 = vadd.f32 0.0, %v3683
        %3685 = vmatmul.bf16.gmra.mxu0 %v3664
        %v3686 = vpop.f32.mrf.mxu0
        %v3687 = vadd.f32 0.0, %v3686
        %v3688 = vpop.f32.mrf.mxu0
        %v3689 = vadd.f32 0.0, %v3688
        %3690 = vmatmul.bf16.gmra.mxu0 %v3667
        %v3691 = vpop.f32.mrf.mxu0
        %v3692 = vadd.f32 0.0, %v3691
        %v3693 = vpop.f32.mrf.mxu0
        %v3694 = vadd.f32 0.0, %v3693
        %3695 = vmatmul.bf16.gmra.mxu0 %v3670
        %v3696 = vpop.f32.mrf.mxu0
        %v3697 = vadd.f32 0.0, %v3696
        %v3698 = vpop.f32.mrf.mxu0
        %v3699 = vadd.f32 0.0, %v3698
        %3700 = vdwg.mxu0
        %v3701 = vadd.f32 %v3623, %v3682
        %v3702 = vadd.f32 %v3624, %v3684
        %v3703 = vadd.f32 %v3625, %v3687
        %v3704 = vadd.f32 %v3626, %v3689
        %v3705 = vadd.f32 %v3627, %v3692
        %v3706 = vadd.f32 %v3628, %v3694
        %v3707 = vadd.f32 %v3629, %v3697
        %v3708 = vadd.f32 %v3630, %v3699
        %s3709 = scalar_lea.vmem %s7, 120
        %v3710 = vld [vmem:[%s3709] sm:$0xf]
        %v3711 = vld [vmem:[%s3709 + $0x4] sm:$0xf]
        %v3720 = vunpack.c.l.b16 %v1967
        %v3721 = vunpack.c.l.b16 %v1968
        %v3722 = vunpack.c.l.b16 %v1969
        %v3723 = vunpack.c.l.b16 %v1970
        %v3724 = vunpack.c.l.b16 %v1971
        %v3725 = vunpack.c.l.b16 %v1972
        %v3726 = vunpack.c.l.b16 %v1973
        %v3727 = vunpack.c.l.b16 %v1974
        %v3728 = vpack.c.b16 %v3721, %v3720
        %v3729 = vpack.c.b16 %v3723, %v3722
        %v3730 = vpack.c.b16 %v3725, %v3724
        %v3731 = vpack.c.b16 %v3727, %v3726
        %v3734 = vunpack.c.l.b16 %v3710
        %v3735 = vunpack.c.l.b16 %v3711
        %v3736 = vpack.c.b16 %v3735, %v3734
        %v3739 = vsel %vm2528, %v3728, 0
        %v3742 = vsel %vm2528, %v3729, 0
        %v3745 = vsel %vm2528, %v3730, 0
        %v3748 = vsel %vm2528, %v3731, 0
        %3750 = vmatpush.bf16.msra.mxu0 0
        %3751 = vmatpush.bf16.msra.mxu0 0
        %3752 = vmatpush.bf16.msra.mxu0 0
        %3753 = vmatpush.bf16.msra.mxu0 0
        %3754 = vmatpush.bf16.msra.mxu0 0
        %3755 = vmatpush.bf16.msra.mxu0 0
        %3756 = vmatpush.bf16.msra.mxu0 0
        %3757 = vmatpush.bf16.msra.mxu0 %v3736
        %3758 = vmatmul.bf16.gmra.mxu0 %v3739
        %v3759 = vpop.f32.mrf.mxu0
        %v3760 = vadd.f32 0.0, %v3759
        %v3761 = vpop.f32.mrf.mxu0
        %v3762 = vadd.f32 0.0, %v3761
        %3763 = vmatmul.bf16.gmra.mxu0 %v3742
        %v3764 = vpop.f32.mrf.mxu0
        %v3765 = vadd.f32 0.0, %v3764
        %v3766 = vpop.f32.mrf.mxu0
        %v3767 = vadd.f32 0.0, %v3766
        %3768 = vmatmul.bf16.gmra.mxu0 %v3745
        %v3769 = vpop.f32.mrf.mxu0
        %v3770 = vadd.f32 0.0, %v3769
        %v3771 = vpop.f32.mrf.mxu0
        %v3772 = vadd.f32 0.0, %v3771
        %3773 = vmatmul.bf16.gmra.mxu0 %v3748
        %v3774 = vpop.f32.mrf.mxu0
        %v3775 = vadd.f32 0.0, %v3774
        %v3776 = vpop.f32.mrf.mxu0
        %v3777 = vadd.f32 0.0, %v3776
        %3778 = vdwg.mxu0
        %v3779 = vadd.f32 %v3701, %v3760
        %v3780 = vadd.f32 %v3702, %v3762
        %v3781 = vadd.f32 %v3703, %v3765
        %v3782 = vadd.f32 %v3704, %v3767
        %v3783 = vadd.f32 %v3705, %v3770
        %v3784 = vadd.f32 %v3706, %v3772
        %v3785 = vadd.f32 %v3707, %v3775
        %v3786 = vadd.f32 %v3708, %v3777
        %v3787 = vmax.f32 %v3779, 0.0
        %v3788 = vmax.f32 %v3780, 0.0
        %v3789 = vmax.f32 %v3781, 0.0
        %v3790 = vmax.f32 %v3782, 0.0
        %v3791 = vmax.f32 %v3783, 0.0
        %v3792 = vmax.f32 %v3784, 0.0
        %v3793 = vmax.f32 %v3785, 0.0
        %v3794 = vmax.f32 %v3786, 0.0
        %v3795 = vpack.c.bf16 %v3788, %v3787
        %v3796 = vpack.c.bf16 %v3790, %v3789
        %v3797 = vpack.c.bf16 %v3792, %v3791
        %v3798 = vpack.c.bf16 %v3794, %v3793
        %v3799 = vld [vmem:[#allocation15] sm:$0xff]
        %v3800 = vld [vmem:[#allocation15 + $0x8] sm:$0xff]
        %v3801 = vld [vmem:[#allocation15 + $0x10] sm:$0xff]
        %v3802 = vld [vmem:[#allocation15 + $0x18] sm:$0xff]
        %v3803 = vld [vmem:[#allocation15 + $0x20] sm:$0xff]
        %v3804 = vld [vmem:[#allocation15 + $0x28] sm:$0xff]
        %v3805 = vld [vmem:[#allocation15 + $0x30] sm:$0xff]
        %v3806 = vld [vmem:[#allocation15 + $0x38] sm:$0xff]
        %v3807 = vld [vmem:[#allocation16] sm:$0xff]
        %v3808 = vld [vmem:[#allocation16 + $0x8] sm:$0xff]
        %v3811 = vperm.slane %v3807, 0
        %v3812 = vperm.slane %v3807, 1
        %v3813 = vperm.slane %v3807, 2
        %v3814 = vperm.slane %v3807, 3
        %v3815 = vperm.slane %v3807, 4
        %v3816 = vperm.slane %v3807, 5
        %v3817 = vperm.slane %v3807, 6
        %v3818 = vperm.slane %v3807, 7
        %v3819 = vperm.slane %v3808, 0
        %v3820 = vperm.slane %v3808, 1
        %v3821 = vperm.slane %v3808, 2
        %v3822 = vperm.slane %v3808, 3
        %v3823 = vperm.slane %v3808, 4
        %v3824 = vperm.slane %v3808, 5
        %v3825 = vperm.slane %v3808, 6
        %v3826 = vperm.slane %v3808, 7
        %v3851 = vunpack.c.l.b16 %v3799
        %v3852 = vunpack.c.h.b16 %v3799
        %v3853 = vunpack.c.l.b16 %v3800
        %v3854 = vunpack.c.h.b16 %v3800
        %v3855 = vunpack.c.l.b16 %v3801
        %v3856 = vunpack.c.h.b16 %v3801
        %v3857 = vunpack.c.l.b16 %v3802
        %v3858 = vunpack.c.h.b16 %v3802
        %v3859 = vunpack.c.l.b16 %v3803
        %v3860 = vunpack.c.h.b16 %v3803
        %v3861 = vunpack.c.l.b16 %v3804
        %v3862 = vunpack.c.h.b16 %v3804
        %v3863 = vunpack.c.l.b16 %v3805
        %v3864 = vunpack.c.h.b16 %v3805
        %v3865 = vunpack.c.l.b16 %v3806
        %v3866 = vunpack.c.h.b16 %v3806
        %v3867 = vpack.c.b16 %v3851, %v3851
        %v3868 = vpack.c.b16 %v3852, %v3852
        %v3869 = vpack.c.b16 %v3853, %v3853
        %v3870 = vpack.c.b16 %v3854, %v3854
        %v3871 = vpack.c.b16 %v3855, %v3855
        %v3872 = vpack.c.b16 %v3856, %v3856
        %v3873 = vpack.c.b16 %v3857, %v3857
        %v3874 = vpack.c.b16 %v3858, %v3858
        %v3875 = vpack.c.b16 %v3859, %v3859
        %v3876 = vpack.c.b16 %v3860, %v3860
        %v3877 = vpack.c.b16 %v3861, %v3861
        %v3878 = vpack.c.b16 %v3862, %v3862
        %v3879 = vpack.c.b16 %v3863, %v3863
        %v3880 = vpack.c.b16 %v3864, %v3864
        %v3881 = vpack.c.b16 %v3865, %v3865
        %v3882 = vpack.c.b16 %v3866, %v3866
        %vm3883 = vcmask 64512
        %v3885 = vsel %vm3883, %v3795, 0
        %v3888 = vsel %vm3883, %v3796, 0
        %v3891 = vsel %vm3883, %v3797, 0
        %v3894 = vsel %vm3883, %v3798, 0
        %vm3896 = vcmask 1043456
        %v3898 = vsel %vm3896, %v3867, 0
        %v3901 = vsel %vm3896, %v3868, 0
        %v3904 = vsel %vm3896, %v3869, 0
        %v3907 = vsel %vm3896, %v3870, 0
        %v3910 = vsel %vm3896, %v3871, 0
        %v3913 = vsel %vm3896, %v3872, 0
        %v3916 = vsel %vm3896, %v3873, 0
        %v3919 = vsel %vm3896, %v3874, 0
        %v3922 = vsel %vm3896, %v3875, 0
        %v3925 = vsel %vm3896, %v3876, 0
        %v3928 = vsel %vm3896, %v3877, 0
        %v3931 = vsel %vm3896, %v3878, 0
        %v3934 = vsel %vm3896, %v3879, 0
        %v3937 = vsel %vm3896, %v3880, 0
        %v3940 = vsel %vm3896, %v3881, 0
        %v3943 = vsel %vm3896, %v3882, 0
        %3945 = vmatpush.bf16.msra.mxu0 0
        %3946 = vmatpush.bf16.msra.mxu0 0
        %3947 = vmatpush.bf16.msra.mxu0 0
        %3948 = vmatpush.bf16.msra.mxu0 0
        %3949 = vmatpush.bf16.msra.mxu0 0
        %3950 = vmatpush.bf16.msra.mxu0 0
        %3951 = vmatpush.bf16.msra.mxu0 0
        %3952 = vmatpush.bf16.msra.mxu0 %v3898
        %3953 = vmatmul.bf16.gmra.mxu0 %v3885
        %v3954 = vpop.f32.mrf.mxu0
        %v3955 = vadd.f32 %v3811, %v3954
        %v3956 = vpop.f32.mrf.mxu0
        %v3957 = vadd.f32 %v3811, %v3956
        %3958 = vmatmul.bf16.gmra.mxu0 %v3888
        %v3959 = vpop.f32.mrf.mxu0
        %v3960 = vadd.f32 %v3811, %v3959
        %v3961 = vpop.f32.mrf.mxu0
        %v3962 = vadd.f32 %v3811, %v3961
        %3963 = vmatmul.bf16.gmra.mxu0 %v3891
        %v3964 = vpop.f32.mrf.mxu0
        %v3965 = vadd.f32 %v3811, %v3964
        %v3966 = vpop.f32.mrf.mxu0
        %v3967 = vadd.f32 %v3811, %v3966
        %3968 = vmatmul.bf16.gmra.mxu0 %v3894
        %v3969 = vpop.f32.mrf.mxu0
        %v3970 = vadd.f32 %v3811, %v3969
        %v3971 = vpop.f32.mrf.mxu0
        %v3972 = vadd.f32 %v3811, %v3971
        %3973 = vdwg.mxu0
        %3974 = vmatpush.bf16.msra.mxu0 0
        %3975 = vmatpush.bf16.msra.mxu0 0
        %3976 = vmatpush.bf16.msra.mxu0 0
        %3977 = vmatpush.bf16.msra.mxu0 0
        %3978 = vmatpush.bf16.msra.mxu0 0
        %3979 = vmatpush.bf16.msra.mxu0 0
        %3980 = vmatpush.bf16.msra.mxu0 0
        %3981 = vmatpush.bf16.msra.mxu0 %v3901
        %3982 = vmatmul.bf16.gmra.mxu0 %v3885
        %v3983 = vpop.f32.mrf.mxu0
        %v3984 = vadd.f32 %v3812, %v3983
        %v3985 = vpop.f32.mrf.mxu0
        %v3986 = vadd.f32 %v3812, %v3985
        %3987 = vmatmul.bf16.gmra.mxu0 %v3888
        %v3988 = vpop.f32.mrf.mxu0
        %v3989 = vadd.f32 %v3812, %v3988
        %v3990 = vpop.f32.mrf.mxu0
        %v3991 = vadd.f32 %v3812, %v3990
        %3992 = vmatmul.bf16.gmra.mxu0 %v3891
        %v3993 = vpop.f32.mrf.mxu0
        %v3994 = vadd.f32 %v3812, %v3993
        %v3995 = vpop.f32.mrf.mxu0
        %v3996 = vadd.f32 %v3812, %v3995
        %3997 = vmatmul.bf16.gmra.mxu0 %v3894
        %v3998 = vpop.f32.mrf.mxu0
        %v3999 = vadd.f32 %v3812, %v3998
        %v4000 = vpop.f32.mrf.mxu0
        %v4001 = vadd.f32 %v3812, %v4000
        %4002 = vdwg.mxu0
        %4003 = vmatpush.bf16.msra.mxu0 0
        %4004 = vmatpush.bf16.msra.mxu0 0
        %4005 = vmatpush.bf16.msra.mxu0 0
        %4006 = vmatpush.bf16.msra.mxu0 0
        %4007 = vmatpush.bf16.msra.mxu0 0
        %4008 = vmatpush.bf16.msra.mxu0 0
        %4009 = vmatpush.bf16.msra.mxu0 0
        %4010 = vmatpush.bf16.msra.mxu0 %v3904
        %4011 = vmatmul.bf16.gmra.mxu0 %v3885
        %v4012 = vpop.f32.mrf.mxu0
        %v4013 = vadd.f32 %v3813, %v4012
        %v4014 = vpop.f32.mrf.mxu0
        %v4015 = vadd.f32 %v3813, %v4014
        %4016 = vmatmul.bf16.gmra.mxu0 %v3888
        %v4017 = vpop.f32.mrf.mxu0
        %v4018 = vadd.f32 %v3813, %v4017
        %v4019 = vpop.f32.mrf.mxu0
        %v4020 = vadd.f32 %v3813, %v4019
        %4021 = vmatmul.bf16.gmra.mxu0 %v3891
        %v4022 = vpop.f32.mrf.mxu0
        %v4023 = vadd.f32 %v3813, %v4022
        %v4024 = vpop.f32.mrf.mxu0
        %v4025 = vadd.f32 %v3813, %v4024
        %4026 = vmatmul.bf16.gmra.mxu0 %v3894
        %v4027 = vpop.f32.mrf.mxu0
        %v4028 = vadd.f32 %v3813, %v4027
        %v4029 = vpop.f32.mrf.mxu0
        %v4030 = vadd.f32 %v3813, %v4029
        %4031 = vdwg.mxu0
        %4032 = vmatpush.bf16.msra.mxu0 0
        %4033 = vmatpush.bf16.msra.mxu0 0
        %4034 = vmatpush.bf16.msra.mxu0 0
        %4035 = vmatpush.bf16.msra.mxu0 0
        %4036 = vmatpush.bf16.msra.mxu0 0
        %4037 = vmatpush.bf16.msra.mxu0 0
        %4038 = vmatpush.bf16.msra.mxu0 0
        %4039 = vmatpush.bf16.msra.mxu0 %v3907
        %4040 = vmatmul.bf16.gmra.mxu0 %v3885
        %v4041 = vpop.f32.mrf.mxu0
        %v4042 = vadd.f32 %v3814, %v4041
        %v4043 = vpop.f32.mrf.mxu0
        %v4044 = vadd.f32 %v3814, %v4043
        %4045 = vmatmul.bf16.gmra.mxu0 %v3888
        %v4046 = vpop.f32.mrf.mxu0
        %v4047 = vadd.f32 %v3814, %v4046
        %v4048 = vpop.f32.mrf.mxu0
        %v4049 = vadd.f32 %v3814, %v4048
        %4050 = vmatmul.bf16.gmra.mxu0 %v3891
        %v4051 = vpop.f32.mrf.mxu0
        %v4052 = vadd.f32 %v3814, %v4051
        %v4053 = vpop.f32.mrf.mxu0
        %v4054 = vadd.f32 %v3814, %v4053
        %4055 = vmatmul.bf16.gmra.mxu0 %v3894
        %v4056 = vpop.f32.mrf.mxu0
        %v4057 = vadd.f32 %v3814, %v4056
        %v4058 = vpop.f32.mrf.mxu0
        %v4059 = vadd.f32 %v3814, %v4058
        %4060 = vdwg.mxu0
        %4061 = vmatpush.bf16.msra.mxu0 0
        %4062 = vmatpush.bf16.msra.mxu0 0
        %4063 = vmatpush.bf16.msra.mxu0 0
        %4064 = vmatpush.bf16.msra.mxu0 0
        %4065 = vmatpush.bf16.msra.mxu0 0
        %4066 = vmatpush.bf16.msra.mxu0 0
        %4067 = vmatpush.bf16.msra.mxu0 0
        %4068 = vmatpush.bf16.msra.mxu0 %v3910
        %4069 = vmatmul.bf16.gmra.mxu0 %v3885
        %v4070 = vpop.f32.mrf.mxu0
        %v4071 = vadd.f32 %v3815, %v4070
        %v4072 = vpop.f32.mrf.mxu0
        %v4073 = vadd.f32 %v3815, %v4072
        %4074 = vmatmul.bf16.gmra.mxu0 %v3888
        %v4075 = vpop.f32.mrf.mxu0
        %v4076 = vadd.f32 %v3815, %v4075
        %v4077 = vpop.f32.mrf.mxu0
        %v4078 = vadd.f32 %v3815, %v4077
        %4079 = vmatmul.bf16.gmra.mxu0 %v3891
        %v4080 = vpop.f32.mrf.mxu0
        %v4081 = vadd.f32 %v3815, %v4080
        %v4082 = vpop.f32.mrf.mxu0
        %v4083 = vadd.f32 %v3815, %v4082
        %4084 = vmatmul.bf16.gmra.mxu0 %v3894
        %v4085 = vpop.f32.mrf.mxu0
        %v4086 = vadd.f32 %v3815, %v4085
        %v4087 = vpop.f32.mrf.mxu0
        %v4088 = vadd.f32 %v3815, %v4087
        %4089 = vdwg.mxu0
        %4090 = vmatpush.bf16.msra.mxu0 0
        %4091 = vmatpush.bf16.msra.mxu0 0
        %4092 = vmatpush.bf16.msra.mxu0 0
        %4093 = vmatpush.bf16.msra.mxu0 0
        %4094 = vmatpush.bf16.msra.mxu0 0
        %4095 = vmatpush.bf16.msra.mxu0 0
        %4096 = vmatpush.bf16.msra.mxu0 0
        %4097 = vmatpush.bf16.msra.mxu0 %v3913
        %4098 = vmatmul.bf16.gmra.mxu0 %v3885
        %v4099 = vpop.f32.mrf.mxu0
        %v4100 = vadd.f32 %v3816, %v4099
        %v4101 = vpop.f32.mrf.mxu0
        %v4102 = vadd.f32 %v3816, %v4101
        %4103 = vmatmul.bf16.gmra.mxu0 %v3888
        %v4104 = vpop.f32.mrf.mxu0
        %v4105 = vadd.f32 %v3816, %v4104
        %v4106 = vpop.f32.mrf.mxu0
        %v4107 = vadd.f32 %v3816, %v4106
        %4108 = vmatmul.bf16.gmra.mxu0 %v3891
        %v4109 = vpop.f32.mrf.mxu0
        %v4110 = vadd.f32 %v3816, %v4109
        %v4111 = vpop.f32.mrf.mxu0
        %v4112 = vadd.f32 %v3816, %v4111
        %4113 = vmatmul.bf16.gmra.mxu0 %v3894
        %v4114 = vpop.f32.mrf.mxu0
        %v4115 = vadd.f32 %v3816, %v4114
        %v4116 = vpop.f32.mrf.mxu0
        %v4117 = vadd.f32 %v3816, %v4116
        %4118 = vdwg.mxu0
        %4119 = vmatpush.bf16.msra.mxu0 0
        %4120 = vmatpush.bf16.msra.mxu0 0
        %4121 = vmatpush.bf16.msra.mxu0 0
        %4122 = vmatpush.bf16.msra.mxu0 0
        %4123 = vmatpush.bf16.msra.mxu0 0
        %4124 = vmatpush.bf16.msra.mxu0 0
        %4125 = vmatpush.bf16.msra.mxu0 0
        %4126 = vmatpush.bf16.msra.mxu0 %v3916
        %4127 = vmatmul.bf16.gmra.mxu0 %v3885
        %v4128 = vpop.f32.mrf.mxu0
        %v4129 = vadd.f32 %v3817, %v4128
        %v4130 = vpop.f32.mrf.mxu0
        %v4131 = vadd.f32 %v3817, %v4130
        %4132 = vmatmul.bf16.gmra.mxu0 %v3888
        %v4133 = vpop.f32.mrf.mxu0
        %v4134 = vadd.f32 %v3817, %v4133
        %v4135 = vpop.f32.mrf.mxu0
        %v4136 = vadd.f32 %v3817, %v4135
        %4137 = vmatmul.bf16.gmra.mxu0 %v3891
        %v4138 = vpop.f32.mrf.mxu0
        %v4139 = vadd.f32 %v3817, %v4138
        %v4140 = vpop.f32.mrf.mxu0
        %v4141 = vadd.f32 %v3817, %v4140
        %4142 = vmatmul.bf16.gmra.mxu0 %v3894
        %v4143 = vpop.f32.mrf.mxu0
        %v4144 = vadd.f32 %v3817, %v4143
        %v4145 = vpop.f32.mrf.mxu0
        %v4146 = vadd.f32 %v3817, %v4145
        %4147 = vdwg.mxu0
        %4148 = vmatpush.bf16.msra.mxu0 0
        %4149 = vmatpush.bf16.msra.mxu0 0
        %4150 = vmatpush.bf16.msra.mxu0 0
        %4151 = vmatpush.bf16.msra.mxu0 0
        %4152 = vmatpush.bf16.msra.mxu0 0
        %4153 = vmatpush.bf16.msra.mxu0 0
        %4154 = vmatpush.bf16.msra.mxu0 0
        %4155 = vmatpush.bf16.msra.mxu0 %v3919
        %4156 = vmatmul.bf16.gmra.mxu0 %v3885
        %v4157 = vpop.f32.mrf.mxu0
        %v4158 = vadd.f32 %v3818, %v4157
        %v4159 = vpop.f32.mrf.mxu0
        %v4160 = vadd.f32 %v3818, %v4159
        %4161 = vmatmul.bf16.gmra.mxu0 %v3888
        %v4162 = vpop.f32.mrf.mxu0
        %v4163 = vadd.f32 %v3818, %v4162
        %v4164 = vpop.f32.mrf.mxu0
        %v4165 = vadd.f32 %v3818, %v4164
        %4166 = vmatmul.bf16.gmra.mxu0 %v3891
        %v4167 = vpop.f32.mrf.mxu0
        %v4168 = vadd.f32 %v3818, %v4167
        %v4169 = vpop.f32.mrf.mxu0
        %v4170 = vadd.f32 %v3818, %v4169
        %4171 = vmatmul.bf16.gmra.mxu0 %v3894
        %v4172 = vpop.f32.mrf.mxu0
        %v4173 = vadd.f32 %v3818, %v4172
        %v4174 = vpop.f32.mrf.mxu0
        %v4175 = vadd.f32 %v3818, %v4174
        %4176 = vdwg.mxu0
        %4177 = vmatpush.bf16.msra.mxu0 0
        %4178 = vmatpush.bf16.msra.mxu0 0
        %4179 = vmatpush.bf16.msra.mxu0 0
        %4180 = vmatpush.bf16.msra.mxu0 0
        %4181 = vmatpush.bf16.msra.mxu0 0
        %4182 = vmatpush.bf16.msra.mxu0 0
        %4183 = vmatpush.bf16.msra.mxu0 0
        %4184 = vmatpush.bf16.msra.mxu0 %v3922
        %4185 = vmatmul.bf16.gmra.mxu0 %v3885
        %v4186 = vpop.f32.mrf.mxu0
        %v4187 = vadd.f32 %v3819, %v4186
        %v4188 = vpop.f32.mrf.mxu0
        %v4189 = vadd.f32 %v3819, %v4188
        %4190 = vmatmul.bf16.gmra.mxu0 %v3888
        %v4191 = vpop.f32.mrf.mxu0
        %v4192 = vadd.f32 %v3819, %v4191
        %v4193 = vpop.f32.mrf.mxu0
        %v4194 = vadd.f32 %v3819, %v4193
        %4195 = vmatmul.bf16.gmra.mxu0 %v3891
        %v4196 = vpop.f32.mrf.mxu0
        %v4197 = vadd.f32 %v3819, %v4196
        %v4198 = vpop.f32.mrf.mxu0
        %v4199 = vadd.f32 %v3819, %v4198
        %4200 = vmatmul.bf16.gmra.mxu0 %v3894
        %v4201 = vpop.f32.mrf.mxu0
        %v4202 = vadd.f32 %v3819, %v4201
        %v4203 = vpop.f32.mrf.mxu0
        %v4204 = vadd.f32 %v3819, %v4203
        %4205 = vdwg.mxu0
        %4206 = vmatpush.bf16.msra.mxu0 0
        %4207 = vmatpush.bf16.msra.mxu0 0
        %4208 = vmatpush.bf16.msra.mxu0 0
        %4209 = vmatpush.bf16.msra.mxu0 0
        %4210 = vmatpush.bf16.msra.mxu0 0
        %4211 = vmatpush.bf16.msra.mxu0 0
        %4212 = vmatpush.bf16.msra.mxu0 0
        %4213 = vmatpush.bf16.msra.mxu0 %v3925
        %4214 = vmatmul.bf16.gmra.mxu0 %v3885
        %v4215 = vpop.f32.mrf.mxu0
        %v4216 = vadd.f32 %v3820, %v4215
        %v4217 = vpop.f32.mrf.mxu0
        %v4218 = vadd.f32 %v3820, %v4217
        %4219 = vmatmul.bf16.gmra.mxu0 %v3888
        %v4220 = vpop.f32.mrf.mxu0
        %v4221 = vadd.f32 %v3820, %v4220
        %v4222 = vpop.f32.mrf.mxu0
        %v4223 = vadd.f32 %v3820, %v4222
        %4224 = vmatmul.bf16.gmra.mxu0 %v3891
        %v4225 = vpop.f32.mrf.mxu0
        %v4226 = vadd.f32 %v3820, %v4225
        %v4227 = vpop.f32.mrf.mxu0
        %v4228 = vadd.f32 %v3820, %v4227
        %4229 = vmatmul.bf16.gmra.mxu0 %v3894
        %v4230 = vpop.f32.mrf.mxu0
        %v4231 = vadd.f32 %v3820, %v4230
        %v4232 = vpop.f32.mrf.mxu0
        %v4233 = vadd.f32 %v3820, %v4232
        %4234 = vdwg.mxu0
        %4235 = vmatpush.bf16.msra.mxu0 0
        %4236 = vmatpush.bf16.msra.mxu0 0
        %4237 = vmatpush.bf16.msra.mxu0 0
        %4238 = vmatpush.bf16.msra.mxu0 0
        %4239 = vmatpush.bf16.msra.mxu0 0
        %4240 = vmatpush.bf16.msra.mxu0 0
        %4241 = vmatpush.bf16.msra.mxu0 0
        %4242 = vmatpush.bf16.msra.mxu0 %v3928
        %4243 = vmatmul.bf16.gmra.mxu0 %v3885
        %v4244 = vpop.f32.mrf.mxu0
        %v4245 = vadd.f32 %v3821, %v4244
        %v4246 = vpop.f32.mrf.mxu0
        %v4247 = vadd.f32 %v3821, %v4246
        %4248 = vmatmul.bf16.gmra.mxu0 %v3888
        %v4249 = vpop.f32.mrf.mxu0
        %v4250 = vadd.f32 %v3821, %v4249
        %v4251 = vpop.f32.mrf.mxu0
        %v4252 = vadd.f32 %v3821, %v4251
        %4253 = vmatmul.bf16.gmra.mxu0 %v3891
        %v4254 = vpop.f32.mrf.mxu0
        %v4255 = vadd.f32 %v3821, %v4254
        %v4256 = vpop.f32.mrf.mxu0
        %v4257 = vadd.f32 %v3821, %v4256
        %4258 = vmatmul.bf16.gmra.mxu0 %v3894
        %v4259 = vpop.f32.mrf.mxu0
        %v4260 = vadd.f32 %v3821, %v4259
        %v4261 = vpop.f32.mrf.mxu0
        %v4262 = vadd.f32 %v3821, %v4261
        %4263 = vdwg.mxu0
        %4264 = vmatpush.bf16.msra.mxu0 0
        %4265 = vmatpush.bf16.msra.mxu0 0
        %4266 = vmatpush.bf16.msra.mxu0 0
        %4267 = vmatpush.bf16.msra.mxu0 0
        %4268 = vmatpush.bf16.msra.mxu0 0
        %4269 = vmatpush.bf16.msra.mxu0 0
        %4270 = vmatpush.bf16.msra.mxu0 0
        %4271 = vmatpush.bf16.msra.mxu0 %v3931
        %4272 = vmatmul.bf16.gmra.mxu0 %v3885
        %v4273 = vpop.f32.mrf.mxu0
        %v4274 = vadd.f32 %v3822, %v4273
        %v4275 = vpop.f32.mrf.mxu0
        %v4276 = vadd.f32 %v3822, %v4275
        %4277 = vmatmul.bf16.gmra.mxu0 %v3888
        %v4278 = vpop.f32.mrf.mxu0
        %v4279 = vadd.f32 %v3822, %v4278
        %v4280 = vpop.f32.mrf.mxu0
        %v4281 = vadd.f32 %v3822, %v4280
        %4282 = vmatmul.bf16.gmra.mxu0 %v3891
        %v4283 = vpop.f32.mrf.mxu0
        %v4284 = vadd.f32 %v3822, %v4283
        %v4285 = vpop.f32.mrf.mxu0
        %v4286 = vadd.f32 %v3822, %v4285
        %4287 = vmatmul.bf16.gmra.mxu0 %v3894
        %v4288 = vpop.f32.mrf.mxu0
        %v4289 = vadd.f32 %v3822, %v4288
        %v4290 = vpop.f32.mrf.mxu0
        %v4291 = vadd.f32 %v3822, %v4290
        %4292 = vdwg.mxu0
        %4293 = vmatpush.bf16.msra.mxu0 0
        %4294 = vmatpush.bf16.msra.mxu0 0
        %4295 = vmatpush.bf16.msra.mxu0 0
        %4296 = vmatpush.bf16.msra.mxu0 0
        %4297 = vmatpush.bf16.msra.mxu0 0
        %4298 = vmatpush.bf16.msra.mxu0 0
        %4299 = vmatpush.bf16.msra.mxu0 0
        %4300 = vmatpush.bf16.msra.mxu0 %v3934
        %4301 = vmatmul.bf16.gmra.mxu0 %v3885
        %v4302 = vpop.f32.mrf.mxu0
        %v4303 = vadd.f32 %v3823, %v4302
        %v4304 = vpop.f32.mrf.mxu0
        %v4305 = vadd.f32 %v3823, %v4304
        %4306 = vmatmul.bf16.gmra.mxu0 %v3888
        %v4307 = vpop.f32.mrf.mxu0
        %v4308 = vadd.f32 %v3823, %v4307
        %v4309 = vpop.f32.mrf.mxu0
        %v4310 = vadd.f32 %v3823, %v4309
        %4311 = vmatmul.bf16.gmra.mxu0 %v3891
        %v4312 = vpop.f32.mrf.mxu0
        %v4313 = vadd.f32 %v3823, %v4312
        %v4314 = vpop.f32.mrf.mxu0
        %v4315 = vadd.f32 %v3823, %v4314
        %4316 = vmatmul.bf16.gmra.mxu0 %v3894
        %v4317 = vpop.f32.mrf.mxu0
        %v4318 = vadd.f32 %v3823, %v4317
        %v4319 = vpop.f32.mrf.mxu0
        %v4320 = vadd.f32 %v3823, %v4319
        %4321 = vdwg.mxu0
        %4322 = vmatpush.bf16.msra.mxu0 0
        %4323 = vmatpush.bf16.msra.mxu0 0
        %4324 = vmatpush.bf16.msra.mxu0 0
        %4325 = vmatpush.bf16.msra.mxu0 0
        %4326 = vmatpush.bf16.msra.mxu0 0
        %4327 = vmatpush.bf16.msra.mxu0 0
        %4328 = vmatpush.bf16.msra.mxu0 0
        %4329 = vmatpush.bf16.msra.mxu0 %v3937
        %4330 = vmatmul.bf16.gmra.mxu0 %v3885
        %v4331 = vpop.f32.mrf.mxu0
        %v4332 = vadd.f32 %v3824, %v4331
        %v4333 = vpop.f32.mrf.mxu0
        %v4334 = vadd.f32 %v3824, %v4333
        %4335 = vmatmul.bf16.gmra.mxu0 %v3888
        %v4336 = vpop.f32.mrf.mxu0
        %v4337 = vadd.f32 %v3824, %v4336
        %v4338 = vpop.f32.mrf.mxu0
        %v4339 = vadd.f32 %v3824, %v4338
        %4340 = vmatmul.bf16.gmra.mxu0 %v3891
        %v4341 = vpop.f32.mrf.mxu0
        %v4342 = vadd.f32 %v3824, %v4341
        %v4343 = vpop.f32.mrf.mxu0
        %v4344 = vadd.f32 %v3824, %v4343
        %4345 = vmatmul.bf16.gmra.mxu0 %v3894
        %v4346 = vpop.f32.mrf.mxu0
        %v4347 = vadd.f32 %v3824, %v4346
        %v4348 = vpop.f32.mrf.mxu0
        %v4349 = vadd.f32 %v3824, %v4348
        %4350 = vdwg.mxu0
        %4351 = vmatpush.bf16.msra.mxu0 0
        %4352 = vmatpush.bf16.msra.mxu0 0
        %4353 = vmatpush.bf16.msra.mxu0 0
        %4354 = vmatpush.bf16.msra.mxu0 0
        %4355 = vmatpush.bf16.msra.mxu0 0
        %4356 = vmatpush.bf16.msra.mxu0 0
        %4357 = vmatpush.bf16.msra.mxu0 0
        %4358 = vmatpush.bf16.msra.mxu0 %v3940
        %4359 = vmatmul.bf16.gmra.mxu0 %v3885
        %v4360 = vpop.f32.mrf.mxu0
        %v4361 = vadd.f32 %v3825, %v4360
        %v4362 = vpop.f32.mrf.mxu0
        %v4363 = vadd.f32 %v3825, %v4362
        %4364 = vmatmul.bf16.gmra.mxu0 %v3888
        %v4365 = vpop.f32.mrf.mxu0
        %v4366 = vadd.f32 %v3825, %v4365
        %v4367 = vpop.f32.mrf.mxu0
        %v4368 = vadd.f32 %v3825, %v4367
        %4369 = vmatmul.bf16.gmra.mxu0 %v3891
        %v4370 = vpop.f32.mrf.mxu0
        %v4371 = vadd.f32 %v3825, %v4370
        %v4372 = vpop.f32.mrf.mxu0
        %v4373 = vadd.f32 %v3825, %v4372
        %4374 = vmatmul.bf16.gmra.mxu0 %v3894
        %v4375 = vpop.f32.mrf.mxu0
        %v4376 = vadd.f32 %v3825, %v4375
        %v4377 = vpop.f32.mrf.mxu0
        %v4378 = vadd.f32 %v3825, %v4377
        %4379 = vdwg.mxu0
        %4380 = vmatpush.bf16.msra.mxu0 0
        %4381 = vmatpush.bf16.msra.mxu0 0
        %4382 = vmatpush.bf16.msra.mxu0 0
        %4383 = vmatpush.bf16.msra.mxu0 0
        %4384 = vmatpush.bf16.msra.mxu0 0
        %4385 = vmatpush.bf16.msra.mxu0 0
        %4386 = vmatpush.bf16.msra.mxu0 0
        %4387 = vmatpush.bf16.msra.mxu0 %v3943
        %4388 = vmatmul.bf16.gmra.mxu0 %v3885
        %v4389 = vpop.f32.mrf.mxu0
        %v4390 = vadd.f32 %v3826, %v4389
        %v4391 = vpop.f32.mrf.mxu0
        %v4392 = vadd.f32 %v3826, %v4391
        %4393 = vmatmul.bf16.gmra.mxu0 %v3888
        %v4394 = vpop.f32.mrf.mxu0
        %v4395 = vadd.f32 %v3826, %v4394
        %v4396 = vpop.f32.mrf.mxu0
        %v4397 = vadd.f32 %v3826, %v4396
        %4398 = vmatmul.bf16.gmra.mxu0 %v3891
        %v4399 = vpop.f32.mrf.mxu0
        %v4400 = vadd.f32 %v3826, %v4399
        %v4401 = vpop.f32.mrf.mxu0
        %v4402 = vadd.f32 %v3826, %v4401
        %4403 = vmatmul.bf16.gmra.mxu0 %v3894
        %v4404 = vpop.f32.mrf.mxu0
        %v4405 = vadd.f32 %v3826, %v4404
        %v4406 = vpop.f32.mrf.mxu0
        %v4407 = vadd.f32 %v3826, %v4406
        %4408 = vdwg.mxu0
        %4409 = vst [vmem:[#allocation3] sm:$0xff] %v3955
        %4410 = vst [vmem:[#allocation3 + $0x8] sm:$0xff] %v3984
        %4411 = vst [vmem:[#allocation3 + $0x10] sm:$0xff] %v4013
        %4412 = vst [vmem:[#allocation3 + $0x18] sm:$0xff] %v4042
        %4413 = vst [vmem:[#allocation3 + $0x20] sm:$0xff] %v4071
        %4414 = vst [vmem:[#allocation3 + $0x28] sm:$0xff] %v4100
        %4415 = vst [vmem:[#allocation3 + $0x30] sm:$0xff] %v4129
        %4416 = vst [vmem:[#allocation3 + $0x38] sm:$0xff] %v4158
        %4417 = vst [vmem:[#allocation3 + $0x40] sm:$0xff] %v4187
        %4418 = vst [vmem:[#allocation3 + $0x48] sm:$0xff] %v4216
        %4419 = vst [vmem:[#allocation3 + $0x50] sm:$0xff] %v4245
        %4420 = vst [vmem:[#allocation3 + $0x58] sm:$0xff] %v4274
        %4421 = vst [vmem:[#allocation3 + $0x60] sm:$0xff] %v4303
        %4422 = vst [vmem:[#allocation3 + $0x68] sm:$0xff] %v4332
        %4423 = vst [vmem:[#allocation3 + $0x70] sm:$0xff] %v4361
        %4424 = vst [vmem:[#allocation3 + $0x78] sm:$0xff] %v4390
        %4425 = vst [vmem:[#allocation3 + $0x80] sm:$0xff] %v3957
        %4426 = vst [vmem:[#allocation3 + $0x88] sm:$0xff] %v3986
        %4427 = vst [vmem:[#allocation3 + $0x90] sm:$0xff] %v4015
        %4428 = vst [vmem:[#allocation3 + $0x98] sm:$0xff] %v4044
        %4429 = vst [vmem:[#allocation3 + $0xa0] sm:$0xff] %v4073
        %4430 = vst [vmem:[#allocation3 + $0xa8] sm:$0xff] %v4102
        %4431 = vst [vmem:[#allocation3 + $0xb0] sm:$0xff] %v4131
        %4432 = vst [vmem:[#allocation3 + $0xb8] sm:$0xff] %v4160
        %4433 = vst [vmem:[#allocation3 + $0xc0] sm:$0xff] %v4189
        %4434 = vst [vmem:[#allocation3 + $0xc8] sm:$0xff] %v4218
        %4435 = vst [vmem:[#allocation3 + $0xd0] sm:$0xff] %v4247
        %4436 = vst [vmem:[#allocation3 + $0xd8] sm:$0xff] %v4276
        %4437 = vst [vmem:[#allocation3 + $0xe0] sm:$0xff] %v4305
        %4438 = vst [vmem:[#allocation3 + $0xe8] sm:$0xff] %v4334
        %4439 = vst [vmem:[#allocation3 + $0xf0] sm:$0xff] %v4363
        %4440 = vst [vmem:[#allocation3 + $0xf8] sm:$0xff] %v4392
        %4441 = vst [vmem:[#allocation3 + $0x100] sm:$0xff] %v3960
        %4442 = vst [vmem:[#allocation3 + $0x108] sm:$0xff] %v3989
        %4443 = vst [vmem:[#allocation3 + $0x110] sm:$0xff] %v4018
        %4444 = vst [vmem:[#allocation3 + $0x118] sm:$0xff] %v4047
        %4445 = vst [vmem:[#allocation3 + $0x120] sm:$0xff] %v4076
        %4446 = vst [vmem:[#allocation3 + $0x128] sm:$0xff] %v4105
        %4447 = vst [vmem:[#allocation3 + $0x130] sm:$0xff] %v4134
        %4448 = vst [vmem:[#allocation3 + $0x138] sm:$0xff] %v4163
        %4449 = vst [vmem:[#allocation3 + $0x140] sm:$0xff] %v4192
        %4450 = vst [vmem:[#allocation3 + $0x148] sm:$0xff] %v4221
        %4451 = vst [vmem:[#allocation3 + $0x150] sm:$0xff] %v4250
        %4452 = vst [vmem:[#allocation3 + $0x158] sm:$0xff] %v4279
        %4453 = vst [vmem:[#allocation3 + $0x160] sm:$0xff] %v4308
        %4454 = vst [vmem:[#allocation3 + $0x168] sm:$0xff] %v4337
        %4455 = vst [vmem:[#allocation3 + $0x170] sm:$0xff] %v4366
        %4456 = vst [vmem:[#allocation3 + $0x178] sm:$0xff] %v4395
        %4457 = vst [vmem:[#allocation3 + $0x180] sm:$0xff] %v3962
        %4458 = vst [vmem:[#allocation3 + $0x188] sm:$0xff] %v3991
        %4459 = vst [vmem:[#allocation3 + $0x190] sm:$0xff] %v4020
        %4460 = vst [vmem:[#allocation3 + $0x198] sm:$0xff] %v4049
        %4461 = vst [vmem:[#allocation3 + $0x1a0] sm:$0xff] %v4078
        %4462 = vst [vmem:[#allocation3 + $0x1a8] sm:$0xff] %v4107
        %4463 = vst [vmem:[#allocation3 + $0x1b0] sm:$0xff] %v4136
        %4464 = vst [vmem:[#allocation3 + $0x1b8] sm:$0xff] %v4165
        %4465 = vst [vmem:[#allocation3 + $0x1c0] sm:$0xff] %v4194
        %4466 = vst [vmem:[#allocation3 + $0x1c8] sm:$0xff] %v4223
        %4467 = vst [vmem:[#allocation3 + $0x1d0] sm:$0xff] %v4252
        %4468 = vst [vmem:[#allocation3 + $0x1d8] sm:$0xff] %v4281
        %4469 = vst [vmem:[#allocation3 + $0x1e0] sm:$0xff] %v4310
        %4470 = vst [vmem:[#allocation3 + $0x1e8] sm:$0xff] %v4339
        %4471 = vst [vmem:[#allocation3 + $0x1f0] sm:$0xff] %v4368
        %4472 = vst [vmem:[#allocation3 + $0x1f8] sm:$0xff] %v4397
        %4473 = vst [vmem:[#allocation3 + $0x200] sm:$0xff] %v3965
        %4474 = vst [vmem:[#allocation3 + $0x208] sm:$0xff] %v3994
        %4475 = vst [vmem:[#allocation3 + $0x210] sm:$0xff] %v4023
        %4476 = vst [vmem:[#allocation3 + $0x218] sm:$0xff] %v4052
        %4477 = vst [vmem:[#allocation3 + $0x220] sm:$0xff] %v4081
        %4478 = vst [vmem:[#allocation3 + $0x228] sm:$0xff] %v4110
        %4479 = vst [vmem:[#allocation3 + $0x230] sm:$0xff] %v4139
        %4480 = vst [vmem:[#allocation3 + $0x238] sm:$0xff] %v4168
        %4481 = vst [vmem:[#allocation3 + $0x240] sm:$0xff] %v4197
        %4482 = vst [vmem:[#allocation3 + $0x248] sm:$0xff] %v4226
        %4483 = vst [vmem:[#allocation3 + $0x250] sm:$0xff] %v4255
        %4484 = vst [vmem:[#allocation3 + $0x258] sm:$0xff] %v4284
        %4485 = vst [vmem:[#allocation3 + $0x260] sm:$0xff] %v4313
        %4486 = vst [vmem:[#allocation3 + $0x268] sm:$0xff] %v4342
        %4487 = vst [vmem:[#allocation3 + $0x270] sm:$0xff] %v4371
        %4488 = vst [vmem:[#allocation3 + $0x278] sm:$0xff] %v4400
        %4489 = vst [vmem:[#allocation3 + $0x280] sm:$0xff] %v3967
        %4490 = vst [vmem:[#allocation3 + $0x288] sm:$0xff] %v3996
        %4491 = vst [vmem:[#allocation3 + $0x290] sm:$0xff] %v4025
        %4492 = vst [vmem:[#allocation3 + $0x298] sm:$0xff] %v4054
        %4493 = vst [vmem:[#allocation3 + $0x2a0] sm:$0xff] %v4083
        %4494 = vst [vmem:[#allocation3 + $0x2a8] sm:$0xff] %v4112
        %4495 = vst [vmem:[#allocation3 + $0x2b0] sm:$0xff] %v4141
        %4496 = vst [vmem:[#allocation3 + $0x2b8] sm:$0xff] %v4170
        %4497 = vst [vmem:[#allocation3 + $0x2c0] sm:$0xff] %v4199
        %4498 = vst [vmem:[#allocation3 + $0x2c8] sm:$0xff] %v4228
        %4499 = vst [vmem:[#allocation3 + $0x2d0] sm:$0xff] %v4257
        %4500 = vst [vmem:[#allocation3 + $0x2d8] sm:$0xff] %v4286
        %4501 = vst [vmem:[#allocation3 + $0x2e0] sm:$0xff] %v4315
        %4502 = vst [vmem:[#allocation3 + $0x2e8] sm:$0xff] %v4344
        %4503 = vst [vmem:[#allocation3 + $0x2f0] sm:$0xff] %v4373
        %4504 = vst [vmem:[#allocation3 + $0x2f8] sm:$0xff] %v4402
        %4505 = vst [vmem:[#allocation3 + $0x300] sm:$0xff] %v3970
        %4506 = vst [vmem:[#allocation3 + $0x308] sm:$0xff] %v3999
        %4507 = vst [vmem:[#allocation3 + $0x310] sm:$0xff] %v4028
        %4508 = vst [vmem:[#allocation3 + $0x318] sm:$0xff] %v4057
        %4509 = vst [vmem:[#allocation3 + $0x320] sm:$0xff] %v4086
        %4510 = vst [vmem:[#allocation3 + $0x328] sm:$0xff] %v4115
        %4511 = vst [vmem:[#allocation3 + $0x330] sm:$0xff] %v4144
        %4512 = vst [vmem:[#allocation3 + $0x338] sm:$0xff] %v4173
        %4513 = vst [vmem:[#allocation3 + $0x340] sm:$0xff] %v4202
        %4514 = vst [vmem:[#allocation3 + $0x348] sm:$0xff] %v4231
        %4515 = vst [vmem:[#allocation3 + $0x350] sm:$0xff] %v4260
        %4516 = vst [vmem:[#allocation3 + $0x358] sm:$0xff] %v4289
        %4517 = vst [vmem:[#allocation3 + $0x360] sm:$0xff] %v4318
        %4518 = vst [vmem:[#allocation3 + $0x368] sm:$0xff] %v4347
        %4519 = vst [vmem:[#allocation3 + $0x370] sm:$0xff] %v4376
        %4520 = vst [vmem:[#allocation3 + $0x378] sm:$0xff] %v4405
        %4521 = vst [vmem:[#allocation3 + $0x380] sm:$0xff] %v3972
        %4522 = vst [vmem:[#allocation3 + $0x388] sm:$0xff] %v4001
        %4523 = vst [vmem:[#allocation3 + $0x390] sm:$0xff] %v4030
        %4524 = vst [vmem:[#allocation3 + $0x398] sm:$0xff] %v4059
        %4525 = vst [vmem:[#allocation3 + $0x3a0] sm:$0xff] %v4088
        %4526 = vst [vmem:[#allocation3 + $0x3a8] sm:$0xff] %v4117
        %4527 = vst [vmem:[#allocation3 + $0x3b0] sm:$0xff] %v4146
        %4528 = vst [vmem:[#allocation3 + $0x3b8] sm:$0xff] %v4175
        %4529 = vst [vmem:[#allocation3 + $0x3c0] sm:$0xff] %v4204
        %4530 = vst [vmem:[#allocation3 + $0x3c8] sm:$0xff] %v4233
        %4531 = vst [vmem:[#allocation3 + $0x3d0] sm:$0xff] %v4262
        %4532 = vst [vmem:[#allocation3 + $0x3d8] sm:$0xff] %v4291
        %4533 = vst [vmem:[#allocation3 + $0x3e0] sm:$0xff] %v4320
        %4534 = vst [vmem:[#allocation3 + $0x3e8] sm:$0xff] %v4349
        %4535 = vst [vmem:[#allocation3 + $0x3f0] sm:$0xff] %v4378
        %4536 = vst [vmem:[#allocation3 + $0x3f8] sm:$0xff] %v4407
        %v4537 = vld [vmem:[#allocation3] sm:$0xff]
        %v4538 = vld [vmem:[#allocation3 + $0x80] sm:$0xff]
        %v4539 = vld [vmem:[#allocation3 + $0x100] sm:$0xff]
        %v4540 = vld [vmem:[#allocation3 + $0x180] sm:$0xff]
        %v4541 = vld [vmem:[#allocation3 + $0x200] sm:$0xff]
        %v4542 = vld [vmem:[#allocation3 + $0x280] sm:$0xff]
        %v4543 = vld [vmem:[#allocation3 + $0x300] sm:$0xff]
        %v4544 = vld [vmem:[#allocation3 + $0x380] sm:$0xff]
        %v4545 = vld [vmem:[#allocation2] sm:$0xff]
        %v4546 = vld [vmem:[#allocation2 + $0x8] sm:$0xff]
        %v4547 = vld [vmem:[#allocation2 + $0x10] sm:$0xff]
        %v4548 = vld [vmem:[#allocation2 + $0x18] sm:$0xff]
        %v4549 = vld [vmem:[#allocation2 + $0x20] sm:$0xff]
        %v4550 = vld [vmem:[#allocation2 + $0x28] sm:$0xff]
        %v4551 = vld [vmem:[#allocation2 + $0x30] sm:$0xff]
        %v4552 = vld [vmem:[#allocation2 + $0x38] sm:$0xff]
        %v4553 = vmul.f32 %v4537, %v4545
        %v4554 = vmul.f32 %v4538, %v4546
        %v4555 = vmul.f32 %v4539, %v4547
        %v4556 = vmul.f32 %v4540, %v4548
        %v4557 = vmul.f32 %v4541, %v4549
        %v4558 = vmul.f32 %v4542, %v4550
        %v4559 = vmul.f32 %v4543, %v4551
        %v4560 = vmul.f32 %v4544, %v4552
        %v4561 = vadd.f32 %v4553, 0.0
        %v4562 = vadd.f32 %v4554, 0.0
        %v4563 = vadd.f32 %v4555, 0.0
        %v4564 = vadd.f32 %v4556, 0.0
        %v4565 = vadd.f32 %v4557, 0.0
        %v4566 = vadd.f32 %v4558, 0.0
        %v4567 = vadd.f32 %v4559, 0.0
        %v4568 = vadd.f32 %v4560, 0.0
        %v4569 = vld [vmem:[#allocation3 + $0x8] sm:$0xff]
        %v4570 = vld [vmem:[#allocation3 + $0x88] sm:$0xff]
        %v4571 = vld [vmem:[#allocation3 + $0x108] sm:$0xff]
        %v4572 = vld [vmem:[#allocation3 + $0x188] sm:$0xff]
        %v4573 = vld [vmem:[#allocation3 + $0x208] sm:$0xff]
        %v4574 = vld [vmem:[#allocation3 + $0x288] sm:$0xff]
        %v4575 = vld [vmem:[#allocation3 + $0x308] sm:$0xff]
        %v4576 = vld [vmem:[#allocation3 + $0x388] sm:$0xff]
        %s4577 = scalar_lea.vmem [#allocation2], 64
        %v4578 = vld [vmem:[%s4577] sm:$0xff]
        %v4579 = vld [vmem:[%s4577 + $0x8] sm:$0xff]
        %v4580 = vld [vmem:[%s4577 + $0x10] sm:$0xff]
        %v4581 = vld [vmem:[%s4577 + $0x18] sm:$0xff]
        %v4582 = vld [vmem:[%s4577 + $0x20] sm:$0xff]
        %v4583 = vld [vmem:[%s4577 + $0x28] sm:$0xff]
        %v4584 = vld [vmem:[%s4577 + $0x30] sm:$0xff]
        %v4585 = vld [vmem:[%s4577 + $0x38] sm:$0xff]
        %v4586 = vmul.f32 %v4569, %v4578
        %v4587 = vmul.f32 %v4570, %v4579
        %v4588 = vmul.f32 %v4571, %v4580
        %v4589 = vmul.f32 %v4572, %v4581
        %v4590 = vmul.f32 %v4573, %v4582
        %v4591 = vmul.f32 %v4574, %v4583
        %v4592 = vmul.f32 %v4575, %v4584
        %v4593 = vmul.f32 %v4576, %v4585
        %v4594 = vadd.f32 %v4561, %v4586
        %v4595 = vadd.f32 %v4562, %v4587
        %v4596 = vadd.f32 %v4563, %v4588
        %v4597 = vadd.f32 %v4564, %v4589
        %v4598 = vadd.f32 %v4565, %v4590
        %v4599 = vadd.f32 %v4566, %v4591
        %v4600 = vadd.f32 %v4567, %v4592
        %v4601 = vadd.f32 %v4568, %v4593
        %v4602 = vld [vmem:[#allocation3 + $0x10] sm:$0xff]
        %v4603 = vld [vmem:[#allocation3 + $0x90] sm:$0xff]
        %v4604 = vld [vmem:[#allocation3 + $0x110] sm:$0xff]
        %v4605 = vld [vmem:[#allocation3 + $0x190] sm:$0xff]
        %v4606 = vld [vmem:[#allocation3 + $0x210] sm:$0xff]
        %v4607 = vld [vmem:[#allocation3 + $0x290] sm:$0xff]
        %v4608 = vld [vmem:[#allocation3 + $0x310] sm:$0xff]
        %v4609 = vld [vmem:[#allocation3 + $0x390] sm:$0xff]
        %s4610 = scalar_lea.vmem [#allocation2], 128
        %v4611 = vld [vmem:[%s4610] sm:$0xff]
        %v4612 = vld [vmem:[%s4610 + $0x8] sm:$0xff]
        %v4613 = vld [vmem:[%s4610 + $0x10] sm:$0xff]
        %v4614 = vld [vmem:[%s4610 + $0x18] sm:$0xff]
        %v4615 = vld [vmem:[%s4610 + $0x20] sm:$0xff]
        %v4616 = vld [vmem:[%s4610 + $0x28] sm:$0xff]
        %v4617 = vld [vmem:[%s4610 + $0x30] sm:$0xff]
        %v4618 = vld [vmem:[%s4610 + $0x38] sm:$0xff]
        %v4619 = vmul.f32 %v4602, %v4611
        %v4620 = vmul.f32 %v4603, %v4612
        %v4621 = vmul.f32 %v4604, %v4613
        %v4622 = vmul.f32 %v4605, %v4614
        %v4623 = vmul.f32 %v4606, %v4615
        %v4624 = vmul.f32 %v4607, %v4616
        %v4625 = vmul.f32 %v4608, %v4617
        %v4626 = vmul.f32 %v4609, %v4618
        %v4627 = vadd.f32 %v4594, %v4619
        %v4628 = vadd.f32 %v4595, %v4620
        %v4629 = vadd.f32 %v4596, %v4621
        %v4630 = vadd.f32 %v4597, %v4622
        %v4631 = vadd.f32 %v4598, %v4623
        %v4632 = vadd.f32 %v4599, %v4624
        %v4633 = vadd.f32 %v4600, %v4625
        %v4634 = vadd.f32 %v4601, %v4626
        %v4635 = vld [vmem:[#allocation3 + $0x18] sm:$0xff]
        %v4636 = vld [vmem:[#allocation3 + $0x98] sm:$0xff]
        %v4637 = vld [vmem:[#allocation3 + $0x118] sm:$0xff]
        %v4638 = vld [vmem:[#allocation3 + $0x198] sm:$0xff]
        %v4639 = vld [vmem:[#allocation3 + $0x218] sm:$0xff]
        %v4640 = vld [vmem:[#allocation3 + $0x298] sm:$0xff]
        %v4641 = vld [vmem:[#allocation3 + $0x318] sm:$0xff]
        %v4642 = vld [vmem:[#allocation3 + $0x398] sm:$0xff]
        %s4643 = scalar_lea.vmem [#allocation2], 192
        %v4644 = vld [vmem:[%s4643] sm:$0xff]
        %v4645 = vld [vmem:[%s4643 + $0x8] sm:$0xff]
        %v4646 = vld [vmem:[%s4643 + $0x10] sm:$0xff]
        %v4647 = vld [vmem:[%s4643 + $0x18] sm:$0xff]
        %v4648 = vld [vmem:[%s4643 + $0x20] sm:$0xff]
        %v4649 = vld [vmem:[%s4643 + $0x28] sm:$0xff]
        %v4650 = vld [vmem:[%s4643 + $0x30] sm:$0xff]
        %v4651 = vld [vmem:[%s4643 + $0x38] sm:$0xff]
        %v4652 = vmul.f32 %v4635, %v4644
        %v4653 = vmul.f32 %v4636, %v4645
        %v4654 = vmul.f32 %v4637, %v4646
        %v4655 = vmul.f32 %v4638, %v4647
        %v4656 = vmul.f32 %v4639, %v4648
        %v4657 = vmul.f32 %v4640, %v4649
        %v4658 = vmul.f32 %v4641, %v4650
        %v4659 = vmul.f32 %v4642, %v4651
        %v4660 = vadd.f32 %v4627, %v4652
        %v4661 = vadd.f32 %v4628, %v4653
        %v4662 = vadd.f32 %v4629, %v4654
        %v4663 = vadd.f32 %v4630, %v4655
        %v4664 = vadd.f32 %v4631, %v4656
        %v4665 = vadd.f32 %v4632, %v4657
        %v4666 = vadd.f32 %v4633, %v4658
        %v4667 = vadd.f32 %v4634, %v4659
        %v4668 = vld [vmem:[#allocation3 + $0x20] sm:$0xff]
        %v4669 = vld [vmem:[#allocation3 + $0xa0] sm:$0xff]
        %v4670 = vld [vmem:[#allocation3 + $0x120] sm:$0xff]
        %v4671 = vld [vmem:[#allocation3 + $0x1a0] sm:$0xff]
        %v4672 = vld [vmem:[#allocation3 + $0x220] sm:$0xff]
        %v4673 = vld [vmem:[#allocation3 + $0x2a0] sm:$0xff]
        %v4674 = vld [vmem:[#allocation3 + $0x320] sm:$0xff]
        %v4675 = vld [vmem:[#allocation3 + $0x3a0] sm:$0xff]
        %s4676 = scalar_lea.vmem [#allocation2], 256
        %v4677 = vld [vmem:[%s4676] sm:$0xff]
        %v4678 = vld [vmem:[%s4676 + $0x8] sm:$0xff]
        %v4679 = vld [vmem:[%s4676 + $0x10] sm:$0xff]
        %v4680 = vld [vmem:[%s4676 + $0x18] sm:$0xff]
        %v4681 = vld [vmem:[%s4676 + $0x20] sm:$0xff]
        %v4682 = vld [vmem:[%s4676 + $0x28] sm:$0xff]
        %v4683 = vld [vmem:[%s4676 + $0x30] sm:$0xff]
        %v4684 = vld [vmem:[%s4676 + $0x38] sm:$0xff]
        %v4685 = vmul.f32 %v4668, %v4677
        %v4686 = vmul.f32 %v4669, %v4678
        %v4687 = vmul.f32 %v4670, %v4679
        %v4688 = vmul.f32 %v4671, %v4680
        %v4689 = vmul.f32 %v4672, %v4681
        %v4690 = vmul.f32 %v4673, %v4682
        %v4691 = vmul.f32 %v4674, %v4683
        %v4692 = vmul.f32 %v4675, %v4684
        %v4693 = vadd.f32 %v4660, %v4685
        %v4694 = vadd.f32 %v4661, %v4686
        %v4695 = vadd.f32 %v4662, %v4687
        %v4696 = vadd.f32 %v4663, %v4688
        %v4697 = vadd.f32 %v4664, %v4689
        %v4698 = vadd.f32 %v4665, %v4690
        %v4699 = vadd.f32 %v4666, %v4691
        %v4700 = vadd.f32 %v4667, %v4692
        %v4701 = vld [vmem:[#allocation3 + $0x28] sm:$0xff]
        %v4702 = vld [vmem:[#allocation3 + $0xa8] sm:$0xff]
        %v4703 = vld [vmem:[#allocation3 + $0x128] sm:$0xff]
        %v4704 = vld [vmem:[#allocation3 + $0x1a8] sm:$0xff]
        %v4705 = vld [vmem:[#allocation3 + $0x228] sm:$0xff]
        %v4706 = vld [vmem:[#allocation3 + $0x2a8] sm:$0xff]
        %v4707 = vld [vmem:[#allocation3 + $0x328] sm:$0xff]
        %v4708 = vld [vmem:[#allocation3 + $0x3a8] sm:$0xff]
        %s4709 = scalar_lea.vmem [#allocation2], 320
        %v4710 = vld [vmem:[%s4709] sm:$0xff]
        %v4711 = vld [vmem:[%s4709 + $0x8] sm:$0xff]
        %v4712 = vld [vmem:[%s4709 + $0x10] sm:$0xff]
        %v4713 = vld [vmem:[%s4709 + $0x18] sm:$0xff]
        %v4714 = vld [vmem:[%s4709 + $0x20] sm:$0xff]
        %v4715 = vld [vmem:[%s4709 + $0x28] sm:$0xff]
        %v4716 = vld [vmem:[%s4709 + $0x30] sm:$0xff]
        %v4717 = vld [vmem:[%s4709 + $0x38] sm:$0xff]
        %v4718 = vmul.f32 %v4701, %v4710
        %v4719 = vmul.f32 %v4702, %v4711
        %v4720 = vmul.f32 %v4703, %v4712
        %v4721 = vmul.f32 %v4704, %v4713
        %v4722 = vmul.f32 %v4705, %v4714
        %v4723 = vmul.f32 %v4706, %v4715
        %v4724 = vmul.f32 %v4707, %v4716
        %v4725 = vmul.f32 %v4708, %v4717
        %v4726 = vadd.f32 %v4693, %v4718
        %v4727 = vadd.f32 %v4694, %v4719
        %v4728 = vadd.f32 %v4695, %v4720
        %v4729 = vadd.f32 %v4696, %v4721
        %v4730 = vadd.f32 %v4697, %v4722
        %v4731 = vadd.f32 %v4698, %v4723
        %v4732 = vadd.f32 %v4699, %v4724
        %v4733 = vadd.f32 %v4700, %v4725
        %v4734 = vld [vmem:[#allocation3 + $0x30] sm:$0xff]
        %v4735 = vld [vmem:[#allocation3 + $0xb0] sm:$0xff]
        %v4736 = vld [vmem:[#allocation3 + $0x130] sm:$0xff]
        %v4737 = vld [vmem:[#allocation3 + $0x1b0] sm:$0xff]
        %v4738 = vld [vmem:[#allocation3 + $0x230] sm:$0xff]
        %v4739 = vld [vmem:[#allocation3 + $0x2b0] sm:$0xff]
        %v4740 = vld [vmem:[#allocation3 + $0x330] sm:$0xff]
        %v4741 = vld [vmem:[#allocation3 + $0x3b0] sm:$0xff]
        %s4742 = scalar_lea.vmem [#allocation2], 384
        %v4743 = vld [vmem:[%s4742] sm:$0xff]
        %v4744 = vld [vmem:[%s4742 + $0x8] sm:$0xff]
        %v4745 = vld [vmem:[%s4742 + $0x10] sm:$0xff]
        %v4746 = vld [vmem:[%s4742 + $0x18] sm:$0xff]
        %v4747 = vld [vmem:[%s4742 + $0x20] sm:$0xff]
        %v4748 = vld [vmem:[%s4742 + $0x28] sm:$0xff]
        %v4749 = vld [vmem:[%s4742 + $0x30] sm:$0xff]
        %v4750 = vld [vmem:[%s4742 + $0x38] sm:$0xff]
        %v4751 = vmul.f32 %v4734, %v4743
        %v4752 = vmul.f32 %v4735, %v4744
        %v4753 = vmul.f32 %v4736, %v4745
        %v4754 = vmul.f32 %v4737, %v4746
        %v4755 = vmul.f32 %v4738, %v4747
        %v4756 = vmul.f32 %v4739, %v4748
        %v4757 = vmul.f32 %v4740, %v4749
        %v4758 = vmul.f32 %v4741, %v4750
        %v4759 = vadd.f32 %v4726, %v4751
        %v4760 = vadd.f32 %v4727, %v4752
        %v4761 = vadd.f32 %v4728, %v4753
        %v4762 = vadd.f32 %v4729, %v4754
        %v4763 = vadd.f32 %v4730, %v4755
        %v4764 = vadd.f32 %v4731, %v4756
        %v4765 = vadd.f32 %v4732, %v4757
        %v4766 = vadd.f32 %v4733, %v4758
        %v4767 = vld [vmem:[#allocation3 + $0x38] sm:$0xff]
        %v4768 = vld [vmem:[#allocation3 + $0xb8] sm:$0xff]
        %v4769 = vld [vmem:[#allocation3 + $0x138] sm:$0xff]
        %v4770 = vld [vmem:[#allocation3 + $0x1b8] sm:$0xff]
        %v4771 = vld [vmem:[#allocation3 + $0x238] sm:$0xff]
        %v4772 = vld [vmem:[#allocation3 + $0x2b8] sm:$0xff]
        %v4773 = vld [vmem:[#allocation3 + $0x338] sm:$0xff]
        %v4774 = vld [vmem:[#allocation3 + $0x3b8] sm:$0xff]
        %s4775 = scalar_lea.vmem [#allocation2], 448
        %v4776 = vld [vmem:[%s4775] sm:$0xff]
        %v4777 = vld [vmem:[%s4775 + $0x8] sm:$0xff]
        %v4778 = vld [vmem:[%s4775 + $0x10] sm:$0xff]
        %v4779 = vld [vmem:[%s4775 + $0x18] sm:$0xff]
        %v4780 = vld [vmem:[%s4775 + $0x20] sm:$0xff]
        %v4781 = vld [vmem:[%s4775 + $0x28] sm:$0xff]
        %v4782 = vld [vmem:[%s4775 + $0x30] sm:$0xff]
        %v4783 = vld [vmem:[%s4775 + $0x38] sm:$0xff]
        %v4784 = vmul.f32 %v4767, %v4776
        %v4785 = vmul.f32 %v4768, %v4777
        %v4786 = vmul.f32 %v4769, %v4778
        %v4787 = vmul.f32 %v4770, %v4779
        %v4788 = vmul.f32 %v4771, %v4780
        %v4789 = vmul.f32 %v4772, %v4781
        %v4790 = vmul.f32 %v4773, %v4782
        %v4791 = vmul.f32 %v4774, %v4783
        %v4792 = vadd.f32 %v4759, %v4784
        %v4793 = vadd.f32 %v4760, %v4785
        %v4794 = vadd.f32 %v4761, %v4786
        %v4795 = vadd.f32 %v4762, %v4787
        %v4796 = vadd.f32 %v4763, %v4788
        %v4797 = vadd.f32 %v4764, %v4789
        %v4798 = vadd.f32 %v4765, %v4790
        %v4799 = vadd.f32 %v4766, %v4791
        %v4800 = vld [vmem:[#allocation3 + $0x40] sm:$0xff]
        %v4801 = vld [vmem:[#allocation3 + $0xc0] sm:$0xff]
        %v4802 = vld [vmem:[#allocation3 + $0x140] sm:$0xff]
        %v4803 = vld [vmem:[#allocation3 + $0x1c0] sm:$0xff]
        %v4804 = vld [vmem:[#allocation3 + $0x240] sm:$0xff]
        %v4805 = vld [vmem:[#allocation3 + $0x2c0] sm:$0xff]
        %v4806 = vld [vmem:[#allocation3 + $0x340] sm:$0xff]
        %v4807 = vld [vmem:[#allocation3 + $0x3c0] sm:$0xff]
        %s4808 = scalar_lea.vmem [#allocation2], 512
        %v4809 = vld [vmem:[%s4808] sm:$0xff]
        %v4810 = vld [vmem:[%s4808 + $0x8] sm:$0xff]
        %v4811 = vld [vmem:[%s4808 + $0x10] sm:$0xff]
        %v4812 = vld [vmem:[%s4808 + $0x18] sm:$0xff]
        %v4813 = vld [vmem:[%s4808 + $0x20] sm:$0xff]
        %v4814 = vld [vmem:[%s4808 + $0x28] sm:$0xff]
        %v4815 = vld [vmem:[%s4808 + $0x30] sm:$0xff]
        %v4816 = vld [vmem:[%s4808 + $0x38] sm:$0xff]
        %v4817 = vmul.f32 %v4800, %v4809
        %v4818 = vmul.f32 %v4801, %v4810
        %v4819 = vmul.f32 %v4802, %v4811
        %v4820 = vmul.f32 %v4803, %v4812
        %v4821 = vmul.f32 %v4804, %v4813
        %v4822 = vmul.f32 %v4805, %v4814
        %v4823 = vmul.f32 %v4806, %v4815
        %v4824 = vmul.f32 %v4807, %v4816
        %v4825 = vadd.f32 %v4792, %v4817
        %v4826 = vadd.f32 %v4793, %v4818
        %v4827 = vadd.f32 %v4794, %v4819
        %v4828 = vadd.f32 %v4795, %v4820
        %v4829 = vadd.f32 %v4796, %v4821
        %v4830 = vadd.f32 %v4797, %v4822
        %v4831 = vadd.f32 %v4798, %v4823
        %v4832 = vadd.f32 %v4799, %v4824
        %v4833 = vld [vmem:[#allocation3 + $0x48] sm:$0xff]
        %v4834 = vld [vmem:[#allocation3 + $0xc8] sm:$0xff]
        %v4835 = vld [vmem:[#allocation3 + $0x148] sm:$0xff]
        %v4836 = vld [vmem:[#allocation3 + $0x1c8] sm:$0xff]
        %v4837 = vld [vmem:[#allocation3 + $0x248] sm:$0xff]
        %v4838 = vld [vmem:[#allocation3 + $0x2c8] sm:$0xff]
        %v4839 = vld [vmem:[#allocation3 + $0x348] sm:$0xff]
        %v4840 = vld [vmem:[#allocation3 + $0x3c8] sm:$0xff]
        %s4841 = scalar_lea.vmem [#allocation2], 576
        %v4842 = vld [vmem:[%s4841] sm:$0xff]
        %v4843 = vld [vmem:[%s4841 + $0x8] sm:$0xff]
        %v4844 = vld [vmem:[%s4841 + $0x10] sm:$0xff]
        %v4845 = vld [vmem:[%s4841 + $0x18] sm:$0xff]
        %v4846 = vld [vmem:[%s4841 + $0x20] sm:$0xff]
        %v4847 = vld [vmem:[%s4841 + $0x28] sm:$0xff]
        %v4848 = vld [vmem:[%s4841 + $0x30] sm:$0xff]
        %v4849 = vld [vmem:[%s4841 + $0x38] sm:$0xff]
        %v4850 = vmul.f32 %v4833, %v4842
        %v4851 = vmul.f32 %v4834, %v4843
        %v4852 = vmul.f32 %v4835, %v4844
        %v4853 = vmul.f32 %v4836, %v4845
        %v4854 = vmul.f32 %v4837, %v4846
        %v4855 = vmul.f32 %v4838, %v4847
        %v4856 = vmul.f32 %v4839, %v4848
        %v4857 = vmul.f32 %v4840, %v4849
        %v4858 = vadd.f32 %v4825, %v4850
        %v4859 = vadd.f32 %v4826, %v4851
        %v4860 = vadd.f32 %v4827, %v4852
        %v4861 = vadd.f32 %v4828, %v4853
        %v4862 = vadd.f32 %v4829, %v4854
        %v4863 = vadd.f32 %v4830, %v4855
        %v4864 = vadd.f32 %v4831, %v4856
        %v4865 = vadd.f32 %v4832, %v4857
        %v4866 = vld [vmem:[#allocation3 + $0x50] sm:$0xff]
        %v4867 = vld [vmem:[#allocation3 + $0xd0] sm:$0xff]
        %v4868 = vld [vmem:[#allocation3 + $0x150] sm:$0xff]
        %v4869 = vld [vmem:[#allocation3 + $0x1d0] sm:$0xff]
        %v4870 = vld [vmem:[#allocation3 + $0x250] sm:$0xff]
        %v4871 = vld [vmem:[#allocation3 + $0x2d0] sm:$0xff]
        %v4872 = vld [vmem:[#allocation3 + $0x350] sm:$0xff]
        %v4873 = vld [vmem:[#allocation3 + $0x3d0] sm:$0xff]
        %s4874 = scalar_lea.vmem [#allocation2], 640
        %v4875 = vld [vmem:[%s4874] sm:$0xff]
        %v4876 = vld [vmem:[%s4874 + $0x8] sm:$0xff]
        %v4877 = vld [vmem:[%s4874 + $0x10] sm:$0xff]
        %v4878 = vld [vmem:[%s4874 + $0x18] sm:$0xff]
        %v4879 = vld [vmem:[%s4874 + $0x20] sm:$0xff]
        %v4880 = vld [vmem:[%s4874 + $0x28] sm:$0xff]
        %v4881 = vld [vmem:[%s4874 + $0x30] sm:$0xff]
        %v4882 = vld [vmem:[%s4874 + $0x38] sm:$0xff]
        %v4883 = vmul.f32 %v4866, %v4875
        %v4884 = vmul.f32 %v4867, %v4876
        %v4885 = vmul.f32 %v4868, %v4877
        %v4886 = vmul.f32 %v4869, %v4878
        %v4887 = vmul.f32 %v4870, %v4879
        %v4888 = vmul.f32 %v4871, %v4880
        %v4889 = vmul.f32 %v4872, %v4881
        %v4890 = vmul.f32 %v4873, %v4882
        %v4891 = vadd.f32 %v4858, %v4883
        %v4892 = vadd.f32 %v4859, %v4884
        %v4893 = vadd.f32 %v4860, %v4885
        %v4894 = vadd.f32 %v4861, %v4886
        %v4895 = vadd.f32 %v4862, %v4887
        %v4896 = vadd.f32 %v4863, %v4888
        %v4897 = vadd.f32 %v4864, %v4889
        %v4898 = vadd.f32 %v4865, %v4890
        %v4899 = vld [vmem:[#allocation3 + $0x58] sm:$0xff]
        %v4900 = vld [vmem:[#allocation3 + $0xd8] sm:$0xff]
        %v4901 = vld [vmem:[#allocation3 + $0x158] sm:$0xff]
        %v4902 = vld [vmem:[#allocation3 + $0x1d8] sm:$0xff]
        %v4903 = vld [vmem:[#allocation3 + $0x258] sm:$0xff]
        %v4904 = vld [vmem:[#allocation3 + $0x2d8] sm:$0xff]
        %v4905 = vld [vmem:[#allocation3 + $0x358] sm:$0xff]
        %v4906 = vld [vmem:[#allocation3 + $0x3d8] sm:$0xff]
        %s4907 = scalar_lea.vmem [#allocation2], 704
        %v4908 = vld [vmem:[%s4907] sm:$0xff]
        %v4909 = vld [vmem:[%s4907 + $0x8] sm:$0xff]
        %v4910 = vld [vmem:[%s4907 + $0x10] sm:$0xff]
        %v4911 = vld [vmem:[%s4907 + $0x18] sm:$0xff]
        %v4912 = vld [vmem:[%s4907 + $0x20] sm:$0xff]
        %v4913 = vld [vmem:[%s4907 + $0x28] sm:$0xff]
        %v4914 = vld [vmem:[%s4907 + $0x30] sm:$0xff]
        %v4915 = vld [vmem:[%s4907 + $0x38] sm:$0xff]
        %v4916 = vmul.f32 %v4899, %v4908
        %v4917 = vmul.f32 %v4900, %v4909
        %v4918 = vmul.f32 %v4901, %v4910
        %v4919 = vmul.f32 %v4902, %v4911
        %v4920 = vmul.f32 %v4903, %v4912
        %v4921 = vmul.f32 %v4904, %v4913
        %v4922 = vmul.f32 %v4905, %v4914
        %v4923 = vmul.f32 %v4906, %v4915
        %v4924 = vadd.f32 %v4891, %v4916
        %v4925 = vadd.f32 %v4892, %v4917
        %v4926 = vadd.f32 %v4893, %v4918
        %v4927 = vadd.f32 %v4894, %v4919
        %v4928 = vadd.f32 %v4895, %v4920
        %v4929 = vadd.f32 %v4896, %v4921
        %v4930 = vadd.f32 %v4897, %v4922
        %v4931 = vadd.f32 %v4898, %v4923
        %v4932 = vld [vmem:[#allocation3 + $0x60] sm:$0xff]
        %v4933 = vld [vmem:[#allocation3 + $0xe0] sm:$0xff]
        %v4934 = vld [vmem:[#allocation3 + $0x160] sm:$0xff]
        %v4935 = vld [vmem:[#allocation3 + $0x1e0] sm:$0xff]
        %v4936 = vld [vmem:[#allocation3 + $0x260] sm:$0xff]
        %v4937 = vld [vmem:[#allocation3 + $0x2e0] sm:$0xff]
        %v4938 = vld [vmem:[#allocation3 + $0x360] sm:$0xff]
        %v4939 = vld [vmem:[#allocation3 + $0x3e0] sm:$0xff]
        %s4940 = scalar_lea.vmem [#allocation2], 768
        %v4941 = vld [vmem:[%s4940] sm:$0xff]
        %v4942 = vld [vmem:[%s4940 + $0x8] sm:$0xff]
        %v4943 = vld [vmem:[%s4940 + $0x10] sm:$0xff]
        %v4944 = vld [vmem:[%s4940 + $0x18] sm:$0xff]
        %v4945 = vld [vmem:[%s4940 + $0x20] sm:$0xff]
        %v4946 = vld [vmem:[%s4940 + $0x28] sm:$0xff]
        %v4947 = vld [vmem:[%s4940 + $0x30] sm:$0xff]
        %v4948 = vld [vmem:[%s4940 + $0x38] sm:$0xff]
        %v4949 = vmul.f32 %v4932, %v4941
        %v4950 = vmul.f32 %v4933, %v4942
        %v4951 = vmul.f32 %v4934, %v4943
        %v4952 = vmul.f32 %v4935, %v4944
        %v4953 = vmul.f32 %v4936, %v4945
        %v4954 = vmul.f32 %v4937, %v4946
        %v4955 = vmul.f32 %v4938, %v4947
        %v4956 = vmul.f32 %v4939, %v4948
        %v4957 = vadd.f32 %v4924, %v4949
        %v4958 = vadd.f32 %v4925, %v4950
        %v4959 = vadd.f32 %v4926, %v4951
        %v4960 = vadd.f32 %v4927, %v4952
        %v4961 = vadd.f32 %v4928, %v4953
        %v4962 = vadd.f32 %v4929, %v4954
        %v4963 = vadd.f32 %v4930, %v4955
        %v4964 = vadd.f32 %v4931, %v4956
        %v4965 = vld [vmem:[#allocation3 + $0x68] sm:$0xff]
        %v4966 = vld [vmem:[#allocation3 + $0xe8] sm:$0xff]
        %v4967 = vld [vmem:[#allocation3 + $0x168] sm:$0xff]
        %v4968 = vld [vmem:[#allocation3 + $0x1e8] sm:$0xff]
        %v4969 = vld [vmem:[#allocation3 + $0x268] sm:$0xff]
        %v4970 = vld [vmem:[#allocation3 + $0x2e8] sm:$0xff]
        %v4971 = vld [vmem:[#allocation3 + $0x368] sm:$0xff]
        %v4972 = vld [vmem:[#allocation3 + $0x3e8] sm:$0xff]
        %s4973 = scalar_lea.vmem [#allocation2], 832
        %v4974 = vld [vmem:[%s4973] sm:$0xff]
        %v4975 = vld [vmem:[%s4973 + $0x8] sm:$0xff]
        %v4976 = vld [vmem:[%s4973 + $0x10] sm:$0xff]
        %v4977 = vld [vmem:[%s4973 + $0x18] sm:$0xff]
        %v4978 = vld [vmem:[%s4973 + $0x20] sm:$0xff]
        %v4979 = vld [vmem:[%s4973 + $0x28] sm:$0xff]
        %v4980 = vld [vmem:[%s4973 + $0x30] sm:$0xff]
        %v4981 = vld [vmem:[%s4973 + $0x38] sm:$0xff]
        %v4982 = vmul.f32 %v4965, %v4974
        %v4983 = vmul.f32 %v4966, %v4975
        %v4984 = vmul.f32 %v4967, %v4976
        %v4985 = vmul.f32 %v4968, %v4977
        %v4986 = vmul.f32 %v4969, %v4978
        %v4987 = vmul.f32 %v4970, %v4979
        %v4988 = vmul.f32 %v4971, %v4980
        %v4989 = vmul.f32 %v4972, %v4981
        %v4990 = vadd.f32 %v4957, %v4982
        %v4991 = vadd.f32 %v4958, %v4983
        %v4992 = vadd.f32 %v4959, %v4984
        %v4993 = vadd.f32 %v4960, %v4985
        %v4994 = vadd.f32 %v4961, %v4986
        %v4995 = vadd.f32 %v4962, %v4987
        %v4996 = vadd.f32 %v4963, %v4988
        %v4997 = vadd.f32 %v4964, %v4989
        %v4998 = vld [vmem:[#allocation3 + $0x70] sm:$0xff]
        %v4999 = vld [vmem:[#allocation3 + $0xf0] sm:$0xff]
        %v5000 = vld [vmem:[#allocation3 + $0x170] sm:$0xff]
        %v5001 = vld [vmem:[#allocation3 + $0x1f0] sm:$0xff]
        %v5002 = vld [vmem:[#allocation3 + $0x270] sm:$0xff]
        %v5003 = vld [vmem:[#allocation3 + $0x2f0] sm:$0xff]
        %v5004 = vld [vmem:[#allocation3 + $0x370] sm:$0xff]
        %v5005 = vld [vmem:[#allocation3 + $0x3f0] sm:$0xff]
        %s5006 = scalar_lea.vmem [#allocation2], 896
        %v5007 = vld [vmem:[%s5006] sm:$0xff]
        %v5008 = vld [vmem:[%s5006 + $0x8] sm:$0xff]
        %v5009 = vld [vmem:[%s5006 + $0x10] sm:$0xff]
        %v5010 = vld [vmem:[%s5006 + $0x18] sm:$0xff]
        %v5011 = vld [vmem:[%s5006 + $0x20] sm:$0xff]
        %v5012 = vld [vmem:[%s5006 + $0x28] sm:$0xff]
        %v5013 = vld [vmem:[%s5006 + $0x30] sm:$0xff]
        %v5014 = vld [vmem:[%s5006 + $0x38] sm:$0xff]
        %v5015 = vmul.f32 %v4998, %v5007
        %v5016 = vmul.f32 %v4999, %v5008
        %v5017 = vmul.f32 %v5000, %v5009
        %v5018 = vmul.f32 %v5001, %v5010
        %v5019 = vmul.f32 %v5002, %v5011
        %v5020 = vmul.f32 %v5003, %v5012
        %v5021 = vmul.f32 %v5004, %v5013
        %v5022 = vmul.f32 %v5005, %v5014
        %v5023 = vadd.f32 %v4990, %v5015
        %v5024 = vadd.f32 %v4991, %v5016
        %v5025 = vadd.f32 %v4992, %v5017
        %v5026 = vadd.f32 %v4993, %v5018
        %v5027 = vadd.f32 %v4994, %v5019
        %v5028 = vadd.f32 %v4995, %v5020
        %v5029 = vadd.f32 %v4996, %v5021
        %v5030 = vadd.f32 %v4997, %v5022
        %v5031 = vld [vmem:[#allocation3 + $0x78] sm:$0xff]
        %v5032 = vld [vmem:[#allocation3 + $0xf8] sm:$0xff]
        %v5033 = vld [vmem:[#allocation3 + $0x178] sm:$0xff]
        %v5034 = vld [vmem:[#allocation3 + $0x1f8] sm:$0xff]
        %v5035 = vld [vmem:[#allocation3 + $0x278] sm:$0xff]
        %v5036 = vld [vmem:[#allocation3 + $0x2f8] sm:$0xff]
        %v5037 = vld [vmem:[#allocation3 + $0x378] sm:$0xff]
        %v5038 = vld [vmem:[#allocation3 + $0x3f8] sm:$0xff]
        %s5039 = scalar_lea.vmem [#allocation2], 960
        %v5040 = vld [vmem:[%s5039] sm:$0xff]
        %v5041 = vld [vmem:[%s5039 + $0x8] sm:$0xff]
        %v5042 = vld [vmem:[%s5039 + $0x10] sm:$0xff]
        %v5043 = vld [vmem:[%s5039 + $0x18] sm:$0xff]
        %v5044 = vld [vmem:[%s5039 + $0x20] sm:$0xff]
        %v5045 = vld [vmem:[%s5039 + $0x28] sm:$0xff]
        %v5046 = vld [vmem:[%s5039 + $0x30] sm:$0xff]
        %v5047 = vld [vmem:[%s5039 + $0x38] sm:$0xff]
        %v5048 = vmul.f32 %v5031, %v5040
        %v5049 = vmul.f32 %v5032, %v5041
        %v5050 = vmul.f32 %v5033, %v5042
        %v5051 = vmul.f32 %v5034, %v5043
        %v5052 = vmul.f32 %v5035, %v5044
        %v5053 = vmul.f32 %v5036, %v5045
        %v5054 = vmul.f32 %v5037, %v5046
        %v5055 = vmul.f32 %v5038, %v5047
        %v5056 = vadd.f32 %v5023, %v5048
        %v5057 = vadd.f32 %v5024, %v5049
        %v5058 = vadd.f32 %v5025, %v5050
        %v5059 = vadd.f32 %v5026, %v5051
        %v5060 = vadd.f32 %v5027, %v5052
        %v5061 = vadd.f32 %v5028, %v5053
        %v5062 = vadd.f32 %v5029, %v5054
        %v5063 = vadd.f32 %v5030, %v5055
        %v5064 = vmax.f32 %v5056, 0.0
        %v5065 = vmax.f32 %v5057, 0.0
        %v5066 = vmax.f32 %v5058, 0.0
        %v5067 = vmax.f32 %v5059, 0.0
        %v5068 = vmax.f32 %v5060, 0.0
        %v5069 = vmax.f32 %v5061, 0.0
        %v5070 = vmax.f32 %v5062, 0.0
        %v5071 = vmax.f32 %v5063, 0.0
        %v5072 = vpack.c.bf16 %v5065, %v5064
        %v5073 = vpack.c.bf16 %v5067, %v5066
        %v5074 = vpack.c.bf16 %v5069, %v5068
        %v5075 = vpack.c.bf16 %v5071, %v5070
        %v5076 = vld [vmem:[#allocation18] sm:$0xf]
        %v5077 = vld [vmem:[#allocation18 + $0x4] sm:$0xf]
        %v5078 = vld [vmem:[#allocation18 + $0x8] sm:$0xf]
        %v5079 = vld [vmem:[#allocation18 + $0xc] sm:$0xf]
        %v5080 = vld [vmem:[#allocation18 + $0x10] sm:$0xf]
        %v5081 = vld [vmem:[#allocation18 + $0x14] sm:$0xf]
        %v5082 = vld [vmem:[#allocation18 + $0x18] sm:$0xf]
        %v5083 = vld [vmem:[#allocation18 + $0x1c] sm:$0xf]
        %v5084 = vld [vmem:[#allocation18 + $0x20] sm:$0xf]
        %v5085 = vld [vmem:[#allocation18 + $0x24] sm:$0xf]
        %v5086 = vld [vmem:[#allocation18 + $0x28] sm:$0xf]
        %v5087 = vld [vmem:[#allocation18 + $0x2c] sm:$0xf]
        %v5088 = vld [vmem:[#allocation18 + $0x30] sm:$0xf]
        %v5089 = vld [vmem:[#allocation18 + $0x34] sm:$0xf]
        %v5090 = vld [vmem:[#allocation18 + $0x38] sm:$0xf]
        %v5091 = vld [vmem:[#allocation18 + $0x3c] sm:$0xf]
        %v5092 = vld [vmem:[#allocation19] sm:$0x1]
        %v5094 = vperm.slane %v5092, 0
        %v5112 = vunpack.c.l.b16 %v5076
        %v5113 = vunpack.c.l.b16 %v5077
        %v5114 = vunpack.c.l.b16 %v5078
        %v5115 = vunpack.c.l.b16 %v5079
        %v5116 = vunpack.c.l.b16 %v5080
        %v5117 = vunpack.c.l.b16 %v5081
        %v5118 = vunpack.c.l.b16 %v5082
        %v5119 = vunpack.c.l.b16 %v5083
        %v5120 = vunpack.c.l.b16 %v5084
        %v5121 = vunpack.c.l.b16 %v5085
        %v5122 = vunpack.c.l.b16 %v5086
        %v5123 = vunpack.c.l.b16 %v5087
        %v5124 = vunpack.c.l.b16 %v5088
        %v5125 = vunpack.c.l.b16 %v5089
        %v5126 = vunpack.c.l.b16 %v5090
        %v5127 = vunpack.c.l.b16 %v5091
        %v5128 = vpack.c.b16 %v5113, %v5112
        %v5129 = vpack.c.b16 %v5115, %v5114
        %v5130 = vpack.c.b16 %v5117, %v5116
        %v5131 = vpack.c.b16 %v5119, %v5118
        %v5132 = vpack.c.b16 %v5121, %v5120
        %v5133 = vpack.c.b16 %v5123, %v5122
        %v5134 = vpack.c.b16 %v5125, %v5124
        %v5135 = vpack.c.b16 %v5127, %v5126
        %5144 = vmatpush.bf16.msra.mxu0 %v5135
        %5145 = vmatpush.bf16.msra.mxu0 %v5134
        %5146 = vmatpush.bf16.msra.mxu0 %v5133
        %5147 = vmatpush.bf16.msra.mxu0 %v5132
        %5148 = vmatpush.bf16.msra.mxu0 %v5131
        %5149 = vmatpush.bf16.msra.mxu0 %v5130
        %5150 = vmatpush.bf16.msra.mxu0 %v5129
        %5151 = vmatpush.bf16.msra.mxu0 %v5128
        %5152 = vmatmul.bf16.gmra.mxu0 %v5072
        %v5153 = vpop.f32.mrf.mxu0
        %v5154 = vadd.f32 %v5094, %v5153
        %v5155 = vpop.f32.mrf.mxu0
        %v5156 = vadd.f32 %v5094, %v5155
        %5157 = vmatmul.bf16.gmra.mxu0 %v5073
        %v5158 = vpop.f32.mrf.mxu0
        %v5159 = vadd.f32 %v5094, %v5158
        %v5160 = vpop.f32.mrf.mxu0
        %v5161 = vadd.f32 %v5094, %v5160
        %5162 = vmatmul.bf16.gmra.mxu0 %v5074
        %v5163 = vpop.f32.mrf.mxu0
        %v5164 = vadd.f32 %v5094, %v5163
        %v5165 = vpop.f32.mrf.mxu0
        %v5166 = vadd.f32 %v5094, %v5165
        %5167 = vmatmul.bf16.gmra.mxu0 %v5075
        %v5168 = vpop.f32.mrf.mxu0
        %v5169 = vadd.f32 %v5094, %v5168
        %v5170 = vpop.f32.mrf.mxu0
        %v5171 = vadd.f32 %v5094, %v5170
        %5172 = vdwg.mxu0
        %v5173 = vld [vmem:[%s574] sm:$0xff]
        %v5174 = vld [vmem:[%s574 + $0x8] sm:$0xff]
        %v5175 = vld [vmem:[%s574 + $0x10] sm:$0xff]
        %v5176 = vld [vmem:[%s574 + $0x18] sm:$0xff]
        %v5177 = vld [vmem:[%s574 + $0x20] sm:$0xff]
        %v5178 = vld [vmem:[%s574 + $0x28] sm:$0xff]
        %v5179 = vld [vmem:[%s574 + $0x30] sm:$0xff]
        %v5180 = vld [vmem:[%s574 + $0x38] sm:$0xff]
        %v5181 = vadd.f32 %v5154, %v5173
        %v5182 = vadd.f32 %v5156, %v5174
        %v5183 = vadd.f32 %v5159, %v5175
        %v5184 = vadd.f32 %v5161, %v5176
        %v5185 = vadd.f32 %v5164, %v5177
        %v5186 = vadd.f32 %v5166, %v5178
        %v5187 = vadd.f32 %v5169, %v5179
        %v5188 = vadd.f32 %v5171, %v5180
        %5189 = vst [vmem:[%s674] sm:$0xff] %v5181
        %5190 = vst [vmem:[%s674 + $0x8] sm:$0xff] %v5182
        %5191 = vst [vmem:[%s674 + $0x10] sm:$0xff] %v5183
        %5192 = vst [vmem:[%s674 + $0x18] sm:$0xff] %v5184
        %5193 = vst [vmem:[%s674 + $0x20] sm:$0xff] %v5185
        %5194 = vst [vmem:[%s674 + $0x28] sm:$0xff] %v5186
        %5195 = vst [vmem:[%s674 + $0x30] sm:$0xff] %v5187
        %5196 = vst [vmem:[%s674 + $0x38] sm:$0xff] %v5188
        %s5197 = sand.u32 %s350, 1
        %s5198 = scalar_lea.sflag [#allocation6], %s5197
        %s5199 = sand.u32 %s350, 1
        %s5200 = smul.addr %s5199, 64
        %s5201 = scalar_lea.vmem [#allocation21], %s5200
        // Predicated region
        $region117: #{tpu_custom_call.1} parent=75 // pred_check
          %p5202 = pneg %p360
        $region118: #{tpu_custom_call.1} parent=75 // pred_check_branch
          %5204 = sbr.rel (%p5202) target = $region120
        $region119: #{tpu_custom_call.1} parent=75 // pred_region
          %s5205 = smul.u32 8, %s38
          %5207 = vsyncadd %s5198, 0
          %s5208 = smul.addr %s5205, 8
          %s5209 = scalar_lea.hbm %s14, %s5208
          %s5210 = sshll.u32 %s5201, 4
          %s5211 = int_to_ptr.vmem [resolvable:$true] %s5210
          %s5212 = sshll.u32 %s5209, 4
          %s5213 = int_to_ptr.hbm [resolvable:$true] %s5212
          %5218 = dma.vmem_to_hbm [thread:$0]  %s5211, 1024, %s5213, %s5198, 128, 128, 8
        $region120: #{tpu_custom_call.1} parent=75 // pred_fallthru
          _
      $region76: #{tpu_custom_call.1} parent=5 // pred_fallthru
        _
      %p5219 = scmp.le.s32.totalorder 2, %s33
      // Predicated region
      $region121: #{tpu_custom_call.1} parent=5 // pred_check
        %p5220 = pneg %p5219
      $region122: #{tpu_custom_call.1} parent=5 // pred_check_branch
        %5222 = sbr.rel (%p5220) target = $region124
      $region123: #{tpu_custom_call.1} parent=5 // pred_region
        %s5223 = ssub.s32 %s33, 2
        // Predicated region
        $region125: #{tpu_custom_call.1} parent=123 // pred_check
          %p5224 = pneg %p366
        $region126: #{tpu_custom_call.1} parent=123 // pred_check_branch
          %5226 = sbr.rel (%p5224) target = $region128
        $region127: #{tpu_custom_call.1} parent=123 // pred_region
          %s5227 = sand.u32 %s351, 1
          %s5228 = scalar_lea.sflag [#allocation6], %s5227
          %s5229 = sand.u32 %s351, 1
          %s5230 = smul.addr %s5229, 64
          %s5231 = scalar_lea.vmem [#allocation21], %s5230
          %5233 = dma.done %s5228, 1024
        $region128: #{tpu_custom_call.1} parent=123 // pred_fallthru
          _
      $region124: #{tpu_custom_call.1} parent=5 // pred_fallthru
        _
    $region6: #{tpu_custom_call.1} parent=1 // loop_footer
      %s37 = sadd.s32 1, %s33
    $region7: #{tpu_custom_call.1} parent=1 // loop_footer_branch
      %32 = sbr.rel target = $region3
    $region8: #{tpu_custom_call.1} parent=1 // loop_exit
      _
    %5234 = vsyncpa [#allocation5], 1
    %s5235 = scalar_lea.sflag [#allocation5], 1
    %5236 = vsyncpa %s5235, 1
    %5237 = vsyncpa [#allocation8], 1
    %s5238 = scalar_lea.sflag [#allocation8], 1
    %5239 = vsyncpa %s5238, 1
    %5240 = vsyncpa [#allocation11], 1
    %5241 = vsyncpa [#allocation14], 1
    %5242 = vsyncpa [#allocation17], 1
    %5243 = vsyncpa [#allocation20], 1
    %5244 = vsyncpa [#allocation6], 1
    %s5245 = scalar_lea.sflag [#allocation6], 1
    %5246 = vsyncpa %s5245, 1

</llo_original>
